<compile_context>
chip_gen: v7x
topology: tpu7x:2x2x1
jax: 0.10.0
libtpu: 0.0.40
codegen_flags: <defaults>
</compile_context>

<pallas_src>
import jax
import jax.numpy as jnp
from jax.experimental import pallas as pl
from jax.experimental.pallas import tpu as pltpu

EPS = 1e-5  # PyTorch BatchNorm2d default eps


# ----------------------------------------------------------------------------
# Shape-only helpers (folded at compile time)
# ----------------------------------------------------------------------------
def _round_up(x, m):
    return ((x + m - 1) // m) * m


def _pad_geom(h, w):
    """(content row offset, total rows) of the padded row-flattened scratch."""
    off = max(8, _round_up(w, 8))              # 8-aligned, >= one image row
    rp = _round_up(off + h * w + w + 8, 8)     # covers all 3 kh tap windows
    return off, rp


def _w_edge_masks(h, w):
    """(2, h*w, 1): [0] zero where pixel-col == w-1, [1] zero where col == 0."""
    col = jnp.arange(h * w, dtype=jnp.int32) % w
    not_last = (col != w - 1).astype(jnp.float32).reshape(h * w, 1)
    not_first = (col != 0).astype(jnp.float32).reshape(h * w, 1)
    return jnp.stack([not_last, not_first], axis=0)


# ----------------------------------------------------------------------------
# Parameter folding (inference-mode BatchNorm folded into weights + shift)
# ----------------------------------------------------------------------------
def _fold_bn(bias, gamma, beta, mean, var):
    scale = gamma / jnp.sqrt(var + EPS)
    shift = (bias - mean) * scale + beta
    return scale, shift


def _conv_wmat(w_oihw, scale):
    """(cout,cin,3,3) -> (3, 3*cin, cout) bf16, K index = kw*cin + ci."""
    cin = w_oihw.shape[1]
    w = jnp.transpose(w_oihw, (2, 3, 1, 0))                 # (kh, kw, cin, cout)
    w = w * scale[None, None, None, :]
    return w.reshape(3, 3 * cin, -1).astype(jnp.bfloat16)


def _deconv_wmat(w_iohw, scale):
    """(cin,cout,2,2) -> (cin, 4*cout) bf16, lane index = (a*2+b)*cout + co."""
    cin, cout = w_iohw.shape[0], w_iohw.shape[1]
    w = jnp.transpose(w_iohw, (2, 3, 0, 1)).reshape(4, cin, cout)   # tap = a*2+b
    w = w * scale[None, None, :]
    return jnp.transpose(w, (1, 0, 2)).reshape(cin, 4 * cout).astype(jnp.bfloat16)


# ----------------------------------------------------------------------------
# The fused whole-network kernel (one grid step = one batch element)
# ----------------------------------------------------------------------------
def _make_kernel(H, W, C):
    geom = [(H, W, C, 32), (H // 2, W // 2, 32, 64), (H // 4, W // 4, 64, 128)]
    R3 = (H // 8) * (W // 8)                                 # rows of z

    def kernel(x_ref,
               cw1, cs1, wm1, cw2, cs2, wm2, cw3, cs3, wm3,
               dw1, db1, dw2, db2, dw3, db3,
               fw1, fb1, fw2, fb2,
               recon_ref, emb_ref,
               pad1, pad2, pad3, y1, y2, y3, dec_a, dec_b):

        def conv_bn_relu_pool(x_rows, pad_ref, y_ref, w_ref, shift_ref, wm_ref,
                              hh, ww, cin, co):
            hw = hh * ww
            off, rp = _pad_geom(hh, ww)

            # Zero ONLY the halo rows; interior rows are fully overwritten below.
            pad_ref[pl.ds(0, off + 8), :] = jnp.zeros((off + 8, 3 * cin),
                                                      jnp.bfloat16)
            tail = off + hw - 8
            pad_ref[pl.ds(tail, rp - tail), :] = jnp.zeros((rp - tail, 3 * cin),
                                                           jnp.bfloat16)

            # kw-packed im2col in bf16: lane block kw holds the (edge-masked)
            # image written with a -/+1 row pre-shift so that every tap read
            # below starts at an 8-aligned row.
            pad_ref[pl.ds(off + 1, hw), pl.ds(0, cin)] = \
                (x_rows * wm_ref[0, :, :]).astype(jnp.bfloat16)   # kw=0 (left nbr)
            pad_ref[pl.ds(off, hw), pl.ds(cin, cin)] = \
                x_rows.astype(jnp.bfloat16)                       # kw=1 (center)
            pad_ref[pl.ds(off - 1, hw), pl.ds(2 * cin, cin)] = \
                (x_rows * wm_ref[1, :, :]).astype(jnp.bfloat16)   # kw=2 (right nbr)

            # 3 bf16 MXU matmuls (one per kh) with K = 3*cin, f32 accumulation.
            acc = jnp.dot(pad_ref[pl.ds(off - ww, hw), :], w_ref[0, :, :],
                          preferred_element_type=jnp.float32)
            acc = acc + jnp.dot(pad_ref[pl.ds(off, hw), :], w_ref[1, :, :],
                                preferred_element_type=jnp.float32)
            acc = acc + jnp.dot(pad_ref[pl.ds(off + ww, hw), :], w_ref[2, :, :],
                                preferred_element_type=jnp.float32)
            # folded-BN shift + ReLU
            y_ref[...] = jnp.maximum(acc + shift_ref[:, :], 0.0)

            # Fused 2x2 max-pool: strided reads + VPU maxima (no MXU work).
            a = y_ref[pl.ds(0, hw // 2, stride=2), :]             # even cols
            b = y_ref[pl.ds(1, hw // 2, stride=2), :]             # odd cols
            c = jnp.maximum(a, b)                                 # rows (hh, ww/2)
            w2 = ww // 2
            for i in range(hh // 2):                              # vertical max
                y_ref[pl.ds(i * w2, w2), :] = jnp.maximum(
                    c[2 * i * w2:(2 * i + 1) * w2, :],
                    c[(2 * i + 1) * w2:(2 * i + 2) * w2, :])
            return y_ref[pl.ds(0, hw // 4), :]                    # (hw/4, co)

        # ------------------------- encoder -------------------------
        a1 = conv_bn_relu_pool(x_ref[0, :, :], pad1, y1, cw1, cs1, wm1, *geom[0])
        a2 = conv_bn_relu_pool(a1, pad2, y2, cw2, cs2, wm2, *geom[1])
        z = conv_bn_relu_pool(a2, pad3, y3, cw3, cs3, wm3, *geom[2])   # (R3, 128)

        # --------------------- embedding head ----------------------
        # AdaptiveAvgPool2d(1) == mean over spatial rows; broadcast to 8 rows so
        # the FC matmuls run on well-shaped (8, K) bf16 tiles.
        g = jnp.broadcast_to(jnp.mean(z, axis=0, keepdims=True), (8, 128))
        e = jnp.maximum(
            jnp.dot(g.astype(jnp.bfloat16), fw1[...],
                    preferred_element_type=jnp.float32) + fb1[...], 0.0)
        emb8 = jnp.dot(e.astype(jnp.bfloat16), fw2[...],
                       preferred_element_type=jnp.float32) + fb2[...]
        emb_ref[0, :, :] = emb8[0:1, :]

        # ------------------------- decoder -------------------------
        # ConvTranspose2d(2, stride=2) = ONE matmul with the 4 tap weights
        # concatenated along N; spatial interleave deferred to the wrapper.
        d1 = jnp.maximum(
            jnp.dot(z.astype(jnp.bfloat16), dw1[...],
                    preferred_element_type=jnp.float32) + db1[...], 0.0)   # (R3,256)
        for p in range(4):
            dec_a[pl.ds(p * R3, R3), :] = d1[:, p * 64:(p + 1) * 64]

        d2 = jnp.maximum(
            jnp.dot(dec_a[...].astype(jnp.bfloat16), dw2[...],
                    preferred_element_type=jnp.float32) + db2[...], 0.0)   # (4R3,128)
        for p in range(4):
            dec_b[pl.ds(p * 4 * R3, 4 * R3), :] = d2[:, p * 32:(p + 1) * 32]

        d3 = jnp.tanh(
            jnp.dot(dec_b[...].astype(jnp.bfloat16), dw3[...],
                    preferred_element_type=jnp.float32) + db3[...])        # (16R3,4C)
        recon_ref[0, :, :] = d3                       # lane-dense (HW/4, 4*C) store

    return kernel


# ----------------------------------------------------------------------------
# Full forward pass (PyTorch-compatible NCHW in / (recon, embedding) out)
# ----------------------------------------------------------------------------
def cerrado_forward(params, x_nchw):
    p = params
    N, C, H, W = x_nchw.shape
    assert H % 8 == 0 and W % 8 == 0, "spatial dims must be divisible by 8"
    HW = H * W
    R3 = (H // 8) * (W // 8)

    # ---- fold inference BatchNorm into weights / per-channel shifts ----
    s1, b1 = _fold_bn(p["conv1_b"], **p["bn1"])
    s2, b2 = _fold_bn(p["conv2_b"], **p["bn2"])
    s3, b3 = _fold_bn(p["conv3_b"], **p["bn3"])
    s4, b4 = _fold_bn(p["deconv1_b"], **p["bn4"])
    s5, b5 = _fold_bn(p["deconv2_b"], **p["bn5"])

    cw1, cs1 = _conv_wmat(p["conv1_w"], s1), b1.reshape(1, -1).astype(jnp.float32)
    cw2, cs2 = _conv_wmat(p["conv2_w"], s2), b2.reshape(1, -1).astype(jnp.float32)
    cw3, cs3 = _conv_wmat(p["conv3_w"], s3), b3.reshape(1, -1).astype(jnp.float32)
    dw1 = _deconv_wmat(p["deconv1_w"], s4)
    db1 = jnp.tile(b4.reshape(1, -1), (1, 4)).astype(jnp.float32)
    dw2 = _deconv_wmat(p["deconv2_w"], s5)
    db2 = jnp.tile(b5.reshape(1, -1), (1, 4)).astype(jnp.float32)
    dw3 = _deconv_wmat(p["deconv3_w"], jnp.ones((C,), jnp.float32))
    db3 = jnp.tile(p["deconv3_b"].reshape(1, -1), (1, 4)).astype(jnp.float32)
    fw1 = p["fc1_w"].T.astype(jnp.bfloat16)
    fb1 = p["fc1_b"].reshape(1, -1).astype(jnp.float32)
    fw2 = p["fc2_w"].T.astype(jnp.bfloat16)
    fb2 = p["fc2_b"].reshape(1, -1).astype(jnp.float32)

    # shape-only edge masks (kill the row-flattening column wrap)
    wm1 = _w_edge_masks(H, W)
    wm2 = _w_edge_masks(H // 2, W // 2)
    wm3 = _w_edge_masks(H // 4, W // 4)

    # NCHW -> row-flattened channels-last: rows = (h, w) row-major, lanes = C.
    x_rows = jnp.transpose(x_nchw, (0, 2, 3, 1)).reshape(N, HW, C).astype(jnp.float32)

    inputs = [x_rows,
              cw1, cs1, wm1, cw2, cs2, wm2, cw3, cs3, wm3,
              dw1, db1, dw2, db2, dw3, db3,
              fw1, fb1, fw2, fb2]

    def bcast_spec(arr):
        zero = (0,) * arr.ndim
        return pl.BlockSpec(arr.shape, lambda i, z=zero: z)

    in_specs = [pl.BlockSpec((1, HW, C), lambda i: (i, 0, 0))]
    in_specs += [bcast_spec(a) for a in inputs[1:]]

    out_shape = (jax.ShapeDtypeStruct((N, HW // 4, 4 * C), jnp.float32),
                 jax.ShapeDtypeStruct((N, 1, 32), jnp.float32))
    out_specs = (pl.BlockSpec((1, HW // 4, 4 * C), lambda i: (i, 0, 0)),
                 pl.BlockSpec((1, 1, 32), lambda i: (i, 0, 0)))

    _, rp1 = _pad_geom(H, W)
    _, rp2 = _pad_geom(H // 2, W // 2)
    _, rp3 = _pad_geom(H // 4, W // 4)
    scratch_shapes = [
        pltpu.VMEM((rp1, 3 * C), jnp.bfloat16),   # kw-packed im2col, conv1
        pltpu.VMEM((rp2, 96), jnp.bfloat16),      # kw-packed im2col, conv2
        pltpu.VMEM((rp3, 192), jnp.bfloat16),     # kw-packed im2col, conv3
        pltpu.VMEM((HW, 32), jnp.float32),        # conv1 pre-pool / pooled rows
        pltpu.VMEM((HW // 4, 64), jnp.float32),   # conv2 pre-pool / pooled rows
        pltpu.VMEM((HW // 16, 128), jnp.float32), # conv3 pre-pool / pooled rows
        pltpu.VMEM((4 * R3, 64), jnp.float32),    # deconv1 output assembly
        pltpu.VMEM((16 * R3, 32), jnp.float32),   # deconv2 output assembly
    ]

    # TODO(synk): for large N / larger images, block the batch axis (multiple
    # samples stacked into the M dim per grid step) to amortize per-step cost.
    recon_nested, emb = pl.pallas_call(
        _make_kernel(H, W, C),
        out_shape=out_shape,
        grid=(N,),
        in_specs=in_specs,
        out_specs=out_specs,
        scratch_shapes=scratch_shapes,
        compiler_params=pltpu.CompilerParams(
            dimension_semantics=("parallel",),
            vmem_limit_bytes=32 * 1024 * 1024),
    )(*inputs)

    # Untangle the nested decoder order with one tiny transpose:
    #   recon_nested[n, (a2,b2,a1,b1,i3,j3), (a3,b3,c)]
    #     -> recon[n, c, 8*i3+4*a1+2*a2+a3, 8*j3+4*b1+2*b2+b3]
    r = recon_nested.reshape(N, 2, 2, 2, 2, H // 8, W // 8, 2, 2, C)
    r = jnp.transpose(r, (0, 9, 5, 3, 1, 7, 6, 4, 2, 8))
    recon = r.reshape(N, C, H, W)
    return recon, emb.reshape(N, 32)


# ----------------------------------------------------------------------------
# Deterministic parameter initialization (same shapes as the PyTorch module)
# ----------------------------------------------------------------------------
def init_params(key, input_channels=12):
    keys = jax.random.split(key, 40)
    it = iter(range(40))

    def nrm(shape, s=0.1):
        return (s * jax.random.normal(keys[next(it)], shape)).astype(jnp.float32)

    def bn(c):
        # Inference-mode BatchNorm with deterministic running statistics.
        return dict(gamma=1.0 + nrm((c,), 0.05), beta=nrm((c,), 0.05),
                    mean=nrm((c,), 0.05), var=0.9 + jnp.abs(nrm((c,), 0.1)))

    p = {}
    p["conv1_w"] = nrm((32, input_channels, 3, 3)); p["conv1_b"] = nrm((32,))
    p["bn1"] = bn(32)
    p["conv2_w"] = nrm((64, 32, 3, 3)); p["conv2_b"] = nrm((64,))
    p["bn2"] = bn(64)
    p["conv3_w"] = nrm((128, 64, 3, 3)); p["conv3_b"] = nrm((128,))
    p["bn3"] = bn(128)
    p["deconv1_w"] = nrm((128, 64, 2, 2)); p["deconv1_b"] = nrm((64,))
    p["bn4"] = bn(64)
    p["deconv2_w"] = nrm((64, 32, 2, 2)); p["deconv2_b"] = nrm((32,))
    p["bn5"] = bn(32)
    p["deconv3_w"] = nrm((32, input_channels, 2, 2))
    p["deconv3_b"] = nrm((input_channels,))
    p["fc1_w"] = nrm((64, 128)); p["fc1_b"] = nrm((64,))
    p["fc2_w"] = nrm((32, 64)); p["fc2_b"] = nrm((32,))
    return p


if __name__ == "__main__":
    key = jax.random.PRNGKey(0)
    pkey, xkey = jax.random.split(key)
    params = init_params(pkey, input_channels=12)
    # NCHW input, matching the PyTorch module's convention.
    x = jax.random.normal(xkey, (2, 12, 16, 16), dtype=jnp.float32)

    fwd = jax.jit(cerrado_forward)
    recon, emb = fwd(params, x)
    jax.block_until_ready((recon, emb))

    assert recon.shape == (2, 12, 16, 16), recon.shape
    assert emb.shape == (2, 32), emb.shape
    assert bool(jnp.isfinite(recon).all()) and bool(jnp.isfinite(emb).all())
    print("KERNEL_OK")
</pallas_src>

<mosaic_0001>
module attributes {stable_mosaic.version = 11 : i64} {
  func.func @kernel(%arg0: i32, %arg1: memref<1x256x12xf32, #tpu.memory_space<vmem>>, %arg2: memref<3x36x32xbf16, #tpu.memory_space<vmem>>, %arg3: memref<1x32xf32, #tpu.memory_space<vmem>>, %arg4: memref<2x256x1xf32, #tpu.memory_space<vmem>>, %arg5: memref<3x96x64xbf16, #tpu.memory_space<vmem>>, %arg6: memref<1x64xf32, #tpu.memory_space<vmem>>, %arg7: memref<2x64x1xf32, #tpu.memory_space<vmem>>, %arg8: memref<3x192x128xbf16, #tpu.memory_space<vmem>>, %arg9: memref<1x128xf32, #tpu.memory_space<vmem>>, %arg10: memref<2x16x1xf32, #tpu.memory_space<vmem>>, %arg11: memref<128x256xbf16, #tpu.memory_space<vmem>>, %arg12: memref<1x256xf32, #tpu.memory_space<vmem>>, %arg13: memref<64x128xbf16, #tpu.memory_space<vmem>>, %arg14: memref<1x128xf32, #tpu.memory_space<vmem>>, %arg15: memref<32x48xbf16, #tpu.memory_space<vmem>>, %arg16: memref<1x48xf32, #tpu.memory_space<vmem>>, %arg17: memref<128x64xbf16, #tpu.memory_space<vmem>>, %arg18: memref<1x64xf32, #tpu.memory_space<vmem>>, %arg19: memref<64x32xbf16, #tpu.memory_space<vmem>>, %arg20: memref<1x32xf32, #tpu.memory_space<vmem>>, %arg21: memref<1x64x48xf32, #tpu.memory_space<vmem>>, %arg22: memref<1x1x32xf32, #tpu.memory_space<vmem>>, %arg23: memref<296x36xbf16, #tpu.memory_space<vmem>>, %arg24: memref<88x96xbf16, #tpu.memory_space<vmem>>, %arg25: memref<40x192xbf16, #tpu.memory_space<vmem>>, %arg26: memref<256x32xf32, #tpu.memory_space<vmem>>, %arg27: memref<64x64xf32, #tpu.memory_space<vmem>>, %arg28: memref<16x128xf32, #tpu.memory_space<vmem>>, %arg29: memref<16x64xf32, #tpu.memory_space<vmem>>, %arg30: memref<64x32xf32, #tpu.memory_space<vmem>>) attributes {dimension_semantics = [#tpu.dimension_semantics<parallel>], iteration_bounds = array<i64: 2>, scalar_prefetch = 0 : i64, scratch_operands = 8 : i64, tpu.core_type = #tpu.core_type<tc>, window_params = [{transform_indices = @transform_0, window_bounds = array<i64: 1, 256, 12>}, {pipeline_mode = #tpu.pipeline_mode<synchronous>, transform_indices = @transform_1, window_bounds = array<i64: 3, 36, 32>}, {pipeline_mode = #tpu.pipeline_mode<synchronous>, transform_indices = @transform_2, window_bounds = array<i64: 1, 32>}, {pipeline_mode = #tpu.pipeline_mode<synchronous>, transform_indices = @transform_3, window_bounds = array<i64: 2, 256, 1>}, {pipeline_mode = #tpu.pipeline_mode<synchronous>, transform_indices = @transform_4, window_bounds = array<i64: 3, 96, 64>}, {pipeline_mode = #tpu.pipeline_mode<synchronous>, transform_indices = @transform_5, window_bounds = array<i64: 1, 64>}, {pipeline_mode = #tpu.pipeline_mode<synchronous>, transform_indices = @transform_6, window_bounds = array<i64: 2, 64, 1>}, {pipeline_mode = #tpu.pipeline_mode<synchronous>, transform_indices = @transform_7, window_bounds = array<i64: 3, 192, 128>}, {pipeline_mode = #tpu.pipeline_mode<synchronous>, transform_indices = @transform_8, window_bounds = array<i64: 1, 128>}, {pipeline_mode = #tpu.pipeline_mode<synchronous>, transform_indices = @transform_9, window_bounds = array<i64: 2, 16, 1>}, {pipeline_mode = #tpu.pipeline_mode<synchronous>, transform_indices = @transform_10, window_bounds = array<i64: 128, 256>}, {pipeline_mode = #tpu.pipeline_mode<synchronous>, transform_indices = @transform_11, window_bounds = array<i64: 1, 256>}, {pipeline_mode = #tpu.pipeline_mode<synchronous>, transform_indices = @transform_12, window_bounds = array<i64: 64, 128>}, {pipeline_mode = #tpu.pipeline_mode<synchronous>, transform_indices = @transform_13, window_bounds = array<i64: 1, 128>}, {pipeline_mode = #tpu.pipeline_mode<synchronous>, transform_indices = @transform_14, window_bounds = array<i64: 32, 48>}, {pipeline_mode = #tpu.pipeline_mode<synchronous>, transform_indices = @transform_15, window_bounds = array<i64: 1, 48>}, {pipeline_mode = #tpu.pipeline_mode<synchronous>, transform_indices = @transform_16, window_bounds = array<i64: 128, 64>}, {pipeline_mode = #tpu.pipeline_mode<synchronous>, transform_indices = @transform_17, window_bounds = array<i64: 1, 64>}, {pipeline_mode = #tpu.pipeline_mode<synchronous>, transform_indices = @transform_18, window_bounds = array<i64: 64, 32>}, {pipeline_mode = #tpu.pipeline_mode<synchronous>, transform_indices = @transform_19, window_bounds = array<i64: 1, 32>}, {transform_indices = @transform_20, window_bounds = array<i64: 1, 64, 48>}, {transform_indices = @transform_21, window_bounds = array<i64: 1, 1, 32>}]} {
    %c0 = arith.constant 0 : index
    %c0_0 = arith.constant 0 : index
    %c0_1 = arith.constant 0 : index
    %0 = vector.load %arg1[%c0, %c0_0, %c0_1] : memref<1x256x12xf32, #tpu.memory_space<vmem>>, vector<1x256x12xf32>
    %1 = vector.shape_cast %0 : vector<1x256x12xf32> to vector<256x12xf32>
    %cst = arith.constant 0.000000e+00 : bf16
    %2 = vector.broadcast %cst : bf16 to vector<24x36xbf16>
    %c0_2 = arith.constant 0 : index
    %c0_3 = arith.constant 0 : index
    %3 = vector.load %arg23[%c0_2, %c0_3] : memref<296x36xbf16, #tpu.memory_space<vmem>>, vector<24x36xbf16>
    tpu.vector_store %arg23[%c0_2, %c0_3], %2 {strides = array<i32>} : memref<296x36xbf16, #tpu.memory_space<vmem>>, vector<24x36xbf16>,
    %cst_4 = arith.constant 0.000000e+00 : bf16
    %4 = vector.broadcast %cst_4 : bf16 to vector<32x36xbf16>
    %c264 = arith.constant 264 : index
    %c0_5 = arith.constant 0 : index
    %5 = vector.load %arg23[%c264, %c0_5] : memref<296x36xbf16, #tpu.memory_space<vmem>>, vector<32x36xbf16>
    tpu.vector_store %arg23[%c264, %c0_5], %4 {strides = array<i32>} : memref<296x36xbf16, #tpu.memory_space<vmem>>, vector<32x36xbf16>,
    %c0_6 = arith.constant 0 : index
    %c0_7 = arith.constant 0 : index
    %c0_8 = arith.constant 0 : index
    %6 = vector.load %arg4[%c0_6, %c0_7, %c0_8] : memref<2x256x1xf32, #tpu.memory_space<vmem>>, vector<1x256x1xf32>
    %7 = vector.shape_cast %6 : vector<1x256x1xf32> to vector<256x1xf32>
    %8 = vector.broadcast %7 : vector<256x1xf32> to vector<256x12xf32>
    %9 = arith.mulf %1, %8 : vector<256x12xf32>
    %10 = arith.truncf %9 : vector<256x12xf32> to vector<256x12xbf16>
    %c17 = arith.constant 17 : index
    %c0_9 = arith.constant 0 : index
    %11 = vector.load %arg23[%c17, %c0_9] : memref<296x36xbf16, #tpu.memory_space<vmem>>, vector<256x12xbf16>
    tpu.vector_store %arg23[%c17, %c0_9], %10 {strides = array<i32>} : memref<296x36xbf16, #tpu.memory_space<vmem>>, vector<256x12xbf16>,
    %12 = arith.truncf %1 : vector<256x12xf32> to vector<256x12xbf16>
    %c16 = arith.constant 16 : index
    %c12 = arith.constant 12 : index
    %13 = vector.load %arg23[%c16, %c12] : memref<296x36xbf16, #tpu.memory_space<vmem>>, vector<256x12xbf16>
    tpu.vector_store %arg23[%c16, %c12], %12 {strides = array<i32>} : memref<296x36xbf16, #tpu.memory_space<vmem>>, vector<256x12xbf16>,
    %c1 = arith.constant 1 : index
    %c0_10 = arith.constant 0 : index
    %c0_11 = arith.constant 0 : index
    %14 = vector.load %arg4[%c1, %c0_10, %c0_11] : memref<2x256x1xf32, #tpu.memory_space<vmem>>, vector<1x256x1xf32>
    %15 = vector.shape_cast %14 : vector<1x256x1xf32> to vector<256x1xf32>
    %16 = vector.broadcast %15 : vector<256x1xf32> to vector<256x12xf32>
    %17 = arith.mulf %1, %16 : vector<256x12xf32>
    %18 = arith.truncf %17 : vector<256x12xf32> to vector<256x12xbf16>
    %c15 = arith.constant 15 : index
    %c24 = arith.constant 24 : index
    %19 = vector.load %arg23[%c15, %c24] : memref<296x36xbf16, #tpu.memory_space<vmem>>, vector<256x12xbf16>
    tpu.vector_store %arg23[%c15, %c24], %18 {strides = array<i32>} : memref<296x36xbf16, #tpu.memory_space<vmem>>, vector<256x12xbf16>,
    %c0_12 = arith.constant 0 : index
    %c0_13 = arith.constant 0 : index
    %20 = vector.load %arg23[%c0_12, %c0_13] : memref<296x36xbf16, #tpu.memory_space<vmem>>, vector<256x36xbf16>
    %c0_14 = arith.constant 0 : index
    %c0_15 = arith.constant 0 : index
    %c0_16 = arith.constant 0 : index
    %21 = vector.load %arg2[%c0_14, %c0_15, %c0_16] : memref<3x36x32xbf16, #tpu.memory_space<vmem>>, vector<1x36x32xbf16>
    %22 = vector.shape_cast %21 : vector<1x36x32xbf16> to vector<36x32xbf16>
    %cst_17 = arith.constant dense<0.000000e+00> : vector<256x32xf32>
    %23 = tpu.matmul %20, %22, %cst_17 {dimension_numbers = #tpu.dot_dimension_numbers<[1], [0], [0], [1], [0, 0, 1, 1], [], []>} : vector<256x36xbf16>, vector<36x32xbf16>, vector<256x32xf32> -> vector<256x32xf32>
    %c16_18 = arith.constant 16 : index
    %c0_19 = arith.constant 0 : index
    %24 = vector.load %arg23[%c16_18, %c0_19] : memref<296x36xbf16, #tpu.memory_space<vmem>>, vector<256x36xbf16>
    %c1_20 = arith.constant 1 : index
    %c0_21 = arith.constant 0 : index
    %c0_22 = arith.constant 0 : index
    %25 = vector.load %arg2[%c1_20, %c0_21, %c0_22] : memref<3x36x32xbf16, #tpu.memory_space<vmem>>, vector<1x36x32xbf16>
    %26 = vector.shape_cast %25 : vector<1x36x32xbf16> to vector<36x32xbf16>
    %cst_23 = arith.constant dense<0.000000e+00> : vector<256x32xf32>
    %27 = tpu.matmul %24, %26, %cst_23 {dimension_numbers = #tpu.dot_dimension_numbers<[1], [0], [0], [1], [0, 0, 1, 1], [], []>} : vector<256x36xbf16>, vector<36x32xbf16>, vector<256x32xf32> -> vector<256x32xf32>
    %28 = arith.addf %23, %27 : vector<256x32xf32>
    %c32 = arith.constant 32 : index
    %c0_24 = arith.constant 0 : index
    %29 = vector.load %arg23[%c32, %c0_24] : memref<296x36xbf16, #tpu.memory_space<vmem>>, vector<256x36xbf16>
    %c2 = arith.constant 2 : index
    %c0_25 = arith.constant 0 : index
    %c0_26 = arith.constant 0 : index
    %30 = vector.load %arg2[%c2, %c0_25, %c0_26] : memref<3x36x32xbf16, #tpu.memory_space<vmem>>, vector<1x36x32xbf16>
    %31 = vector.shape_cast %30 : vector<1x36x32xbf16> to vector<36x32xbf16>
    %cst_27 = arith.constant dense<0.000000e+00> : vector<256x32xf32>
    %32 = tpu.matmul %29, %31, %cst_27 {dimension_numbers = #tpu.dot_dimension_numbers<[1], [0], [0], [1], [0, 0, 1, 1], [], []>} : vector<256x36xbf16>, vector<36x32xbf16>, vector<256x32xf32> -> vector<256x32xf32>
    %33 = arith.addf %28, %32 : vector<256x32xf32>
    %c0_28 = arith.constant 0 : index
    %c0_29 = arith.constant 0 : index
    %34 = vector.load %arg3[%c0_28, %c0_29] : memref<1x32xf32, #tpu.memory_space<vmem>>, vector<1x32xf32>
    %35 = vector.broadcast %34 : vector<1x32xf32> to vector<256x32xf32>
    %36 = arith.addf %33, %35 : vector<256x32xf32>
    %cst_30 = arith.constant 0.000000e+00 : f32
    %37 = vector.broadcast %cst_30 : f32 to vector<256x32xf32>
    %38 = arith.maximumf %36, %37 : vector<256x32xf32>
    %c0_31 = arith.constant 0 : index
    %c0_32 = arith.constant 0 : index
    %39 = vector.load %arg26[%c0_31, %c0_32] : memref<256x32xf32, #tpu.memory_space<vmem>>, vector<256x32xf32>
    tpu.vector_store %arg26[%c0_31, %c0_32], %38 {strides = array<i32>} : memref<256x32xf32, #tpu.memory_space<vmem>>, vector<256x32xf32>,
    %c0_33 = arith.constant 0 : index
    %c0_34 = arith.constant 0 : index
    %40 = tpu.strided_load %arg26[%c0_33, %c0_34] {strides = array<i32: 2, 1>} : memref<256x32xf32, #tpu.memory_space<vmem>>, vector<128x32xf32>
    %c1_35 = arith.constant 1 : index
    %c0_36 = arith.constant 0 : index
    %41 = tpu.strided_load %arg26[%c1_35, %c0_36] {strides = array<i32: 2, 1>} : memref<256x32xf32, #tpu.memory_space<vmem>>, vector<128x32xf32>
    %42 = arith.maximumf %40, %41 : vector<128x32xf32>
    %43 = vector.extract_strided_slice %42 {offsets = [0, 0], sizes = [8, 32], strides = [1, 1]} : vector<128x32xf32> to vector<8x32xf32>
    %44 = vector.extract_strided_slice %42 {offsets = [8, 0], sizes = [8, 32], strides = [1, 1]} : vector<128x32xf32> to vector<8x32xf32>
    %45 = arith.maximumf %43, %44 : vector<8x32xf32>
    %c0_37 = arith.constant 0 : index
    %c0_38 = arith.constant 0 : index
    %46 = vector.load %arg26[%c0_37, %c0_38] : memref<256x32xf32, #tpu.memory_space<vmem>>, vector<8x32xf32>
    tpu.vector_store %arg26[%c0_37, %c0_38], %45 {strides = array<i32>} : memref<256x32xf32, #tpu.memory_space<vmem>>, vector<8x32xf32>,
    %47 = vector.extract_strided_slice %42 {offsets = [16, 0], sizes = [8, 32], strides = [1, 1]} : vector<128x32xf32> to vector<8x32xf32>
    %48 = vector.extract_strided_slice %42 {offsets = [24, 0], sizes = [8, 32], strides = [1, 1]} : vector<128x32xf32> to vector<8x32xf32>
    %49 = arith.maximumf %47, %48 : vector<8x32xf32>
    %c8 = arith.constant 8 : index
    %c0_39 = arith.constant 0 : index
    %50 = vector.load %arg26[%c8, %c0_39] : memref<256x32xf32, #tpu.memory_space<vmem>>, vector<8x32xf32>
    tpu.vector_store %arg26[%c8, %c0_39], %49 {strides = array<i32>} : memref<256x32xf32, #tpu.memory_space<vmem>>, vector<8x32xf32>,
    %51 = vector.extract_strided_slice %42 {offsets = [32, 0], sizes = [8, 32], strides = [1, 1]} : vector<128x32xf32> to vector<8x32xf32>
    %52 = vector.extract_strided_slice %42 {offsets = [40, 0], sizes = [8, 32], strides = [1, 1]} : vector<128x32xf32> to vector<8x32xf32>
    %53 = arith.maximumf %51, %52 : vector<8x32xf32>
    %c16_40 = arith.constant 16 : index
    %c0_41 = arith.constant 0 : index
    %54 = vector.load %arg26[%c16_40, %c0_41] : memref<256x32xf32, #tpu.memory_space<vmem>>, vector<8x32xf32>
    tpu.vector_store %arg26[%c16_40, %c0_41], %53 {strides = array<i32>} : memref<256x32xf32, #tpu.memory_space<vmem>>, vector<8x32xf32>,
    %55 = vector.extract_strided_slice %42 {offsets = [48, 0], sizes = [8, 32], strides = [1, 1]} : vector<128x32xf32> to vector<8x32xf32>
    %56 = vector.extract_strided_slice %42 {offsets = [56, 0], sizes = [8, 32], strides = [1, 1]} : vector<128x32xf32> to vector<8x32xf32>
    %57 = arith.maximumf %55, %56 : vector<8x32xf32>
    %c24_42 = arith.constant 24 : index
    %c0_43 = arith.constant 0 : index
    %58 = vector.load %arg26[%c24_42, %c0_43] : memref<256x32xf32, #tpu.memory_space<vmem>>, vector<8x32xf32>
    tpu.vector_store %arg26[%c24_42, %c0_43], %57 {strides = array<i32>} : memref<256x32xf32, #tpu.memory_space<vmem>>, vector<8x32xf32>,
    %59 = vector.extract_strided_slice %42 {offsets = [64, 0], sizes = [8, 32], strides = [1, 1]} : vector<128x32xf32> to vector<8x32xf32>
    %60 = vector.extract_strided_slice %42 {offsets = [72, 0], sizes = [8, 32], strides = [1, 1]} : vector<128x32xf32> to vector<8x32xf32>
    %61 = arith.maximumf %59, %60 : vector<8x32xf32>
    %c32_44 = arith.constant 32 : index
    %c0_45 = arith.constant 0 : index
    %62 = vector.load %arg26[%c32_44, %c0_45] : memref<256x32xf32, #tpu.memory_space<vmem>>, vector<8x32xf32>
    tpu.vector_store %arg26[%c32_44, %c0_45], %61 {strides = array<i32>} : memref<256x32xf32, #tpu.memory_space<vmem>>, vector<8x32xf32>,
    %63 = vector.extract_strided_slice %42 {offsets = [80, 0], sizes = [8, 32], strides = [1, 1]} : vector<128x32xf32> to vector<8x32xf32>
    %64 = vector.extract_strided_slice %42 {offsets = [88, 0], sizes = [8, 32], strides = [1, 1]} : vector<128x32xf32> to vector<8x32xf32>
    %65 = arith.maximumf %63, %64 : vector<8x32xf32>
    %c40 = arith.constant 40 : index
    %c0_46 = arith.constant 0 : index
    %66 = vector.load %arg26[%c40, %c0_46] : memref<256x32xf32, #tpu.memory_space<vmem>>, vector<8x32xf32>
    tpu.vector_store %arg26[%c40, %c0_46], %65 {strides = array<i32>} : memref<256x32xf32, #tpu.memory_space<vmem>>, vector<8x32xf32>,
    %67 = vector.extract_strided_slice %42 {offsets = [96, 0], sizes = [8, 32], strides = [1, 1]} : vector<128x32xf32> to vector<8x32xf32>
    %68 = vector.extract_strided_slice %42 {offsets = [104, 0], sizes = [8, 32], strides = [1, 1]} : vector<128x32xf32> to vector<8x32xf32>
    %69 = arith.maximumf %67, %68 : vector<8x32xf32>
    %c48 = arith.constant 48 : index
    %c0_47 = arith.constant 0 : index
    %70 = vector.load %arg26[%c48, %c0_47] : memref<256x32xf32, #tpu.memory_space<vmem>>, vector<8x32xf32>
    tpu.vector_store %arg26[%c48, %c0_47], %69 {strides = array<i32>} : memref<256x32xf32, #tpu.memory_space<vmem>>, vector<8x32xf32>,
    %71 = vector.extract_strided_slice %42 {offsets = [112, 0], sizes = [8, 32], strides = [1, 1]} : vector<128x32xf32> to vector<8x32xf32>
    %72 = vector.extract_strided_slice %42 {offsets = [120, 0], sizes = [8, 32], strides = [1, 1]} : vector<128x32xf32> to vector<8x32xf32>
    %73 = arith.maximumf %71, %72 : vector<8x32xf32>
    %c56 = arith.constant 56 : index
    %c0_48 = arith.constant 0 : index
    %74 = vector.load %arg26[%c56, %c0_48] : memref<256x32xf32, #tpu.memory_space<vmem>>, vector<8x32xf32>
    tpu.vector_store %arg26[%c56, %c0_48], %73 {strides = array<i32>} : memref<256x32xf32, #tpu.memory_space<vmem>>, vector<8x32xf32>,
    %c0_49 = arith.constant 0 : index
    %c0_50 = arith.constant 0 : index
    %75 = vector.load %arg26[%c0_49, %c0_50] : memref<256x32xf32, #tpu.memory_space<vmem>>, vector<64x32xf32>
    %cst_51 = arith.constant 0.000000e+00 : bf16
    %76 = vector.broadcast %cst_51 : bf16 to vector<16x96xbf16>
    %c0_52 = arith.constant 0 : index
    %c0_53 = arith.constant 0 : index
    %77 = vector.load %arg24[%c0_52, %c0_53] : memref<88x96xbf16, #tpu.memory_space<vmem>>, vector<16x96xbf16>
    tpu.vector_store %arg24[%c0_52, %c0_53], %76 {strides = array<i32>} : memref<88x96xbf16, #tpu.memory_space<vmem>>, vector<16x96xbf16>,
    %cst_54 = arith.constant 0.000000e+00 : bf16
    %78 = vector.broadcast %cst_54 : bf16 to vector<24x96xbf16>
    %c64 = arith.constant 64 : index
    %c0_55 = arith.constant 0 : index
    %79 = vector.load %arg24[%c64, %c0_55] : memref<88x96xbf16, #tpu.memory_space<vmem>>, vector<24x96xbf16>
    tpu.vector_store %arg24[%c64, %c0_55], %78 {strides = array<i32>} : memref<88x96xbf16, #tpu.memory_space<vmem>>, vector<24x96xbf16>,
    %c0_56 = arith.constant 0 : index
    %c0_57 = arith.constant 0 : index
    %c0_58 = arith.constant 0 : index
    %80 = vector.load %arg7[%c0_56, %c0_57, %c0_58] : memref<2x64x1xf32, #tpu.memory_space<vmem>>, vector<1x64x1xf32>
    %81 = vector.shape_cast %80 : vector<1x64x1xf32> to vector<64x1xf32>
    %82 = vector.broadcast %81 : vector<64x1xf32> to vector<64x32xf32>
    %83 = arith.mulf %75, %82 : vector<64x32xf32>
    %84 = arith.truncf %83 : vector<64x32xf32> to vector<64x32xbf16>
    %c9 = arith.constant 9 : index
    %c0_59 = arith.constant 0 : index
    %85 = vector.load %arg24[%c9, %c0_59] : memref<88x96xbf16, #tpu.memory_space<vmem>>, vector<64x32xbf16>
    tpu.vector_store %arg24[%c9, %c0_59], %84 {strides = array<i32>} : memref<88x96xbf16, #tpu.memory_space<vmem>>, vector<64x32xbf16>,
    %86 = arith.truncf %75 : vector<64x32xf32> to vector<64x32xbf16>
    %c8_60 = arith.constant 8 : index
    %c32_61 = arith.constant 32 : index
    %87 = vector.load %arg24[%c8_60, %c32_61] : memref<88x96xbf16, #tpu.memory_space<vmem>>, vector<64x32xbf16>
    tpu.vector_store %arg24[%c8_60, %c32_61], %86 {strides = array<i32>} : memref<88x96xbf16, #tpu.memory_space<vmem>>, vector<64x32xbf16>,
    %c1_62 = arith.constant 1 : index
    %c0_63 = arith.constant 0 : index
    %c0_64 = arith.constant 0 : index
    %88 = vector.load %arg7[%c1_62, %c0_63, %c0_64] : memref<2x64x1xf32, #tpu.memory_space<vmem>>, vector<1x64x1xf32>
    %89 = vector.shape_cast %88 : vector<1x64x1xf32> to vector<64x1xf32>
    %90 = vector.broadcast %89 : vector<64x1xf32> to vector<64x32xf32>
    %91 = arith.mulf %75, %90 : vector<64x32xf32>
    %92 = arith.truncf %91 : vector<64x32xf32> to vector<64x32xbf16>
    %c7 = arith.constant 7 : index
    %c64_65 = arith.constant 64 : index
    %93 = vector.load %arg24[%c7, %c64_65] : memref<88x96xbf16, #tpu.memory_space<vmem>>, vector<64x32xbf16>
    tpu.vector_store %arg24[%c7, %c64_65], %92 {strides = array<i32>} : memref<88x96xbf16, #tpu.memory_space<vmem>>, vector<64x32xbf16>,
    %c0_66 = arith.constant 0 : index
    %c0_67 = arith.constant 0 : index
    %94 = vector.load %arg24[%c0_66, %c0_67] : memref<88x96xbf16, #tpu.memory_space<vmem>>, vector<64x96xbf16>
    %c0_68 = arith.constant 0 : index
    %c0_69 = arith.constant 0 : index
    %c0_70 = arith.constant 0 : index
    %95 = vector.load %arg5[%c0_68, %c0_69, %c0_70] : memref<3x96x64xbf16, #tpu.memory_space<vmem>>, vector<1x96x64xbf16>
    %96 = vector.shape_cast %95 : vector<1x96x64xbf16> to vector<96x64xbf16>
    %cst_71 = arith.constant dense<0.000000e+00> : vector<64x64xf32>
    %97 = tpu.matmul %94, %96, %cst_71 {dimension_numbers = #tpu.dot_dimension_numbers<[1], [0], [0], [1], [0, 0, 1, 1], [], []>} : vector<64x96xbf16>, vector<96x64xbf16>, vector<64x64xf32> -> vector<64x64xf32>
    %c8_72 = arith.constant 8 : index
    %c0_73 = arith.constant 0 : index
    %98 = vector.load %arg24[%c8_72, %c0_73] : memref<88x96xbf16, #tpu.memory_space<vmem>>, vector<64x96xbf16>
    %c1_74 = arith.constant 1 : index
    %c0_75 = arith.constant 0 : index
    %c0_76 = arith.constant 0 : index
    %99 = vector.load %arg5[%c1_74, %c0_75, %c0_76] : memref<3x96x64xbf16, #tpu.memory_space<vmem>>, vector<1x96x64xbf16>
    %100 = vector.shape_cast %99 : vector<1x96x64xbf16> to vector<96x64xbf16>
    %cst_77 = arith.constant dense<0.000000e+00> : vector<64x64xf32>
    %101 = tpu.matmul %98, %100, %cst_77 {dimension_numbers = #tpu.dot_dimension_numbers<[1], [0], [0], [1], [0, 0, 1, 1], [], []>} : vector<64x96xbf16>, vector<96x64xbf16>, vector<64x64xf32> -> vector<64x64xf32>
    %102 = arith.addf %97, %101 : vector<64x64xf32>
    %c16_78 = arith.constant 16 : index
    %c0_79 = arith.constant 0 : index
    %103 = vector.load %arg24[%c16_78, %c0_79] : memref<88x96xbf16, #tpu.memory_space<vmem>>, vector<64x96xbf16>
    %c2_80 = arith.constant 2 : index
    %c0_81 = arith.constant 0 : index
    %c0_82 = arith.constant 0 : index
    %104 = vector.load %arg5[%c2_80, %c0_81, %c0_82] : memref<3x96x64xbf16, #tpu.memory_space<vmem>>, vector<1x96x64xbf16>
    %105 = vector.shape_cast %104 : vector<1x96x64xbf16> to vector<96x64xbf16>
    %cst_83 = arith.constant dense<0.000000e+00> : vector<64x64xf32>
    %106 = tpu.matmul %103, %105, %cst_83 {dimension_numbers = #tpu.dot_dimension_numbers<[1], [0], [0], [1], [0, 0, 1, 1], [], []>} : vector<64x96xbf16>, vector<96x64xbf16>, vector<64x64xf32> -> vector<64x64xf32>
    %107 = arith.addf %102, %106 : vector<64x64xf32>
    %c0_84 = arith.constant 0 : index
    %c0_85 = arith.constant 0 : index
    %108 = vector.load %arg6[%c0_84, %c0_85] : memref<1x64xf32, #tpu.memory_space<vmem>>, vector<1x64xf32>
    %109 = vector.broadcast %108 : vector<1x64xf32> to vector<64x64xf32>
    %110 = arith.addf %107, %109 : vector<64x64xf32>
    %cst_86 = arith.constant 0.000000e+00 : f32
    %111 = vector.broadcast %cst_86 : f32 to vector<64x64xf32>
    %112 = arith.maximumf %110, %111 : vector<64x64xf32>
    %c0_87 = arith.constant 0 : index
    %c0_88 = arith.constant 0 : index
    %113 = vector.load %arg27[%c0_87, %c0_88] : memref<64x64xf32, #tpu.memory_space<vmem>>, vector<64x64xf32>
    tpu.vector_store %arg27[%c0_87, %c0_88], %112 {strides = array<i32>} : memref<64x64xf32, #tpu.memory_space<vmem>>, vector<64x64xf32>,
    %c0_89 = arith.constant 0 : index
    %c0_90 = arith.constant 0 : index
    %114 = tpu.strided_load %arg27[%c0_89, %c0_90] {strides = array<i32: 2, 1>} : memref<64x64xf32, #tpu.memory_space<vmem>>, vector<32x64xf32>
    %c1_91 = arith.constant 1 : index
    %c0_92 = arith.constant 0 : index
    %115 = tpu.strided_load %arg27[%c1_91, %c0_92] {strides = array<i32: 2, 1>} : memref<64x64xf32, #tpu.memory_space<vmem>>, vector<32x64xf32>
    %116 = arith.maximumf %114, %115 : vector<32x64xf32>
    %117 = vector.extract_strided_slice %116 {offsets = [0, 0], sizes = [4, 64], strides = [1, 1]} : vector<32x64xf32> to vector<4x64xf32>
    %118 = vector.extract_strided_slice %116 {offsets = [4, 0], sizes = [4, 64], strides = [1, 1]} : vector<32x64xf32> to vector<4x64xf32>
    %119 = arith.maximumf %117, %118 : vector<4x64xf32>
    %c0_93 = arith.constant 0 : index
    %c0_94 = arith.constant 0 : index
    %120 = vector.load %arg27[%c0_93, %c0_94] : memref<64x64xf32, #tpu.memory_space<vmem>>, vector<4x64xf32>
    tpu.vector_store %arg27[%c0_93, %c0_94], %119 {strides = array<i32>} : memref<64x64xf32, #tpu.memory_space<vmem>>, vector<4x64xf32>,
    %121 = vector.extract_strided_slice %116 {offsets = [8, 0], sizes = [4, 64], strides = [1, 1]} : vector<32x64xf32> to vector<4x64xf32>
    %122 = vector.extract_strided_slice %116 {offsets = [12, 0], sizes = [4, 64], strides = [1, 1]} : vector<32x64xf32> to vector<4x64xf32>
    %123 = arith.maximumf %121, %122 : vector<4x64xf32>
    %c4 = arith.constant 4 : index
    %c0_95 = arith.constant 0 : index
    %124 = vector.load %arg27[%c4, %c0_95] : memref<64x64xf32, #tpu.memory_space<vmem>>, vector<4x64xf32>
    tpu.vector_store %arg27[%c4, %c0_95], %123 {strides = array<i32>} : memref<64x64xf32, #tpu.memory_space<vmem>>, vector<4x64xf32>,
    %125 = vector.extract_strided_slice %116 {offsets = [16, 0], sizes = [4, 64], strides = [1, 1]} : vector<32x64xf32> to vector<4x64xf32>
    %126 = vector.extract_strided_slice %116 {offsets = [20, 0], sizes = [4, 64], strides = [1, 1]} : vector<32x64xf32> to vector<4x64xf32>
    %127 = arith.maximumf %125, %126 : vector<4x64xf32>
    %c8_96 = arith.constant 8 : index
    %c0_97 = arith.constant 0 : index
    %128 = vector.load %arg27[%c8_96, %c0_97] : memref<64x64xf32, #tpu.memory_space<vmem>>, vector<4x64xf32>
    tpu.vector_store %arg27[%c8_96, %c0_97], %127 {strides = array<i32>} : memref<64x64xf32, #tpu.memory_space<vmem>>, vector<4x64xf32>,
    %129 = vector.extract_strided_slice %116 {offsets = [24, 0], sizes = [4, 64], strides = [1, 1]} : vector<32x64xf32> to vector<4x64xf32>
    %130 = vector.extract_strided_slice %116 {offsets = [28, 0], sizes = [4, 64], strides = [1, 1]} : vector<32x64xf32> to vector<4x64xf32>
    %131 = arith.maximumf %129, %130 : vector<4x64xf32>
    %c12_98 = arith.constant 12 : index
    %c0_99 = arith.constant 0 : index
    %132 = vector.load %arg27[%c12_98, %c0_99] : memref<64x64xf32, #tpu.memory_space<vmem>>, vector<4x64xf32>
    tpu.vector_store %arg27[%c12_98, %c0_99], %131 {strides = array<i32>} : memref<64x64xf32, #tpu.memory_space<vmem>>, vector<4x64xf32>,
    %c0_100 = arith.constant 0 : index
    %c0_101 = arith.constant 0 : index
    %133 = vector.load %arg27[%c0_100, %c0_101] : memref<64x64xf32, #tpu.memory_space<vmem>>, vector<16x64xf32>
    %cst_102 = arith.constant 0.000000e+00 : bf16
    %134 = vector.broadcast %cst_102 : bf16 to vector<16x192xbf16>
    %c0_103 = arith.constant 0 : index
    %c0_104 = arith.constant 0 : index
    %135 = vector.load %arg25[%c0_103, %c0_104] : memref<40x192xbf16, #tpu.memory_space<vmem>>, vector<16x192xbf16>
    tpu.vector_store %arg25[%c0_103, %c0_104], %134 {strides = array<i32>} : memref<40x192xbf16, #tpu.memory_space<vmem>>, vector<16x192xbf16>,
    %cst_105 = arith.constant 0.000000e+00 : bf16
    %136 = vector.broadcast %cst_105 : bf16 to vector<24x192xbf16>
    %c16_106 = arith.constant 16 : index
    %c0_107 = arith.constant 0 : index
    %137 = vector.load %arg25[%c16_106, %c0_107] : memref<40x192xbf16, #tpu.memory_space<vmem>>, vector<24x192xbf16>
    tpu.vector_store %arg25[%c16_106, %c0_107], %136 {strides = array<i32>} : memref<40x192xbf16, #tpu.memory_space<vmem>>, vector<24x192xbf16>,
    %c0_108 = arith.constant 0 : index
    %c0_109 = arith.constant 0 : index
    %c0_110 = arith.constant 0 : index
    %138 = vector.load %arg10[%c0_108, %c0_109, %c0_110] : memref<2x16x1xf32, #tpu.memory_space<vmem>>, vector<1x16x1xf32>
    %139 = vector.shape_cast %138 : vector<1x16x1xf32> to vector<16x1xf32>
    %140 = vector.broadcast %139 : vector<16x1xf32> to vector<16x64xf32>
    %141 = arith.mulf %133, %140 : vector<16x64xf32>
    %142 = arith.truncf %141 : vector<16x64xf32> to vector<16x64xbf16>
    %c9_111 = arith.constant 9 : index
    %c0_112 = arith.constant 0 : index
    %143 = vector.load %arg25[%c9_111, %c0_112] : memref<40x192xbf16, #tpu.memory_space<vmem>>, vector<16x64xbf16>
    tpu.vector_store %arg25[%c9_111, %c0_112], %142 {strides = array<i32>} : memref<40x192xbf16, #tpu.memory_space<vmem>>, vector<16x64xbf16>,
    %144 = arith.truncf %133 : vector<16x64xf32> to vector<16x64xbf16>
    %c8_113 = arith.constant 8 : index
    %c64_114 = arith.constant 64 : index
    %145 = vector.load %arg25[%c8_113, %c64_114] : memref<40x192xbf16, #tpu.memory_space<vmem>>, vector<16x64xbf16>
    tpu.vector_store %arg25[%c8_113, %c64_114], %144 {strides = array<i32>} : memref<40x192xbf16, #tpu.memory_space<vmem>>, vector<16x64xbf16>,
    %c1_115 = arith.constant 1 : index
    %c0_116 = arith.constant 0 : index
    %c0_117 = arith.constant 0 : index
    %146 = vector.load %arg10[%c1_115, %c0_116, %c0_117] : memref<2x16x1xf32, #tpu.memory_space<vmem>>, vector<1x16x1xf32>
    %147 = vector.shape_cast %146 : vector<1x16x1xf32> to vector<16x1xf32>
    %148 = vector.broadcast %147 : vector<16x1xf32> to vector<16x64xf32>
    %149 = arith.mulf %133, %148 : vector<16x64xf32>
    %150 = arith.truncf %149 : vector<16x64xf32> to vector<16x64xbf16>
    %c7_118 = arith.constant 7 : index
    %c128 = arith.constant 128 : index
    %151 = vector.load %arg25[%c7_118, %c128] : memref<40x192xbf16, #tpu.memory_space<vmem>>, vector<16x64xbf16>
    tpu.vector_store %arg25[%c7_118, %c128], %150 {strides = array<i32>} : memref<40x192xbf16, #tpu.memory_space<vmem>>, vector<16x64xbf16>,
    %c4_119 = arith.constant 4 : index
    %c0_120 = arith.constant 0 : index
    %152 = vector.load %arg25[%c4_119, %c0_120] : memref<40x192xbf16, #tpu.memory_space<vmem>>, vector<16x192xbf16>
    %c0_121 = arith.constant 0 : index
    %c0_122 = arith.constant 0 : index
    %c0_123 = arith.constant 0 : index
    %153 = vector.load %arg8[%c0_121, %c0_122, %c0_123] : memref<3x192x128xbf16, #tpu.memory_space<vmem>>, vector<1x192x128xbf16>
    %154 = vector.shape_cast %153 : vector<1x192x128xbf16> to vector<192x128xbf16>
    %cst_124 = arith.constant dense<0.000000e+00> : vector<16x128xf32>
    %155 = tpu.matmul %152, %154, %cst_124 {dimension_numbers = #tpu.dot_dimension_numbers<[1], [0], [0], [1], [0, 0, 1, 1], [], []>} : vector<16x192xbf16>, vector<192x128xbf16>, vector<16x128xf32> -> vector<16x128xf32>
    %c8_125 = arith.constant 8 : index
    %c0_126 = arith.constant 0 : index
    %156 = vector.load %arg25[%c8_125, %c0_126] : memref<40x192xbf16, #tpu.memory_space<vmem>>, vector<16x192xbf16>
    %c1_127 = arith.constant 1 : index
    %c0_128 = arith.constant 0 : index
    %c0_129 = arith.constant 0 : index
    %157 = vector.load %arg8[%c1_127, %c0_128, %c0_129] : memref<3x192x128xbf16, #tpu.memory_space<vmem>>, vector<1x192x128xbf16>
    %158 = vector.shape_cast %157 : vector<1x192x128xbf16> to vector<192x128xbf16>
    %cst_130 = arith.constant dense<0.000000e+00> : vector<16x128xf32>
    %159 = tpu.matmul %156, %158, %cst_130 {dimension_numbers = #tpu.dot_dimension_numbers<[1], [0], [0], [1], [0, 0, 1, 1], [], []>} : vector<16x192xbf16>, vector<192x128xbf16>, vector<16x128xf32> -> vector<16x128xf32>
    %160 = arith.addf %155, %159 : vector<16x128xf32>
    %c12_131 = arith.constant 12 : index
    %c0_132 = arith.constant 0 : index
    %161 = vector.load %arg25[%c12_131, %c0_132] : memref<40x192xbf16, #tpu.memory_space<vmem>>, vector<16x192xbf16>
    %c2_133 = arith.constant 2 : index
    %c0_134 = arith.constant 0 : index
    %c0_135 = arith.constant 0 : index
    %162 = vector.load %arg8[%c2_133, %c0_134, %c0_135] : memref<3x192x128xbf16, #tpu.memory_space<vmem>>, vector<1x192x128xbf16>
    %163 = vector.shape_cast %162 : vector<1x192x128xbf16> to vector<192x128xbf16>
    %cst_136 = arith.constant dense<0.000000e+00> : vector<16x128xf32>
    %164 = tpu.matmul %161, %163, %cst_136 {dimension_numbers = #tpu.dot_dimension_numbers<[1], [0], [0], [1], [0, 0, 1, 1], [], []>} : vector<16x192xbf16>, vector<192x128xbf16>, vector<16x128xf32> -> vector<16x128xf32>
    %165 = arith.addf %160, %164 : vector<16x128xf32>
    %c0_137 = arith.constant 0 : index
    %c0_138 = arith.constant 0 : index
    %166 = vector.load %arg9[%c0_137, %c0_138] : memref<1x128xf32, #tpu.memory_space<vmem>>, vector<1x128xf32>
    %167 = vector.broadcast %166 : vector<1x128xf32> to vector<16x128xf32>
    %168 = arith.addf %165, %167 : vector<16x128xf32>
    %cst_139 = arith.constant 0.000000e+00 : f32
    %169 = vector.broadcast %cst_139 : f32 to vector<16x128xf32>
    %170 = arith.maximumf %168, %169 : vector<16x128xf32>
    %c0_140 = arith.constant 0 : index
    %c0_141 = arith.constant 0 : index
    %171 = vector.load %arg28[%c0_140, %c0_141] : memref<16x128xf32, #tpu.memory_space<vmem>>, vector<16x128xf32>
    tpu.vector_store %arg28[%c0_140, %c0_141], %170 {strides = array<i32>} : memref<16x128xf32, #tpu.memory_space<vmem>>, vector<16x128xf32>,
    %c0_142 = arith.constant 0 : index
    %c0_143 = arith.constant 0 : index
    %172 = tpu.strided_load %arg28[%c0_142, %c0_143] {strides = array<i32: 2, 1>} : memref<16x128xf32, #tpu.memory_space<vmem>>, vector<8x128xf32>
    %c1_144 = arith.constant 1 : index
    %c0_145 = arith.constant 0 : index
    %173 = tpu.strided_load %arg28[%c1_144, %c0_145] {strides = array<i32: 2, 1>} : memref<16x128xf32, #tpu.memory_space<vmem>>, vector<8x128xf32>
    %174 = arith.maximumf %172, %173 : vector<8x128xf32>
    %175 = vector.extract_strided_slice %174 {offsets = [0, 0], sizes = [2, 128], strides = [1, 1]} : vector<8x128xf32> to vector<2x128xf32>
    %176 = vector.extract_strided_slice %174 {offsets = [2, 0], sizes = [2, 128], strides = [1, 1]} : vector<8x128xf32> to vector<2x128xf32>
    %177 = arith.maximumf %175, %176 : vector<2x128xf32>
    %c0_146 = arith.constant 0 : index
    %c0_147 = arith.constant 0 : index
    %178 = vector.load %arg28[%c0_146, %c0_147] : memref<16x128xf32, #tpu.memory_space<vmem>>, vector<2x128xf32>
    tpu.vector_store %arg28[%c0_146, %c0_147], %177 {strides = array<i32>} : memref<16x128xf32, #tpu.memory_space<vmem>>, vector<2x128xf32>,
    %179 = vector.extract_strided_slice %174 {offsets = [4, 0], sizes = [2, 128], strides = [1, 1]} : vector<8x128xf32> to vector<2x128xf32>
    %180 = vector.extract_strided_slice %174 {offsets = [6, 0], sizes = [2, 128], strides = [1, 1]} : vector<8x128xf32> to vector<2x128xf32>
    %181 = arith.maximumf %179, %180 : vector<2x128xf32>
    %c2_148 = arith.constant 2 : index
    %c0_149 = arith.constant 0 : index
    %182 = vector.load %arg28[%c2_148, %c0_149] : memref<16x128xf32, #tpu.memory_space<vmem>>, vector<2x128xf32>
    tpu.vector_store %arg28[%c2_148, %c0_149], %181 {strides = array<i32>} : memref<16x128xf32, #tpu.memory_space<vmem>>, vector<2x128xf32>,
    %c0_150 = arith.constant 0 : index
    %c0_151 = arith.constant 0 : index
    %183 = vector.load %arg28[%c0_150, %c0_151] : memref<16x128xf32, #tpu.memory_space<vmem>>, vector<4x128xf32>
    %cst_152 = arith.constant dense<0.000000e+00> : vector<128xf32>
    %184 = vector.multi_reduction <add>, %183, %cst_152 [0] : vector<4x128xf32> to vector<128xf32>
    %185 = vector.shape_cast %184 : vector<128xf32> to vector<1x128xf32>
    %cst_153 = arith.constant 4.000000e+00 : f32
    %186 = vector.broadcast %cst_153 : f32 to vector<1x128xf32>
    %187 = arith.divf %185, %186 : vector<1x128xf32>
    %188 = vector.shape_cast %187 : vector<1x128xf32> to vector<1x128xf32>
    %189 = vector.broadcast %188 : vector<1x128xf32> to vector<8x128xf32>
    %190 = arith.truncf %189 : vector<8x128xf32> to vector<8x128xbf16>
    %c0_154 = arith.constant 0 : index
    %c0_155 = arith.constant 0 : index
    %191 = vector.load %arg17[%c0_154, %c0_155] : memref<128x64xbf16, #tpu.memory_space<vmem>>, vector<128x64xbf16>
    %cst_156 = arith.constant dense<0.000000e+00> : vector<8x64xf32>
    %192 = tpu.matmul %190, %191, %cst_156 {dimension_numbers = #tpu.dot_dimension_numbers<[1], [0], [0], [1], [0, 0, 1, 1], [], []>} : vector<8x128xbf16>, vector<128x64xbf16>, vector<8x64xf32> -> vector<8x64xf32>
    %c0_157 = arith.constant 0 : index
    %c0_158 = arith.constant 0 : index
    %193 = vector.load %arg18[%c0_157, %c0_158] : memref<1x64xf32, #tpu.memory_space<vmem>>, vector<1x64xf32>
    %194 = vector.broadcast %193 : vector<1x64xf32> to vector<8x64xf32>
    %195 = arith.addf %192, %194 : vector<8x64xf32>
    %cst_159 = arith.constant 0.000000e+00 : f32
    %196 = vector.broadcast %cst_159 : f32 to vector<8x64xf32>
    %197 = arith.maximumf %195, %196 : vector<8x64xf32>
    %198 = arith.truncf %197 : vector<8x64xf32> to vector<8x64xbf16>
    %c0_160 = arith.constant 0 : index
    %c0_161 = arith.constant 0 : index
    %199 = vector.load %arg19[%c0_160, %c0_161] : memref<64x32xbf16, #tpu.memory_space<vmem>>, vector<64x32xbf16>
    %cst_162 = arith.constant dense<0.000000e+00> : vector<8x32xf32>
    %200 = tpu.matmul %198, %199, %cst_162 {dimension_numbers = #tpu.dot_dimension_numbers<[1], [0], [0], [1], [0, 0, 1, 1], [], []>} : vector<8x64xbf16>, vector<64x32xbf16>, vector<8x32xf32> -> vector<8x32xf32>
    %c0_163 = arith.constant 0 : index
    %c0_164 = arith.constant 0 : index
    %201 = vector.load %arg20[%c0_163, %c0_164] : memref<1x32xf32, #tpu.memory_space<vmem>>, vector<1x32xf32>
    %202 = vector.broadcast %201 : vector<1x32xf32> to vector<8x32xf32>
    %203 = arith.addf %200, %202 : vector<8x32xf32>
    %204 = vector.extract_strided_slice %203 {offsets = [0, 0], sizes = [1, 32], strides = [1, 1]} : vector<8x32xf32> to vector<1x32xf32>
    %c0_165 = arith.constant 0 : index
    %c0_166 = arith.constant 0 : index
    %c0_167 = arith.constant 0 : index
    %205 = vector.load %arg22[%c0_165, %c0_166, %c0_167] : memref<1x1x32xf32, #tpu.memory_space<vmem>>, vector<1x1x32xf32>
    %206 = vector.shape_cast %205 : vector<1x1x32xf32> to vector<1x32xf32>
    %207 = vector.shape_cast %204 : vector<1x32xf32> to vector<1x1x32xf32>
    tpu.vector_store %arg22[%c0_165, %c0_166, %c0_167], %207 {strides = array<i32>} : memref<1x1x32xf32, #tpu.memory_space<vmem>>, vector<1x1x32xf32>,
    %208 = arith.truncf %183 : vector<4x128xf32> to vector<4x128xbf16>
    %c0_168 = arith.constant 0 : index
    %c0_169 = arith.constant 0 : index
    %209 = vector.load %arg11[%c0_168, %c0_169] : memref<128x256xbf16, #tpu.memory_space<vmem>>, vector<128x256xbf16>
    %cst_170 = arith.constant dense<0.000000e+00> : vector<4x256xf32>
    %210 = tpu.matmul %208, %209, %cst_170 {dimension_numbers = #tpu.dot_dimension_numbers<[1], [0], [0], [1], [0, 0, 1, 1], [], []>} : vector<4x128xbf16>, vector<128x256xbf16>, vector<4x256xf32> -> vector<4x256xf32>
    %c0_171 = arith.constant 0 : index
    %c0_172 = arith.constant 0 : index
    %211 = vector.load %arg12[%c0_171, %c0_172] : memref<1x256xf32, #tpu.memory_space<vmem>>, vector<1x256xf32>
    %212 = vector.broadcast %211 : vector<1x256xf32> to vector<4x256xf32>
    %213 = arith.addf %210, %212 : vector<4x256xf32>
    %cst_173 = arith.constant 0.000000e+00 : f32
    %214 = vector.broadcast %cst_173 : f32 to vector<4x256xf32>
    %215 = arith.maximumf %213, %214 : vector<4x256xf32>
    %216 = vector.extract_strided_slice %215 {offsets = [0, 0], sizes = [4, 64], strides = [1, 1]} : vector<4x256xf32> to vector<4x64xf32>
    %c0_174 = arith.constant 0 : index
    %c0_175 = arith.constant 0 : index
    %217 = vector.load %arg29[%c0_174, %c0_175] : memref<16x64xf32, #tpu.memory_space<vmem>>, vector<4x64xf32>
    tpu.vector_store %arg29[%c0_174, %c0_175], %216 {strides = array<i32>} : memref<16x64xf32, #tpu.memory_space<vmem>>, vector<4x64xf32>,
    %218 = vector.extract_strided_slice %215 {offsets = [0, 64], sizes = [4, 64], strides = [1, 1]} : vector<4x256xf32> to vector<4x64xf32>
    %c4_176 = arith.constant 4 : index
    %c0_177 = arith.constant 0 : index
    %219 = vector.load %arg29[%c4_176, %c0_177] : memref<16x64xf32, #tpu.memory_space<vmem>>, vector<4x64xf32>
    tpu.vector_store %arg29[%c4_176, %c0_177], %218 {strides = array<i32>} : memref<16x64xf32, #tpu.memory_space<vmem>>, vector<4x64xf32>,
    %220 = vector.extract_strided_slice %215 {offsets = [0, 128], sizes = [4, 64], strides = [1, 1]} : vector<4x256xf32> to vector<4x64xf32>
    %c8_178 = arith.constant 8 : index
    %c0_179 = arith.constant 0 : index
    %221 = vector.load %arg29[%c8_178, %c0_179] : memref<16x64xf32, #tpu.memory_space<vmem>>, vector<4x64xf32>
    tpu.vector_store %arg29[%c8_178, %c0_179], %220 {strides = array<i32>} : memref<16x64xf32, #tpu.memory_space<vmem>>, vector<4x64xf32>,
    %222 = vector.extract_strided_slice %215 {offsets = [0, 192], sizes = [4, 64], strides = [1, 1]} : vector<4x256xf32> to vector<4x64xf32>
    %c12_180 = arith.constant 12 : index
    %c0_181 = arith.constant 0 : index
    %223 = vector.load %arg29[%c12_180, %c0_181] : memref<16x64xf32, #tpu.memory_space<vmem>>, vector<4x64xf32>
    tpu.vector_store %arg29[%c12_180, %c0_181], %222 {strides = array<i32>} : memref<16x64xf32, #tpu.memory_space<vmem>>, vector<4x64xf32>,
    %c0_182 = arith.constant 0 : index
    %c0_183 = arith.constant 0 : index
    %224 = vector.load %arg29[%c0_182, %c0_183] : memref<16x64xf32, #tpu.memory_space<vmem>>, vector<16x64xf32>
    %225 = arith.truncf %224 : vector<16x64xf32> to vector<16x64xbf16>
    %c0_184 = arith.constant 0 : index
    %c0_185 = arith.constant 0 : index
    %226 = vector.load %arg13[%c0_184, %c0_185] : memref<64x128xbf16, #tpu.memory_space<vmem>>, vector<64x128xbf16>
    %cst_186 = arith.constant dense<0.000000e+00> : vector<16x128xf32>
    %227 = tpu.matmul %225, %226, %cst_186 {dimension_numbers = #tpu.dot_dimension_numbers<[1], [0], [0], [1], [0, 0, 1, 1], [], []>} : vector<16x64xbf16>, vector<64x128xbf16>, vector<16x128xf32> -> vector<16x128xf32>
    %c0_187 = arith.constant 0 : index
    %c0_188 = arith.constant 0 : index
    %228 = vector.load %arg14[%c0_187, %c0_188] : memref<1x128xf32, #tpu.memory_space<vmem>>, vector<1x128xf32>
    %229 = vector.broadcast %228 : vector<1x128xf32> to vector<16x128xf32>
    %230 = arith.addf %227, %229 : vector<16x128xf32>
    %cst_189 = arith.constant 0.000000e+00 : f32
    %231 = vector.broadcast %cst_189 : f32 to vector<16x128xf32>
    %232 = arith.maximumf %230, %231 : vector<16x128xf32>
    %233 = vector.extract_strided_slice %232 {offsets = [0, 0], sizes = [16, 32], strides = [1, 1]} : vector<16x128xf32> to vector<16x32xf32>
    %c0_190 = arith.constant 0 : index
    %c0_191 = arith.constant 0 : index
    %234 = vector.load %arg30[%c0_190, %c0_191] : memref<64x32xf32, #tpu.memory_space<vmem>>, vector<16x32xf32>
    tpu.vector_store %arg30[%c0_190, %c0_191], %233 {strides = array<i32>} : memref<64x32xf32, #tpu.memory_space<vmem>>, vector<16x32xf32>,
    %235 = vector.extract_strided_slice %232 {offsets = [0, 32], sizes = [16, 32], strides = [1, 1]} : vector<16x128xf32> to vector<16x32xf32>
    %c16_192 = arith.constant 16 : index
    %c0_193 = arith.constant 0 : index
    %236 = vector.load %arg30[%c16_192, %c0_193] : memref<64x32xf32, #tpu.memory_space<vmem>>, vector<16x32xf32>
    tpu.vector_store %arg30[%c16_192, %c0_193], %235 {strides = array<i32>} : memref<64x32xf32, #tpu.memory_space<vmem>>, vector<16x32xf32>,
    %237 = vector.extract_strided_slice %232 {offsets = [0, 64], sizes = [16, 32], strides = [1, 1]} : vector<16x128xf32> to vector<16x32xf32>
    %c32_194 = arith.constant 32 : index
    %c0_195 = arith.constant 0 : index
    %238 = vector.load %arg30[%c32_194, %c0_195] : memref<64x32xf32, #tpu.memory_space<vmem>>, vector<16x32xf32>
    tpu.vector_store %arg30[%c32_194, %c0_195], %237 {strides = array<i32>} : memref<64x32xf32, #tpu.memory_space<vmem>>, vector<16x32xf32>,
    %239 = vector.extract_strided_slice %232 {offsets = [0, 96], sizes = [16, 32], strides = [1, 1]} : vector<16x128xf32> to vector<16x32xf32>
    %c48_196 = arith.constant 48 : index
    %c0_197 = arith.constant 0 : index
    %240 = vector.load %arg30[%c48_196, %c0_197] : memref<64x32xf32, #tpu.memory_space<vmem>>, vector<16x32xf32>
    tpu.vector_store %arg30[%c48_196, %c0_197], %239 {strides = array<i32>} : memref<64x32xf32, #tpu.memory_space<vmem>>, vector<16x32xf32>,
    %c0_198 = arith.constant 0 : index
    %c0_199 = arith.constant 0 : index
    %241 = vector.load %arg30[%c0_198, %c0_199] : memref<64x32xf32, #tpu.memory_space<vmem>>, vector<64x32xf32>
    %242 = arith.truncf %241 : vector<64x32xf32> to vector<64x32xbf16>
    %c0_200 = arith.constant 0 : index
    %c0_201 = arith.constant 0 : index
    %243 = vector.load %arg15[%c0_200, %c0_201] : memref<32x48xbf16, #tpu.memory_space<vmem>>, vector<32x48xbf16>
    %cst_202 = arith.constant dense<0.000000e+00> : vector<64x48xf32>
    %244 = tpu.matmul %242, %243, %cst_202 {dimension_numbers = #tpu.dot_dimension_numbers<[1], [0], [0], [1], [0, 0, 1, 1], [], []>} : vector<64x32xbf16>, vector<32x48xbf16>, vector<64x48xf32> -> vector<64x48xf32>
    %c0_203 = arith.constant 0 : index
    %c0_204 = arith.constant 0 : index
    %245 = vector.load %arg16[%c0_203, %c0_204] : memref<1x48xf32, #tpu.memory_space<vmem>>, vector<1x48xf32>
    %246 = vector.broadcast %245 : vector<1x48xf32> to vector<64x48xf32>
    %247 = arith.addf %244, %246 : vector<64x48xf32>
    %248 = math.tanh %247 : vector<64x48xf32>
    %c0_205 = arith.constant 0 : index
    %c0_206 = arith.constant 0 : index
    %c0_207 = arith.constant 0 : index
    %249 = vector.load %arg21[%c0_205, %c0_206, %c0_207] : memref<1x64x48xf32, #tpu.memory_space<vmem>>, vector<1x64x48xf32>
    %250 = vector.shape_cast %249 : vector<1x64x48xf32> to vector<64x48xf32>
    %251 = vector.shape_cast %248 : vector<64x48xf32> to vector<1x64x48xf32>
    tpu.vector_store %arg21[%c0_205, %c0_206, %c0_207], %251 {strides = array<i32>} : memref<1x64x48xf32, #tpu.memory_space<vmem>>, vector<1x64x48xf32>,
    return
  }
  func.func @transform_0(%arg0: i32) -> (i32, i32, i32) {
    %c0_i32 = arith.constant 0 : i32
    %c0_i32_0 = arith.constant 0 : i32
    %c0_i32_1 = arith.constant 0 : i32
    return %arg0, %c0_i32, %c0_i32_0 : i32, i32, i32
  }
  func.func @transform_1(%arg0: i32) -> (i32, i32, i32) {
    %c0_i32 = arith.constant 0 : i32
    %c0_i32_0 = arith.constant 0 : i32
    %c0_i32_1 = arith.constant 0 : i32
    %c0_i32_2 = arith.constant 0 : i32
    return %c0_i32, %c0_i32_0, %c0_i32_1 : i32, i32, i32
  }
  func.func @transform_2(%arg0: i32) -> (i32, i32) {
    %c0_i32 = arith.constant 0 : i32
    %c0_i32_0 = arith.constant 0 : i32
    %c0_i32_1 = arith.constant 0 : i32
    return %c0_i32, %c0_i32_0 : i32, i32
  }
  func.func @transform_3(%arg0: i32) -> (i32, i32, i32) {
    %c0_i32 = arith.constant 0 : i32
    %c0_i32_0 = arith.constant 0 : i32
    %c0_i32_1 = arith.constant 0 : i32
    %c0_i32_2 = arith.constant 0 : i32
    return %c0_i32, %c0_i32_0, %c0_i32_1 : i32, i32, i32
  }
  func.func @transform_4(%arg0: i32) -> (i32, i32, i32) {
    %c0_i32 = arith.constant 0 : i32
    %c0_i32_0 = arith.constant 0 : i32
    %c0_i32_1 = arith.constant 0 : i32
    %c0_i32_2 = arith.constant 0 : i32
    return %c0_i32, %c0_i32_0, %c0_i32_1 : i32, i32, i32
  }
  func.func @transform_5(%arg0: i32) -> (i32, i32) {
    %c0_i32 = arith.constant 0 : i32
    %c0_i32_0 = arith.constant 0 : i32
    %c0_i32_1 = arith.constant 0 : i32
    return %c0_i32, %c0_i32_0 : i32, i32
  }
  func.func @transform_6(%arg0: i32) -> (i32, i32, i32) {
    %c0_i32 = arith.constant 0 : i32
    %c0_i32_0 = arith.constant 0 : i32
    %c0_i32_1 = arith.constant 0 : i32
    %c0_i32_2 = arith.constant 0 : i32
    return %c0_i32, %c0_i32_0, %c0_i32_1 : i32, i32, i32
  }
  func.func @transform_7(%arg0: i32) -> (i32, i32, i32) {
    %c0_i32 = arith.constant 0 : i32
    %c0_i32_0 = arith.constant 0 : i32
    %c0_i32_1 = arith.constant 0 : i32
    %c0_i32_2 = arith.constant 0 : i32
    return %c0_i32, %c0_i32_0, %c0_i32_1 : i32, i32, i32
  }
  func.func @transform_8(%arg0: i32) -> (i32, i32) {
    %c0_i32 = arith.constant 0 : i32
    %c0_i32_0 = arith.constant 0 : i32
    %c0_i32_1 = arith.constant 0 : i32
    return %c0_i32, %c0_i32_0 : i32, i32
  }
  func.func @transform_9(%arg0: i32) -> (i32, i32, i32) {
    %c0_i32 = arith.constant 0 : i32
    %c0_i32_0 = arith.constant 0 : i32
    %c0_i32_1 = arith.constant 0 : i32
    %c0_i32_2 = arith.constant 0 : i32
    return %c0_i32, %c0_i32_0, %c0_i32_1 : i32, i32, i32
  }
  func.func @transform_10(%arg0: i32) -> (i32, i32) {
    %c0_i32 = arith.constant 0 : i32
    %c0_i32_0 = arith.constant 0 : i32
    %c0_i32_1 = arith.constant 0 : i32
    return %c0_i32, %c0_i32_0 : i32, i32
  }
  func.func @transform_11(%arg0: i32) -> (i32, i32) {
    %c0_i32 = arith.constant 0 : i32
    %c0_i32_0 = arith.constant 0 : i32
    %c0_i32_1 = arith.constant 0 : i32
    return %c0_i32, %c0_i32_0 : i32, i32
  }
  func.func @transform_12(%arg0: i32) -> (i32, i32) {
    %c0_i32 = arith.constant 0 : i32
    %c0_i32_0 = arith.constant 0 : i32
    %c0_i32_1 = arith.constant 0 : i32
    return %c0_i32, %c0_i32_0 : i32, i32
  }
  func.func @transform_13(%arg0: i32) -> (i32, i32) {
    %c0_i32 = arith.constant 0 : i32
    %c0_i32_0 = arith.constant 0 : i32
    %c0_i32_1 = arith.constant 0 : i32
    return %c0_i32, %c0_i32_0 : i32, i32
  }
  func.func @transform_14(%arg0: i32) -> (i32, i32) {
    %c0_i32 = arith.constant 0 : i32
    %c0_i32_0 = arith.constant 0 : i32
    %c0_i32_1 = arith.constant 0 : i32
    return %c0_i32, %c0_i32_0 : i32, i32
  }
  func.func @transform_15(%arg0: i32) -> (i32, i32) {
    %c0_i32 = arith.constant 0 : i32
    %c0_i32_0 = arith.constant 0 : i32
    %c0_i32_1 = arith.constant 0 : i32
    return %c0_i32, %c0_i32_0 : i32, i32
  }
  func.func @transform_16(%arg0: i32) -> (i32, i32) {
    %c0_i32 = arith.constant 0 : i32
    %c0_i32_0 = arith.constant 0 : i32
    %c0_i32_1 = arith.constant 0 : i32
    return %c0_i32, %c0_i32_0 : i32, i32
  }
  func.func @transform_17(%arg0: i32) -> (i32, i32) {
    %c0_i32 = arith.constant 0 : i32
    %c0_i32_0 = arith.constant 0 : i32
    %c0_i32_1 = arith.constant 0 : i32
    return %c0_i32, %c0_i32_0 : i32, i32
  }
  func.func @transform_18(%arg0: i32) -> (i32, i32) {
    %c0_i32 = arith.constant 0 : i32
    %c0_i32_0 = arith.constant 0 : i32
    %c0_i32_1 = arith.constant 0 : i32
    return %c0_i32, %c0_i32_0 : i32, i32
  }
  func.func @transform_19(%arg0: i32) -> (i32, i32) {
    %c0_i32 = arith.constant 0 : i32
    %c0_i32_0 = arith.constant 0 : i32
    %c0_i32_1 = arith.constant 0 : i32
    return %c0_i32, %c0_i32_0 : i32, i32
  }
  func.func @transform_20(%arg0: i32) -> (i32, i32, i32) {
    %c0_i32 = arith.constant 0 : i32
    %c0_i32_0 = arith.constant 0 : i32
    %c0_i32_1 = arith.constant 0 : i32
    return %arg0, %c0_i32, %c0_i32_0 : i32, i32, i32
  }
  func.func @transform_21(%arg0: i32) -> (i32, i32, i32) {
    %c0_i32 = arith.constant 0 : i32
    %c0_i32_0 = arith.constant 0 : i32
    %c0_i32_1 = arith.constant 0 : i32
    return %arg0, %c0_i32, %c0_i32_0 : i32, i32, i32
  }
}

</mosaic_0001>

<llo_original>
// kernel: cerrado_forward.1
$region0: #{cerrado_forward.1}
  #allocation0 [shape = 'u32[]', space=smem, size = 0x4, offset = 0x4, fixed_abs, tag = 'smem constant byte address 0x4 - core index']
  #allocation1 [shape = 'u32[144,128]{1,0:T(1,128)}', space=vmem, size = 0x12000, scoped, tag = 'internal scratch']
  #allocation2 [shape = 'bf16[296,36]{1,0:T(8,128)(2,1)}', space=vmem, size = 0x12800, scoped, tag = 'scratch operand']
  #allocation3 [shape = 'bf16[88,96]{1,0:T(8,128)(2,1)}', space=vmem, size = 0x5800, scoped, tag = 'scratch operand']
  #allocation4 [shape = 'bf16[40,192]{1,0:T(8,128)(2,1)}', space=vmem, size = 0x5000, scoped, tag = 'scratch operand']
  #allocation5 [shape = 'f32[256,32]{1,0:T(8,128)}', space=vmem, size = 0x20000, scoped, tag = 'scratch operand']
  #allocation6 [shape = 'f32[64,64]{1,0:T(8,128)}', space=vmem, size = 0x8000, scoped, tag = 'scratch operand']
  #allocation7 [shape = 'f32[16,128]{1,0:T(8,128)}', space=vmem, size = 0x2000, scoped, tag = 'scratch operand']
  #allocation8 [shape = 'f32[16,64]{1,0:T(8,128)}', space=vmem, size = 0x2000, scoped, tag = 'scratch operand']
  #allocation9 [shape = 'f32[64,32]{1,0:T(8,128)}', space=vmem, size = 0x8000, scoped, tag = 'scratch operand']
  %s0 = inlined_call_operand.vmem [shape: f32[2,256,12], index: 0, kind: input, shape index: {}]
  %s1 = inlined_call_operand.vmem [shape: bf16[3,36,32], index: 1, kind: input, shape index: {}]
  %s2 = inlined_call_operand.vmem [shape: f32[1,32], index: 2, kind: input, shape index: {}]
  %s3 = inlined_call_operand.vmem [shape: f32[2,256,1], index: 3, kind: input, shape index: {}]
  %s4 = inlined_call_operand.vmem [shape: bf16[3,96,64], index: 4, kind: input, shape index: {}]
  %s5 = inlined_call_operand.vmem [shape: f32[1,64], index: 5, kind: input, shape index: {}]
  %s6 = inlined_call_operand.vmem [shape: f32[2,64,1], index: 6, kind: input, shape index: {}]
  %s7 = inlined_call_operand.vmem [shape: bf16[3,192,128], index: 7, kind: input, shape index: {}]
  %s8 = inlined_call_operand.vmem [shape: f32[1,128], index: 8, kind: input, shape index: {}]
  %s9 = inlined_call_operand.vmem [shape: f32[2,16,1], index: 9, kind: input, shape index: {}]
  %s10 = inlined_call_operand.vmem [shape: bf16[128,256], index: 10, kind: input, shape index: {}]
  %s11 = inlined_call_operand.vmem [shape: f32[1,256], index: 11, kind: input, shape index: {}]
  %s12 = inlined_call_operand.vmem [shape: bf16[64,128], index: 12, kind: input, shape index: {}]
  %s13 = inlined_call_operand.vmem [shape: f32[1,128], index: 13, kind: input, shape index: {}]
  %s14 = inlined_call_operand.vmem [shape: bf16[32,48], index: 14, kind: input, shape index: {}]
  %s15 = inlined_call_operand.vmem [shape: f32[1,48], index: 15, kind: input, shape index: {}]
  %s16 = inlined_call_operand.vmem [shape: bf16[128,64], index: 16, kind: input, shape index: {}]
  %s17 = inlined_call_operand.vmem [shape: f32[1,64], index: 17, kind: input, shape index: {}]
  %s18 = inlined_call_operand.vmem [shape: bf16[64,32], index: 18, kind: input, shape index: {}]
  %s19 = inlined_call_operand.vmem [shape: f32[1,32], index: 19, kind: input, shape index: {}]
  %s20 = inlined_call_operand.vmem [shape: f32[2,64,48], index: 20, kind: output, shape index: {0}]
  %s21 = inlined_call_operand.hbm [shape: f32[2,1,32], index: 21, kind: output, shape index: {1}]
  %22 = xla_tuple %s20, %s21
  %s23 = sld [smem:[#allocation0]]
  $region121: #{cerrado_forward.1} parent=0
    _
  %s25 = ssub.s32 1, %s23
  %s26 = scalar_select 0, %s25, %s23
  $region1: #{cerrado_forward.1} parent=0
    #allocation10 [shape = 'u8[1024]{0}', space=vmem, size = 0x400, scoped, tag = 'output window, operand 1']
    #allocation11 [shape = 's32[2]{0}', space=sflag, size = 0x8, scoped, tag = 'scoped memory for cerrado_forward.1']
    %27 = vsyncpa [#allocation11], 0
    %s28 = scalar_lea.sflag [#allocation11], 1
    %29 = vsyncpa %s28, 0
    loop: start=0, step=1, limit=4
    $region2: #{cerrado_forward.1} parent=1 // loop_pre_header
      _
    $region3: #{cerrado_forward.1} parent=1 // loop_header
      %s31 = sphi 0, %s35
      %p32 = scmp.ge.s32.totalorder %s31, 4
      %s41 = sphi 0, %s43
      %s44 = sphi 0, %s41
      %s45 = sphi 0, %s44
      %s61 = sphi 0, %s45
      %s65 = sphi 0, %s65
      %s67 = sphi 0, %s65
      %s68 = sphi 0, %s67
      %s82 = sphi 0, %s68
      %s86 = sphi 0, %s86
      %s88 = sphi 0, %s86
      %s89 = sphi 0, %s88
      %s103 = sphi 0, %s89
      %s107 = sphi 0, %s107
      %s109 = sphi 0, %s107
      %s110 = sphi 0, %s109
      %s124 = sphi 0, %s110
      %s128 = sphi 0, %s128
      %s130 = sphi 0, %s128
      %s131 = sphi 0, %s130
      %s145 = sphi 0, %s131
      %s149 = sphi 0, %s149
      %s151 = sphi 0, %s149
      %s152 = sphi 0, %s151
      %s166 = sphi 0, %s152
      %s170 = sphi 0, %s170
      %s172 = sphi 0, %s170
      %s173 = sphi 0, %s172
      %s187 = sphi 0, %s173
      %s191 = sphi 0, %s191
      %s193 = sphi 0, %s191
      %s194 = sphi 0, %s193
      %s208 = sphi 0, %s194
      %s212 = sphi 0, %s212
      %s214 = sphi 0, %s212
      %s215 = sphi 0, %s214
      %s229 = sphi 0, %s215
      %s233 = sphi 0, %s233
      %s235 = sphi 0, %s233
      %s236 = sphi 0, %s235
      %s250 = sphi 0, %s236
      %s254 = sphi 0, %s254
      %s256 = sphi 0, %s254
      %s257 = sphi 0, %s256
      %s271 = sphi 0, %s257
      %s275 = sphi 0, %s275
      %s277 = sphi 0, %s275
      %s278 = sphi 0, %s277
      %s292 = sphi 0, %s278
      %s296 = sphi 0, %s296
      %s298 = sphi 0, %s296
      %s299 = sphi 0, %s298
      %s313 = sphi 0, %s299
      %s317 = sphi 0, %s317
      %s319 = sphi 0, %s317
      %s320 = sphi 0, %s319
      %s334 = sphi 0, %s320
      %s338 = sphi 0, %s338
      %s340 = sphi 0, %s338
      %s341 = sphi 0, %s340
      %s355 = sphi 0, %s341
      %s359 = sphi 0, %s359
      %s361 = sphi 0, %s359
      %s362 = sphi 0, %s361
      %s376 = sphi 0, %s362
      %s380 = sphi 0, %s380
      %s382 = sphi 0, %s380
      %s383 = sphi 0, %s382
      %s397 = sphi 0, %s383
      %s401 = sphi 0, %s401
      %s403 = sphi 0, %s401
      %s404 = sphi 0, %s403
      %s418 = sphi 0, %s404
      %s422 = sphi 0, %s422
      %s424 = sphi 0, %s422
      %s425 = sphi 0, %s424
      %s439 = sphi 0, %s425
      %s443 = sphi 0, %s443
      %s445 = sphi 0, %s443
      %s446 = sphi 0, %s445
      %s460 = sphi 0, %s446
      %s466 = sphi 0, %s468
      %s469 = sphi 0, %s466
      %s470 = sphi 0, %s469
      %s486 = sphi 0, %s470
      %s492 = sphi 0, %s494
      %s495 = sphi 0, %s492
      %s496 = sphi 0, %s495
      %s512 = sphi 0, %s496
    $region4: #{cerrado_forward.1} parent=1 // loop_header_branch
      %34 = sbr.rel (%p32) target = $region8
    $region5: #{cerrado_forward.1} parent=1 // loop_body
      %s36 = ssub.s32 %s31, 1
      %s37 = ssub.s32 %s31, 2
      %s38 = sadd.s32 %s31, 1
      %s39 = ssub.s32 %s31, %s38
      %p40 = scmp.eq.s32.totalorder %s39, 0
      %s42 = sadd.s32 %s41, 1
      %s43 = scalar_select %p40, %s41, %s42
      %p46 = pneg %p40
      %p47 = scmp.eq.s32.totalorder %s31, 1
      %p48 = por %p46, %p47
      %p49 = scmp.ne.s32.totalorder %s41, %s44
      %p50 = scmp.eq.s32.totalorder %s31, 0
      %p51 = por %p49, %p50
      %p52 = scmp.ne.s32.totalorder %s41, %s44
      %p53 = scmp.eq.s32.totalorder %s36, 1
      %p54 = por %p52, %p53
      %p55 = scmp.ne.s32.totalorder %s44, %s45
      %p56 = scmp.eq.s32.totalorder %s36, 0
      %p57 = por %p55, %p56
      %p58 = scmp.ne.s32.totalorder %s44, %s45
      %p59 = scmp.eq.s32.totalorder %s37, 1
      %p60 = por %p58, %p59
      %p62 = scmp.ne.s32.totalorder %s45, %s61
      %p63 = scmp.eq.s32.totalorder %s37, 0
      %p64 = por %p62, %p63
      %s66 = sadd.s32 %s65, 1
      %p69 = scmp.eq.s32.totalorder %s31, 1
      %p70 = scmp.ne.s32.totalorder %s65, %s67
      %p71 = scmp.eq.s32.totalorder %s31, 0
      %p72 = por %p70, %p71
      %p73 = scmp.ne.s32.totalorder %s65, %s67
      %p74 = scmp.eq.s32.totalorder %s36, 1
      %p75 = por %p73, %p74
      %p76 = scmp.ne.s32.totalorder %s67, %s68
      %p77 = scmp.eq.s32.totalorder %s36, 0
      %p78 = por %p76, %p77
      %p79 = scmp.ne.s32.totalorder %s67, %s68
      %p80 = scmp.eq.s32.totalorder %s37, 1
      %p81 = por %p79, %p80
      %p83 = scmp.ne.s32.totalorder %s68, %s82
      %p84 = scmp.eq.s32.totalorder %s37, 0
      %p85 = por %p83, %p84
      %s87 = sadd.s32 %s86, 1
      %p90 = scmp.eq.s32.totalorder %s31, 1
      %p91 = scmp.ne.s32.totalorder %s86, %s88
      %p92 = scmp.eq.s32.totalorder %s31, 0
      %p93 = por %p91, %p92
      %p94 = scmp.ne.s32.totalorder %s86, %s88
      %p95 = scmp.eq.s32.totalorder %s36, 1
      %p96 = por %p94, %p95
      %p97 = scmp.ne.s32.totalorder %s88, %s89
      %p98 = scmp.eq.s32.totalorder %s36, 0
      %p99 = por %p97, %p98
      %p100 = scmp.ne.s32.totalorder %s88, %s89
      %p101 = scmp.eq.s32.totalorder %s37, 1
      %p102 = por %p100, %p101
      %p104 = scmp.ne.s32.totalorder %s89, %s103
      %p105 = scmp.eq.s32.totalorder %s37, 0
      %p106 = por %p104, %p105
      %s108 = sadd.s32 %s107, 1
      %p111 = scmp.eq.s32.totalorder %s31, 1
      %p112 = scmp.ne.s32.totalorder %s107, %s109
      %p113 = scmp.eq.s32.totalorder %s31, 0
      %p114 = por %p112, %p113
      %p115 = scmp.ne.s32.totalorder %s107, %s109
      %p116 = scmp.eq.s32.totalorder %s36, 1
      %p117 = por %p115, %p116
      %p118 = scmp.ne.s32.totalorder %s109, %s110
      %p119 = scmp.eq.s32.totalorder %s36, 0
      %p120 = por %p118, %p119
      %p121 = scmp.ne.s32.totalorder %s109, %s110
      %p122 = scmp.eq.s32.totalorder %s37, 1
      %p123 = por %p121, %p122
      %p125 = scmp.ne.s32.totalorder %s110, %s124
      %p126 = scmp.eq.s32.totalorder %s37, 0
      %p127 = por %p125, %p126
      %s129 = sadd.s32 %s128, 1
      %p132 = scmp.eq.s32.totalorder %s31, 1
      %p133 = scmp.ne.s32.totalorder %s128, %s130
      %p134 = scmp.eq.s32.totalorder %s31, 0
      %p135 = por %p133, %p134
      %p136 = scmp.ne.s32.totalorder %s128, %s130
      %p137 = scmp.eq.s32.totalorder %s36, 1
      %p138 = por %p136, %p137
      %p139 = scmp.ne.s32.totalorder %s130, %s131
      %p140 = scmp.eq.s32.totalorder %s36, 0
      %p141 = por %p139, %p140
      %p142 = scmp.ne.s32.totalorder %s130, %s131
      %p143 = scmp.eq.s32.totalorder %s37, 1
      %p144 = por %p142, %p143
      %p146 = scmp.ne.s32.totalorder %s131, %s145
      %p147 = scmp.eq.s32.totalorder %s37, 0
      %p148 = por %p146, %p147
      %s150 = sadd.s32 %s149, 1
      %p153 = scmp.eq.s32.totalorder %s31, 1
      %p154 = scmp.ne.s32.totalorder %s149, %s151
      %p155 = scmp.eq.s32.totalorder %s31, 0
      %p156 = por %p154, %p155
      %p157 = scmp.ne.s32.totalorder %s149, %s151
      %p158 = scmp.eq.s32.totalorder %s36, 1
      %p159 = por %p157, %p158
      %p160 = scmp.ne.s32.totalorder %s151, %s152
      %p161 = scmp.eq.s32.totalorder %s36, 0
      %p162 = por %p160, %p161
      %p163 = scmp.ne.s32.totalorder %s151, %s152
      %p164 = scmp.eq.s32.totalorder %s37, 1
      %p165 = por %p163, %p164
      %p167 = scmp.ne.s32.totalorder %s152, %s166
      %p168 = scmp.eq.s32.totalorder %s37, 0
      %p169 = por %p167, %p168
      %s171 = sadd.s32 %s170, 1
      %p174 = scmp.eq.s32.totalorder %s31, 1
      %p175 = scmp.ne.s32.totalorder %s170, %s172
      %p176 = scmp.eq.s32.totalorder %s31, 0
      %p177 = por %p175, %p176
      %p178 = scmp.ne.s32.totalorder %s170, %s172
      %p179 = scmp.eq.s32.totalorder %s36, 1
      %p180 = por %p178, %p179
      %p181 = scmp.ne.s32.totalorder %s172, %s173
      %p182 = scmp.eq.s32.totalorder %s36, 0
      %p183 = por %p181, %p182
      %p184 = scmp.ne.s32.totalorder %s172, %s173
      %p185 = scmp.eq.s32.totalorder %s37, 1
      %p186 = por %p184, %p185
      %p188 = scmp.ne.s32.totalorder %s173, %s187
      %p189 = scmp.eq.s32.totalorder %s37, 0
      %p190 = por %p188, %p189
      %s192 = sadd.s32 %s191, 1
      %p195 = scmp.eq.s32.totalorder %s31, 1
      %p196 = scmp.ne.s32.totalorder %s191, %s193
      %p197 = scmp.eq.s32.totalorder %s31, 0
      %p198 = por %p196, %p197
      %p199 = scmp.ne.s32.totalorder %s191, %s193
      %p200 = scmp.eq.s32.totalorder %s36, 1
      %p201 = por %p199, %p200
      %p202 = scmp.ne.s32.totalorder %s193, %s194
      %p203 = scmp.eq.s32.totalorder %s36, 0
      %p204 = por %p202, %p203
      %p205 = scmp.ne.s32.totalorder %s193, %s194
      %p206 = scmp.eq.s32.totalorder %s37, 1
      %p207 = por %p205, %p206
      %p209 = scmp.ne.s32.totalorder %s194, %s208
      %p210 = scmp.eq.s32.totalorder %s37, 0
      %p211 = por %p209, %p210
      %s213 = sadd.s32 %s212, 1
      %p216 = scmp.eq.s32.totalorder %s31, 1
      %p217 = scmp.ne.s32.totalorder %s212, %s214
      %p218 = scmp.eq.s32.totalorder %s31, 0
      %p219 = por %p217, %p218
      %p220 = scmp.ne.s32.totalorder %s212, %s214
      %p221 = scmp.eq.s32.totalorder %s36, 1
      %p222 = por %p220, %p221
      %p223 = scmp.ne.s32.totalorder %s214, %s215
      %p224 = scmp.eq.s32.totalorder %s36, 0
      %p225 = por %p223, %p224
      %p226 = scmp.ne.s32.totalorder %s214, %s215
      %p227 = scmp.eq.s32.totalorder %s37, 1
      %p228 = por %p226, %p227
      %p230 = scmp.ne.s32.totalorder %s215, %s229
      %p231 = scmp.eq.s32.totalorder %s37, 0
      %p232 = por %p230, %p231
      %s234 = sadd.s32 %s233, 1
      %p237 = scmp.eq.s32.totalorder %s31, 1
      %p238 = scmp.ne.s32.totalorder %s233, %s235
      %p239 = scmp.eq.s32.totalorder %s31, 0
      %p240 = por %p238, %p239
      %p241 = scmp.ne.s32.totalorder %s233, %s235
      %p242 = scmp.eq.s32.totalorder %s36, 1
      %p243 = por %p241, %p242
      %p244 = scmp.ne.s32.totalorder %s235, %s236
      %p245 = scmp.eq.s32.totalorder %s36, 0
      %p246 = por %p244, %p245
      %p247 = scmp.ne.s32.totalorder %s235, %s236
      %p248 = scmp.eq.s32.totalorder %s37, 1
      %p249 = por %p247, %p248
      %p251 = scmp.ne.s32.totalorder %s236, %s250
      %p252 = scmp.eq.s32.totalorder %s37, 0
      %p253 = por %p251, %p252
      %s255 = sadd.s32 %s254, 1
      %p258 = scmp.eq.s32.totalorder %s31, 1
      %p259 = scmp.ne.s32.totalorder %s254, %s256
      %p260 = scmp.eq.s32.totalorder %s31, 0
      %p261 = por %p259, %p260
      %p262 = scmp.ne.s32.totalorder %s254, %s256
      %p263 = scmp.eq.s32.totalorder %s36, 1
      %p264 = por %p262, %p263
      %p265 = scmp.ne.s32.totalorder %s256, %s257
      %p266 = scmp.eq.s32.totalorder %s36, 0
      %p267 = por %p265, %p266
      %p268 = scmp.ne.s32.totalorder %s256, %s257
      %p269 = scmp.eq.s32.totalorder %s37, 1
      %p270 = por %p268, %p269
      %p272 = scmp.ne.s32.totalorder %s257, %s271
      %p273 = scmp.eq.s32.totalorder %s37, 0
      %p274 = por %p272, %p273
      %s276 = sadd.s32 %s275, 1
      %p279 = scmp.eq.s32.totalorder %s31, 1
      %p280 = scmp.ne.s32.totalorder %s275, %s277
      %p281 = scmp.eq.s32.totalorder %s31, 0
      %p282 = por %p280, %p281
      %p283 = scmp.ne.s32.totalorder %s275, %s277
      %p284 = scmp.eq.s32.totalorder %s36, 1
      %p285 = por %p283, %p284
      %p286 = scmp.ne.s32.totalorder %s277, %s278
      %p287 = scmp.eq.s32.totalorder %s36, 0
      %p288 = por %p286, %p287
      %p289 = scmp.ne.s32.totalorder %s277, %s278
      %p290 = scmp.eq.s32.totalorder %s37, 1
      %p291 = por %p289, %p290
      %p293 = scmp.ne.s32.totalorder %s278, %s292
      %p294 = scmp.eq.s32.totalorder %s37, 0
      %p295 = por %p293, %p294
      %s297 = sadd.s32 %s296, 1
      %p300 = scmp.eq.s32.totalorder %s31, 1
      %p301 = scmp.ne.s32.totalorder %s296, %s298
      %p302 = scmp.eq.s32.totalorder %s31, 0
      %p303 = por %p301, %p302
      %p304 = scmp.ne.s32.totalorder %s296, %s298
      %p305 = scmp.eq.s32.totalorder %s36, 1
      %p306 = por %p304, %p305
      %p307 = scmp.ne.s32.totalorder %s298, %s299
      %p308 = scmp.eq.s32.totalorder %s36, 0
      %p309 = por %p307, %p308
      %p310 = scmp.ne.s32.totalorder %s298, %s299
      %p311 = scmp.eq.s32.totalorder %s37, 1
      %p312 = por %p310, %p311
      %p314 = scmp.ne.s32.totalorder %s299, %s313
      %p315 = scmp.eq.s32.totalorder %s37, 0
      %p316 = por %p314, %p315
      %s318 = sadd.s32 %s317, 1
      %p321 = scmp.eq.s32.totalorder %s31, 1
      %p322 = scmp.ne.s32.totalorder %s317, %s319
      %p323 = scmp.eq.s32.totalorder %s31, 0
      %p324 = por %p322, %p323
      %p325 = scmp.ne.s32.totalorder %s317, %s319
      %p326 = scmp.eq.s32.totalorder %s36, 1
      %p327 = por %p325, %p326
      %p328 = scmp.ne.s32.totalorder %s319, %s320
      %p329 = scmp.eq.s32.totalorder %s36, 0
      %p330 = por %p328, %p329
      %p331 = scmp.ne.s32.totalorder %s319, %s320
      %p332 = scmp.eq.s32.totalorder %s37, 1
      %p333 = por %p331, %p332
      %p335 = scmp.ne.s32.totalorder %s320, %s334
      %p336 = scmp.eq.s32.totalorder %s37, 0
      %p337 = por %p335, %p336
      %s339 = sadd.s32 %s338, 1
      %p342 = scmp.eq.s32.totalorder %s31, 1
      %p343 = scmp.ne.s32.totalorder %s338, %s340
      %p344 = scmp.eq.s32.totalorder %s31, 0
      %p345 = por %p343, %p344
      %p346 = scmp.ne.s32.totalorder %s338, %s340
      %p347 = scmp.eq.s32.totalorder %s36, 1
      %p348 = por %p346, %p347
      %p349 = scmp.ne.s32.totalorder %s340, %s341
      %p350 = scmp.eq.s32.totalorder %s36, 0
      %p351 = por %p349, %p350
      %p352 = scmp.ne.s32.totalorder %s340, %s341
      %p353 = scmp.eq.s32.totalorder %s37, 1
      %p354 = por %p352, %p353
      %p356 = scmp.ne.s32.totalorder %s341, %s355
      %p357 = scmp.eq.s32.totalorder %s37, 0
      %p358 = por %p356, %p357
      %s360 = sadd.s32 %s359, 1
      %p363 = scmp.eq.s32.totalorder %s31, 1
      %p364 = scmp.ne.s32.totalorder %s359, %s361
      %p365 = scmp.eq.s32.totalorder %s31, 0
      %p366 = por %p364, %p365
      %p367 = scmp.ne.s32.totalorder %s359, %s361
      %p368 = scmp.eq.s32.totalorder %s36, 1
      %p369 = por %p367, %p368
      %p370 = scmp.ne.s32.totalorder %s361, %s362
      %p371 = scmp.eq.s32.totalorder %s36, 0
      %p372 = por %p370, %p371
      %p373 = scmp.ne.s32.totalorder %s361, %s362
      %p374 = scmp.eq.s32.totalorder %s37, 1
      %p375 = por %p373, %p374
      %p377 = scmp.ne.s32.totalorder %s362, %s376
      %p378 = scmp.eq.s32.totalorder %s37, 0
      %p379 = por %p377, %p378
      %s381 = sadd.s32 %s380, 1
      %p384 = scmp.eq.s32.totalorder %s31, 1
      %p385 = scmp.ne.s32.totalorder %s380, %s382
      %p386 = scmp.eq.s32.totalorder %s31, 0
      %p387 = por %p385, %p386
      %p388 = scmp.ne.s32.totalorder %s380, %s382
      %p389 = scmp.eq.s32.totalorder %s36, 1
      %p390 = por %p388, %p389
      %p391 = scmp.ne.s32.totalorder %s382, %s383
      %p392 = scmp.eq.s32.totalorder %s36, 0
      %p393 = por %p391, %p392
      %p394 = scmp.ne.s32.totalorder %s382, %s383
      %p395 = scmp.eq.s32.totalorder %s37, 1
      %p396 = por %p394, %p395
      %p398 = scmp.ne.s32.totalorder %s383, %s397
      %p399 = scmp.eq.s32.totalorder %s37, 0
      %p400 = por %p398, %p399
      %s402 = sadd.s32 %s401, 1
      %p405 = scmp.eq.s32.totalorder %s31, 1
      %p406 = scmp.ne.s32.totalorder %s401, %s403
      %p407 = scmp.eq.s32.totalorder %s31, 0
      %p408 = por %p406, %p407
      %p409 = scmp.ne.s32.totalorder %s401, %s403
      %p410 = scmp.eq.s32.totalorder %s36, 1
      %p411 = por %p409, %p410
      %p412 = scmp.ne.s32.totalorder %s403, %s404
      %p413 = scmp.eq.s32.totalorder %s36, 0
      %p414 = por %p412, %p413
      %p415 = scmp.ne.s32.totalorder %s403, %s404
      %p416 = scmp.eq.s32.totalorder %s37, 1
      %p417 = por %p415, %p416
      %p419 = scmp.ne.s32.totalorder %s404, %s418
      %p420 = scmp.eq.s32.totalorder %s37, 0
      %p421 = por %p419, %p420
      %s423 = sadd.s32 %s422, 1
      %p426 = scmp.eq.s32.totalorder %s31, 1
      %p427 = scmp.ne.s32.totalorder %s422, %s424
      %p428 = scmp.eq.s32.totalorder %s31, 0
      %p429 = por %p427, %p428
      %p430 = scmp.ne.s32.totalorder %s422, %s424
      %p431 = scmp.eq.s32.totalorder %s36, 1
      %p432 = por %p430, %p431
      %p433 = scmp.ne.s32.totalorder %s424, %s425
      %p434 = scmp.eq.s32.totalorder %s36, 0
      %p435 = por %p433, %p434
      %p436 = scmp.ne.s32.totalorder %s424, %s425
      %p437 = scmp.eq.s32.totalorder %s37, 1
      %p438 = por %p436, %p437
      %p440 = scmp.ne.s32.totalorder %s425, %s439
      %p441 = scmp.eq.s32.totalorder %s37, 0
      %p442 = por %p440, %p441
      %s444 = sadd.s32 %s443, 1
      %p447 = scmp.eq.s32.totalorder %s31, 1
      %p448 = scmp.ne.s32.totalorder %s443, %s445
      %p449 = scmp.eq.s32.totalorder %s31, 0
      %p450 = por %p448, %p449
      %p451 = scmp.ne.s32.totalorder %s443, %s445
      %p452 = scmp.eq.s32.totalorder %s36, 1
      %p453 = por %p451, %p452
      %p454 = scmp.ne.s32.totalorder %s445, %s446
      %p455 = scmp.eq.s32.totalorder %s36, 0
      %p456 = por %p454, %p455
      %p457 = scmp.ne.s32.totalorder %s445, %s446
      %p458 = scmp.eq.s32.totalorder %s37, 1
      %p459 = por %p457, %p458
      %p461 = scmp.ne.s32.totalorder %s446, %s460
      %p462 = scmp.eq.s32.totalorder %s37, 0
      %p463 = por %p461, %p462
      %s464 = ssub.s32 %s31, %s38
      %p465 = scmp.eq.s32.totalorder %s464, 0
      %s467 = sadd.s32 %s466, 1
      %s468 = scalar_select %p465, %s466, %s467
      %p471 = pneg %p465
      %p472 = scmp.eq.s32.totalorder %s31, 1
      %p473 = por %p471, %p472
      %p474 = scmp.ne.s32.totalorder %s466, %s469
      %p475 = scmp.eq.s32.totalorder %s31, 0
      %p476 = por %p474, %p475
      %p477 = scmp.ne.s32.totalorder %s466, %s469
      %p478 = scmp.eq.s32.totalorder %s36, 1
      %p479 = por %p477, %p478
      %p480 = scmp.ne.s32.totalorder %s469, %s470
      %p481 = scmp.eq.s32.totalorder %s36, 0
      %p482 = por %p480, %p481
      %p483 = scmp.ne.s32.totalorder %s469, %s470
      %p484 = scmp.eq.s32.totalorder %s37, 1
      %p485 = por %p483, %p484
      %p487 = scmp.ne.s32.totalorder %s470, %s486
      %p488 = scmp.eq.s32.totalorder %s37, 0
      %p489 = por %p487, %p488
      %s490 = ssub.s32 %s31, %s38
      %p491 = scmp.eq.s32.totalorder %s490, 0
      %s493 = sadd.s32 %s492, 1
      %s494 = scalar_select %p491, %s492, %s493
      %p497 = pneg %p491
      %p498 = scmp.eq.s32.totalorder %s31, 1
      %p499 = por %p497, %p498
      %p500 = scmp.ne.s32.totalorder %s492, %s495
      %p501 = scmp.eq.s32.totalorder %s31, 0
      %p502 = por %p500, %p501
      %p503 = scmp.ne.s32.totalorder %s492, %s495
      %p504 = scmp.eq.s32.totalorder %s36, 1
      %p505 = por %p503, %p504
      %p506 = scmp.ne.s32.totalorder %s495, %s496
      %p507 = scmp.eq.s32.totalorder %s36, 0
      %p508 = por %p506, %p507
      %p509 = scmp.ne.s32.totalorder %s495, %s496
      %p510 = scmp.eq.s32.totalorder %s37, 1
      %p511 = por %p509, %p510
      %p513 = scmp.ne.s32.totalorder %s496, %s512
      %p514 = scmp.eq.s32.totalorder %s37, 0
      %p515 = por %p513, %p514
      %p516 = scmp.le.s32.totalorder 1, %s31
      %p517 = scmp.lt.s32.totalorder %s31, 3
      %p518 = pnand %p516, %p517
      %p519 = pneg %p518
      // Predicated region
      $region9: #{cerrado_forward.1} parent=5 // pred_check
        _
      $region10: #{cerrado_forward.1} parent=5 // pred_check_branch
        %521 = sbr.rel (%p518) target = $region12
      $region11: #{cerrado_forward.1} parent=5 // pred_region
        %s522 = ssub.s32 %s31, 1
        // Predicated region
        $region13: #{cerrado_forward.1} parent=11 // pred_check
          %p523 = pneg %p78
        $region14: #{cerrado_forward.1} parent=11 // pred_check_branch
          %525 = sbr.rel (%p523) target = $region16
        $region15: #{cerrado_forward.1} parent=11 // pred_region
          _
        $region16: #{cerrado_forward.1} parent=11 // pred_fallthru
          _
        // Predicated region
        $region17: #{cerrado_forward.1} parent=11 // pred_check
          %p526 = pneg %p99
        $region18: #{cerrado_forward.1} parent=11 // pred_check_branch
          %528 = sbr.rel (%p526) target = $region20
        $region19: #{cerrado_forward.1} parent=11 // pred_region
          _
        $region20: #{cerrado_forward.1} parent=11 // pred_fallthru
          _
        // Predicated region
        $region21: #{cerrado_forward.1} parent=11 // pred_check
          %p529 = pneg %p120
        $region22: #{cerrado_forward.1} parent=11 // pred_check_branch
          %531 = sbr.rel (%p529) target = $region24
        $region23: #{cerrado_forward.1} parent=11 // pred_region
          _
        $region24: #{cerrado_forward.1} parent=11 // pred_fallthru
          _
        // Predicated region
        $region25: #{cerrado_forward.1} parent=11 // pred_check
          %p532 = pneg %p141
        $region26: #{cerrado_forward.1} parent=11 // pred_check_branch
          %534 = sbr.rel (%p532) target = $region28
        $region27: #{cerrado_forward.1} parent=11 // pred_region
          _
        $region28: #{cerrado_forward.1} parent=11 // pred_fallthru
          _
        // Predicated region
        $region29: #{cerrado_forward.1} parent=11 // pred_check
          %p535 = pneg %p162
        $region30: #{cerrado_forward.1} parent=11 // pred_check_branch
          %537 = sbr.rel (%p535) target = $region32
        $region31: #{cerrado_forward.1} parent=11 // pred_region
          _
        $region32: #{cerrado_forward.1} parent=11 // pred_fallthru
          _
        // Predicated region
        $region33: #{cerrado_forward.1} parent=11 // pred_check
          %p538 = pneg %p183
        $region34: #{cerrado_forward.1} parent=11 // pred_check_branch
          %540 = sbr.rel (%p538) target = $region36
        $region35: #{cerrado_forward.1} parent=11 // pred_region
          _
        $region36: #{cerrado_forward.1} parent=11 // pred_fallthru
          _
        // Predicated region
        $region37: #{cerrado_forward.1} parent=11 // pred_check
          %p541 = pneg %p204
        $region38: #{cerrado_forward.1} parent=11 // pred_check_branch
          %543 = sbr.rel (%p541) target = $region40
        $region39: #{cerrado_forward.1} parent=11 // pred_region
          _
        $region40: #{cerrado_forward.1} parent=11 // pred_fallthru
          _
        // Predicated region
        $region41: #{cerrado_forward.1} parent=11 // pred_check
          %p544 = pneg %p225
        $region42: #{cerrado_forward.1} parent=11 // pred_check_branch
          %546 = sbr.rel (%p544) target = $region44
        $region43: #{cerrado_forward.1} parent=11 // pred_region
          _
        $region44: #{cerrado_forward.1} parent=11 // pred_fallthru
          _
        // Predicated region
        $region45: #{cerrado_forward.1} parent=11 // pred_check
          %p547 = pneg %p246
        $region46: #{cerrado_forward.1} parent=11 // pred_check_branch
          %549 = sbr.rel (%p547) target = $region48
        $region47: #{cerrado_forward.1} parent=11 // pred_region
          _
        $region48: #{cerrado_forward.1} parent=11 // pred_fallthru
          _
        // Predicated region
        $region49: #{cerrado_forward.1} parent=11 // pred_check
          %p550 = pneg %p267
        $region50: #{cerrado_forward.1} parent=11 // pred_check_branch
          %552 = sbr.rel (%p550) target = $region52
        $region51: #{cerrado_forward.1} parent=11 // pred_region
          _
        $region52: #{cerrado_forward.1} parent=11 // pred_fallthru
          _
        // Predicated region
        $region53: #{cerrado_forward.1} parent=11 // pred_check
          %p553 = pneg %p288
        $region54: #{cerrado_forward.1} parent=11 // pred_check_branch
          %555 = sbr.rel (%p553) target = $region56
        $region55: #{cerrado_forward.1} parent=11 // pred_region
          _
        $region56: #{cerrado_forward.1} parent=11 // pred_fallthru
          _
        // Predicated region
        $region57: #{cerrado_forward.1} parent=11 // pred_check
          %p556 = pneg %p309
        $region58: #{cerrado_forward.1} parent=11 // pred_check_branch
          %558 = sbr.rel (%p556) target = $region60
        $region59: #{cerrado_forward.1} parent=11 // pred_region
          _
        $region60: #{cerrado_forward.1} parent=11 // pred_fallthru
          _
        // Predicated region
        $region61: #{cerrado_forward.1} parent=11 // pred_check
          %p559 = pneg %p330
        $region62: #{cerrado_forward.1} parent=11 // pred_check_branch
          %561 = sbr.rel (%p559) target = $region64
        $region63: #{cerrado_forward.1} parent=11 // pred_region
          _
        $region64: #{cerrado_forward.1} parent=11 // pred_fallthru
          _
        // Predicated region
        $region65: #{cerrado_forward.1} parent=11 // pred_check
          %p562 = pneg %p351
        $region66: #{cerrado_forward.1} parent=11 // pred_check_branch
          %564 = sbr.rel (%p562) target = $region68
        $region67: #{cerrado_forward.1} parent=11 // pred_region
          _
        $region68: #{cerrado_forward.1} parent=11 // pred_fallthru
          _
        // Predicated region
        $region69: #{cerrado_forward.1} parent=11 // pred_check
          %p565 = pneg %p372
        $region70: #{cerrado_forward.1} parent=11 // pred_check_branch
          %567 = sbr.rel (%p565) target = $region72
        $region71: #{cerrado_forward.1} parent=11 // pred_region
          _
        $region72: #{cerrado_forward.1} parent=11 // pred_fallthru
          _
        // Predicated region
        $region73: #{cerrado_forward.1} parent=11 // pred_check
          %p568 = pneg %p393
        $region74: #{cerrado_forward.1} parent=11 // pred_check_branch
          %570 = sbr.rel (%p568) target = $region76
        $region75: #{cerrado_forward.1} parent=11 // pred_region
          _
        $region76: #{cerrado_forward.1} parent=11 // pred_fallthru
          _
        // Predicated region
        $region77: #{cerrado_forward.1} parent=11 // pred_check
          %p571 = pneg %p414
        $region78: #{cerrado_forward.1} parent=11 // pred_check_branch
          %573 = sbr.rel (%p571) target = $region80
        $region79: #{cerrado_forward.1} parent=11 // pred_region
          _
        $region80: #{cerrado_forward.1} parent=11 // pred_fallthru
          _
        // Predicated region
        $region81: #{cerrado_forward.1} parent=11 // pred_check
          %p574 = pneg %p435
        $region82: #{cerrado_forward.1} parent=11 // pred_check_branch
          %576 = sbr.rel (%p574) target = $region84
        $region83: #{cerrado_forward.1} parent=11 // pred_region
          _
        $region84: #{cerrado_forward.1} parent=11 // pred_fallthru
          _
        // Predicated region
        $region85: #{cerrado_forward.1} parent=11 // pred_check
          %p577 = pneg %p456
        $region86: #{cerrado_forward.1} parent=11 // pred_check_branch
          %579 = sbr.rel (%p577) target = $region88
        $region87: #{cerrado_forward.1} parent=11 // pred_region
          _
        $region88: #{cerrado_forward.1} parent=11 // pred_fallthru
          _
      $region12: #{cerrado_forward.1} parent=5 // pred_fallthru
        _
      %p580 = scmp.lt.s32.totalorder %s31, 2
      // Predicated region
      $region89: #{cerrado_forward.1} parent=5 // pred_check
        %p581 = pneg %p580
      $region90: #{cerrado_forward.1} parent=5 // pred_check_branch
        %583 = sbr.rel (%p581) target = $region92
      $region91: #{cerrado_forward.1} parent=5 // pred_region
        // Predicated region
        $region93: #{cerrado_forward.1} parent=91 // pred_check
          %p584 = pneg %p51
        $region94: #{cerrado_forward.1} parent=91 // pred_check_branch
          %586 = sbr.rel (%p584) target = $region96
        $region95: #{cerrado_forward.1} parent=91 // pred_region
          %p587 = scmp.lt.s32.totalorder %s31, 1
          %s588 = scalar_select %p587, %s31, 1
          %s589 = smul.addr %s588, 32
          %s590 = smul.addr %s589, 8
          %s591 = scalar_lea.vmem %s0, %s590
        $region96: #{cerrado_forward.1} parent=91 // pred_fallthru
          _
      $region92: #{cerrado_forward.1} parent=5 // pred_fallthru
        _
      %p592 = scmp.le.s32.totalorder 1, %s31
      %p593 = scmp.lt.s32.totalorder %s31, 3
      %p594 = pnand %p592, %p593
      %p595 = pneg %p594
      // Predicated region
      $region97: #{cerrado_forward.1} parent=5 // pred_check
        _
      $region98: #{cerrado_forward.1} parent=5 // pred_check_branch
        %597 = sbr.rel (%p594) target = $region100
      $region99: #{cerrado_forward.1} parent=5 // pred_region
        %s598 = ssub.s32 %s31, 1
        %p599 = scmp.lt.s32.totalorder %s36, 1
        %s600 = scalar_select %p599, %s36, 1
        %s601 = smul.addr %s600, 32
        %s602 = smul.addr %s601, 8
        %s603 = scalar_lea.vmem %s0, %s602
        %p604 = pneg %p57
        %p605 = pneg %p54
        %p606 = pneg %p78
        %p607 = pneg %p75
        %p608 = pneg %p99
        %p609 = pneg %p96
        %p610 = pneg %p120
        %p611 = pneg %p117
        %p612 = pneg %p141
        %p613 = pneg %p138
        %p614 = pneg %p162
        %p615 = pneg %p159
        %p616 = pneg %p183
        %p617 = pneg %p180
        %p618 = pneg %p204
        %p619 = pneg %p201
        %p620 = pneg %p225
        %p621 = pneg %p222
        %p622 = pneg %p246
        %p623 = pneg %p243
        %p624 = pneg %p267
        %p625 = pneg %p264
        %p626 = pneg %p288
        %p627 = pneg %p285
        %p628 = pneg %p309
        %p629 = pneg %p306
        %p630 = pneg %p330
        %p631 = pneg %p327
        %p632 = pneg %p351
        %p633 = pneg %p348
        %p634 = pneg %p372
        %p635 = pneg %p369
        %p636 = pneg %p393
        %p637 = pneg %p390
        %p638 = pneg %p414
        %p639 = pneg %p411
        %p640 = pneg %p435
        %p641 = pneg %p432
        %p642 = pneg %p456
        %p643 = pneg %p453
        %p644 = pneg %p482
        %p645 = pneg %p479
        %p646 = scmp.lt.s32.totalorder %s36, 1
        %s647 = scalar_select %p646, %s36, 1
        %s648 = smul.addr %s647, 8
        %s649 = smul.addr %s648, 8
        %s650 = scalar_lea.vmem %s20, %s649
        %p651 = pneg %p508
        %p652 = pneg %p505
        %s653 = sand.u32 %s495, 1
        %s654 = scalar_lea.sflag [#allocation11], %s653
        %s655 = sand.u32 %s495, 1
        %s656 = scalar_lea.vmem [#allocation10], %s655
        %p657 = scmp.lt.s32.totalorder %s36, 1
        %s658 = scalar_select %p657, %s36, 1
        %s659 = smul.addr %s658, 32
        %s660 = smul.addr %s659, 8
        %s661 = scalar_lea.vmem %s0, %s660
        %p662 = scmp.lt.s32.totalorder %s36, 1
        %s663 = scalar_select %p662, %s36, 1
        %s664 = smul.addr %s663, 8
        %s665 = smul.addr %s664, 8
        %s666 = scalar_lea.vmem %s20, %s665
        %v668 = vld [vmem:[%s661] sm:$0xff]
        %v669 = vld [vmem:[%s661 + $0x8] sm:$0xff]
        %v670 = vld [vmem:[%s661 + $0x10] sm:$0xff]
        %v671 = vld [vmem:[%s661 + $0x18] sm:$0xff]
        %v672 = vld [vmem:[%s661 + $0x20] sm:$0xff]
        %v673 = vld [vmem:[%s661 + $0x28] sm:$0xff]
        %v674 = vld [vmem:[%s661 + $0x30] sm:$0xff]
        %v675 = vld [vmem:[%s661 + $0x38] sm:$0xff]
        %v676 = vld [vmem:[%s661 + $0x40] sm:$0xff]
        %v677 = vld [vmem:[%s661 + $0x48] sm:$0xff]
        %v678 = vld [vmem:[%s661 + $0x50] sm:$0xff]
        %v679 = vld [vmem:[%s661 + $0x58] sm:$0xff]
        %v680 = vld [vmem:[%s661 + $0x60] sm:$0xff]
        %v681 = vld [vmem:[%s661 + $0x68] sm:$0xff]
        %v682 = vld [vmem:[%s661 + $0x70] sm:$0xff]
        %v683 = vld [vmem:[%s661 + $0x78] sm:$0xff]
        %v684 = vld [vmem:[%s661 + $0x80] sm:$0xff]
        %v685 = vld [vmem:[%s661 + $0x88] sm:$0xff]
        %v686 = vld [vmem:[%s661 + $0x90] sm:$0xff]
        %v687 = vld [vmem:[%s661 + $0x98] sm:$0xff]
        %v688 = vld [vmem:[%s661 + $0xa0] sm:$0xff]
        %v689 = vld [vmem:[%s661 + $0xa8] sm:$0xff]
        %v690 = vld [vmem:[%s661 + $0xb0] sm:$0xff]
        %v691 = vld [vmem:[%s661 + $0xb8] sm:$0xff]
        %v692 = vld [vmem:[%s661 + $0xc0] sm:$0xff]
        %v693 = vld [vmem:[%s661 + $0xc8] sm:$0xff]
        %v694 = vld [vmem:[%s661 + $0xd0] sm:$0xff]
        %v695 = vld [vmem:[%s661 + $0xd8] sm:$0xff]
        %v696 = vld [vmem:[%s661 + $0xe0] sm:$0xff]
        %v697 = vld [vmem:[%s661 + $0xe8] sm:$0xff]
        %v698 = vld [vmem:[%s661 + $0xf0] sm:$0xff]
        %v699 = vld [vmem:[%s661 + $0xf8] sm:$0xff]
        %vm700 = vcmask 289792
        %701 = vst.msk [vmem:[#allocation2] sm:$0xf] %vm700, 0
        %702 = vst.msk [vmem:[#allocation2 + $0x4] sm:$0xf] %vm700, 0
        %703 = vst.msk [vmem:[#allocation2 + $0x8] sm:$0xf] %vm700, 0
        %704 = vst.msk [vmem:[#allocation2 + $0x84] sm:$0xf] %vm700, 0
        %705 = vst.msk [vmem:[#allocation2 + $0x88] sm:$0xf] %vm700, 0
        %706 = vst.msk [vmem:[#allocation2 + $0x8c] sm:$0xf] %vm700, 0
        %707 = vst.msk [vmem:[#allocation2 + $0x90] sm:$0xf] %vm700, 0
        %v708 = vld [vmem:[%s3] sm:$0xff]
        %v709 = vld [vmem:[%s3 + $0x8] sm:$0xff]
        %v710 = vld [vmem:[%s3 + $0x10] sm:$0xff]
        %v711 = vld [vmem:[%s3 + $0x18] sm:$0xff]
        %v712 = vld [vmem:[%s3 + $0x20] sm:$0xff]
        %v713 = vld [vmem:[%s3 + $0x28] sm:$0xff]
        %v714 = vld [vmem:[%s3 + $0x30] sm:$0xff]
        %v715 = vld [vmem:[%s3 + $0x38] sm:$0xff]
        %v716 = vld [vmem:[%s3 + $0x40] sm:$0xff]
        %v717 = vld [vmem:[%s3 + $0x48] sm:$0xff]
        %v718 = vld [vmem:[%s3 + $0x50] sm:$0xff]
        %v719 = vld [vmem:[%s3 + $0x58] sm:$0xff]
        %v720 = vld [vmem:[%s3 + $0x60] sm:$0xff]
        %v721 = vld [vmem:[%s3 + $0x68] sm:$0xff]
        %v722 = vld [vmem:[%s3 + $0x70] sm:$0xff]
        %v723 = vld [vmem:[%s3 + $0x78] sm:$0xff]
        %v724 = vld [vmem:[%s3 + $0x80] sm:$0xff]
        %v725 = vld [vmem:[%s3 + $0x88] sm:$0xff]
        %v726 = vld [vmem:[%s3 + $0x90] sm:$0xff]
        %v727 = vld [vmem:[%s3 + $0x98] sm:$0xff]
        %v728 = vld [vmem:[%s3 + $0xa0] sm:$0xff]
        %v729 = vld [vmem:[%s3 + $0xa8] sm:$0xff]
        %v730 = vld [vmem:[%s3 + $0xb0] sm:$0xff]
        %v731 = vld [vmem:[%s3 + $0xb8] sm:$0xff]
        %v732 = vld [vmem:[%s3 + $0xc0] sm:$0xff]
        %v733 = vld [vmem:[%s3 + $0xc8] sm:$0xff]
        %v734 = vld [vmem:[%s3 + $0xd0] sm:$0xff]
        %v735 = vld [vmem:[%s3 + $0xd8] sm:$0xff]
        %v736 = vld [vmem:[%s3 + $0xe0] sm:$0xff]
        %v737 = vld [vmem:[%s3 + $0xe8] sm:$0xff]
        %v738 = vld [vmem:[%s3 + $0xf0] sm:$0xff]
        %v739 = vld [vmem:[%s3 + $0xf8] sm:$0xff]
        %741 = vset.pattern.permute.xlu0 0
        %742 = vperm.xlu0 %741, %v708
        %v743 = vpop.permute.xlu0 %742
        %746 = vset.pattern.permute.xlu0 0
        %747 = vperm.xlu0 %746, %v709
        %v748 = vpop.permute.xlu0 %747
        %751 = vset.pattern.permute.xlu0 0
        %752 = vperm.xlu0 %751, %v710
        %v753 = vpop.permute.xlu0 %752
        %756 = vset.pattern.permute.xlu0 0
        %757 = vperm.xlu0 %756, %v711
        %v758 = vpop.permute.xlu0 %757
        %761 = vset.pattern.permute.xlu0 0
        %762 = vperm.xlu0 %761, %v712
        %v763 = vpop.permute.xlu0 %762
        %766 = vset.pattern.permute.xlu0 0
        %767 = vperm.xlu0 %766, %v713
        %v768 = vpop.permute.xlu0 %767
        %771 = vset.pattern.permute.xlu0 0
        %772 = vperm.xlu0 %771, %v714
        %v773 = vpop.permute.xlu0 %772
        %776 = vset.pattern.permute.xlu0 0
        %777 = vperm.xlu0 %776, %v715
        %v778 = vpop.permute.xlu0 %777
        %781 = vset.pattern.permute.xlu0 0
        %782 = vperm.xlu0 %781, %v716
        %v783 = vpop.permute.xlu0 %782
        %786 = vset.pattern.permute.xlu0 0
        %787 = vperm.xlu0 %786, %v717
        %v788 = vpop.permute.xlu0 %787
        %791 = vset.pattern.permute.xlu0 0
        %792 = vperm.xlu0 %791, %v718
        %v793 = vpop.permute.xlu0 %792
        %796 = vset.pattern.permute.xlu0 0
        %797 = vperm.xlu0 %796, %v719
        %v798 = vpop.permute.xlu0 %797
        %801 = vset.pattern.permute.xlu0 0
        %802 = vperm.xlu0 %801, %v720
        %v803 = vpop.permute.xlu0 %802
        %806 = vset.pattern.permute.xlu0 0
        %807 = vperm.xlu0 %806, %v721
        %v808 = vpop.permute.xlu0 %807
        %811 = vset.pattern.permute.xlu0 0
        %812 = vperm.xlu0 %811, %v722
        %v813 = vpop.permute.xlu0 %812
        %816 = vset.pattern.permute.xlu0 0
        %817 = vperm.xlu0 %816, %v723
        %v818 = vpop.permute.xlu0 %817
        %821 = vset.pattern.permute.xlu0 0
        %822 = vperm.xlu0 %821, %v724
        %v823 = vpop.permute.xlu0 %822
        %826 = vset.pattern.permute.xlu0 0
        %827 = vperm.xlu0 %826, %v725
        %v828 = vpop.permute.xlu0 %827
        %831 = vset.pattern.permute.xlu0 0
        %832 = vperm.xlu0 %831, %v726
        %v833 = vpop.permute.xlu0 %832
        %836 = vset.pattern.permute.xlu0 0
        %837 = vperm.xlu0 %836, %v727
        %v838 = vpop.permute.xlu0 %837
        %841 = vset.pattern.permute.xlu0 0
        %842 = vperm.xlu0 %841, %v728
        %v843 = vpop.permute.xlu0 %842
        %846 = vset.pattern.permute.xlu0 0
        %847 = vperm.xlu0 %846, %v729
        %v848 = vpop.permute.xlu0 %847
        %851 = vset.pattern.permute.xlu0 0
        %852 = vperm.xlu0 %851, %v730
        %v853 = vpop.permute.xlu0 %852
        %856 = vset.pattern.permute.xlu0 0
        %857 = vperm.xlu0 %856, %v731
        %v858 = vpop.permute.xlu0 %857
        %861 = vset.pattern.permute.xlu0 0
        %862 = vperm.xlu0 %861, %v732
        %v863 = vpop.permute.xlu0 %862
        %866 = vset.pattern.permute.xlu0 0
        %867 = vperm.xlu0 %866, %v733
        %v868 = vpop.permute.xlu0 %867
        %871 = vset.pattern.permute.xlu0 0
        %872 = vperm.xlu0 %871, %v734
        %v873 = vpop.permute.xlu0 %872
        %876 = vset.pattern.permute.xlu0 0
        %877 = vperm.xlu0 %876, %v735
        %v878 = vpop.permute.xlu0 %877
        %881 = vset.pattern.permute.xlu0 0
        %882 = vperm.xlu0 %881, %v736
        %v883 = vpop.permute.xlu0 %882
        %886 = vset.pattern.permute.xlu0 0
        %887 = vperm.xlu0 %886, %v737
        %v888 = vpop.permute.xlu0 %887
        %891 = vset.pattern.permute.xlu0 0
        %892 = vperm.xlu0 %891, %v738
        %v893 = vpop.permute.xlu0 %892
        %896 = vset.pattern.permute.xlu0 0
        %897 = vperm.xlu0 %896, %v739
        %v898 = vpop.permute.xlu0 %897
        %v900 = vmul.f32 %v668, %v743
        %v901 = vmul.f32 %v669, %v748
        %v902 = vmul.f32 %v670, %v753
        %v903 = vmul.f32 %v671, %v758
        %v904 = vmul.f32 %v672, %v763
        %v905 = vmul.f32 %v673, %v768
        %v906 = vmul.f32 %v674, %v773
        %v907 = vmul.f32 %v675, %v778
        %v908 = vmul.f32 %v676, %v783
        %v909 = vmul.f32 %v677, %v788
        %v910 = vmul.f32 %v678, %v793
        %v911 = vmul.f32 %v679, %v798
        %v912 = vmul.f32 %v680, %v803
        %v913 = vmul.f32 %v681, %v808
        %v914 = vmul.f32 %v682, %v813
        %v915 = vmul.f32 %v683, %v818
        %v916 = vmul.f32 %v684, %v823
        %v917 = vmul.f32 %v685, %v828
        %v918 = vmul.f32 %v686, %v833
        %v919 = vmul.f32 %v687, %v838
        %v920 = vmul.f32 %v688, %v843
        %v921 = vmul.f32 %v689, %v848
        %v922 = vmul.f32 %v690, %v853
        %v923 = vmul.f32 %v691, %v858
        %v924 = vmul.f32 %v692, %v863
        %v925 = vmul.f32 %v693, %v868
        %v926 = vmul.f32 %v694, %v873
        %v927 = vmul.f32 %v695, %v878
        %v928 = vmul.f32 %v696, %v883
        %v929 = vmul.f32 %v697, %v888
        %v930 = vmul.f32 %v698, %v893
        %v931 = vmul.f32 %v699, %v898
        %v932 = vpack.c.bf16 %v901, %v900
        %v933 = vpack.c.bf16 %v903, %v902
        %v934 = vpack.c.bf16 %v905, %v904
        %v935 = vpack.c.bf16 %v907, %v906
        %v936 = vpack.c.bf16 %v909, %v908
        %v937 = vpack.c.bf16 %v911, %v910
        %v938 = vpack.c.bf16 %v913, %v912
        %v939 = vpack.c.bf16 %v915, %v914
        %v940 = vpack.c.bf16 %v917, %v916
        %v941 = vpack.c.bf16 %v919, %v918
        %v942 = vpack.c.bf16 %v921, %v920
        %v943 = vpack.c.bf16 %v923, %v922
        %v944 = vpack.c.bf16 %v925, %v924
        %v945 = vpack.c.bf16 %v927, %v926
        %v946 = vpack.c.bf16 %v929, %v928
        %v947 = vpack.c.bf16 %v931, %v930
        %v964 = vunpack.c.l.b16 %v932
        %v965 = vunpack.c.h.b16 %v932
        %v966 = vunpack.c.l.b16 %v933
        %v967 = vunpack.c.h.b16 %v933
        %v968 = vunpack.c.l.b16 %v934
        %v969 = vunpack.c.h.b16 %v934
        %v970 = vunpack.c.l.b16 %v935
        %v971 = vunpack.c.h.b16 %v935
        %v972 = vunpack.c.l.b16 %v936
        %v973 = vunpack.c.h.b16 %v936
        %v974 = vunpack.c.l.b16 %v937
        %v975 = vunpack.c.h.b16 %v937
        %v976 = vunpack.c.l.b16 %v938
        %v977 = vunpack.c.h.b16 %v938
        %v978 = vunpack.c.l.b16 %v939
        %v979 = vunpack.c.h.b16 %v939
        %v980 = vunpack.c.l.b16 %v940
        %v981 = vunpack.c.h.b16 %v940
        %v982 = vunpack.c.l.b16 %v941
        %v983 = vunpack.c.h.b16 %v941
        %v984 = vunpack.c.l.b16 %v942
        %v985 = vunpack.c.h.b16 %v942
        %v986 = vunpack.c.l.b16 %v943
        %v987 = vunpack.c.h.b16 %v943
        %v988 = vunpack.c.l.b16 %v944
        %v989 = vunpack.c.h.b16 %v944
        %v990 = vunpack.c.l.b16 %v945
        %v991 = vunpack.c.h.b16 %v945
        %v992 = vunpack.c.l.b16 %v946
        %v993 = vunpack.c.h.b16 %v946
        %v994 = vunpack.c.l.b16 %v947
        %v995 = vunpack.c.h.b16 %v947
        %v996 = vpack.c.b16 %v964, %v964
        %v997 = vpack.c.b16 %v965, %v965
        %v998 = vpack.c.b16 %v966, %v966
        %v999 = vpack.c.b16 %v967, %v967
        %v1000 = vpack.c.b16 %v968, %v968
        %v1001 = vpack.c.b16 %v969, %v969
        %v1002 = vpack.c.b16 %v970, %v970
        %v1003 = vpack.c.b16 %v971, %v971
        %v1004 = vpack.c.b16 %v972, %v972
        %v1005 = vpack.c.b16 %v973, %v973
        %v1006 = vpack.c.b16 %v974, %v974
        %v1007 = vpack.c.b16 %v975, %v975
        %v1008 = vpack.c.b16 %v976, %v976
        %v1009 = vpack.c.b16 %v977, %v977
        %v1010 = vpack.c.b16 %v978, %v978
        %v1011 = vpack.c.b16 %v979, %v979
        %v1012 = vpack.c.b16 %v980, %v980
        %v1013 = vpack.c.b16 %v981, %v981
        %v1014 = vpack.c.b16 %v982, %v982
        %v1015 = vpack.c.b16 %v983, %v983
        %v1016 = vpack.c.b16 %v984, %v984
        %v1017 = vpack.c.b16 %v985, %v985
        %v1018 = vpack.c.b16 %v986, %v986
        %v1019 = vpack.c.b16 %v987, %v987
        %v1020 = vpack.c.b16 %v988, %v988
        %v1021 = vpack.c.b16 %v989, %v989
        %v1022 = vpack.c.b16 %v990, %v990
        %v1023 = vpack.c.b16 %v991, %v991
        %v1024 = vpack.c.b16 %v992, %v992
        %v1025 = vpack.c.b16 %v993, %v993
        %v1026 = vpack.c.b16 %v994, %v994
        %v1027 = vpack.c.b16 %v995, %v995
        %vm1028 = vsmask.f32 256
        %vm1029 = vsmask.f32 4368
        %vm1030 = vmor %vm1028, %vm1029
        %v1032 = vshrl.u32 %v996, 16
        %v1034 = vrot.slane %v1032, 7
        %v1035 = vshll.u32 %v996, 16
        %v1037 = vor.u32 %v1034, %v1035
        %v1038 = vrot.slane %v1034, 4
        %v1040 = vshrl.u32 %v997, 16
        %v1042 = vrot.slane %v1040, 7
        %v1043 = vshll.u32 %v997, 16
        %v1045 = vor.u32 %v1042, %v1043
        %v1046 = vsel %vm1030, %v1038, %v1045
        %v1047 = vrot.slane %v1042, 4
        %v1049 = vshrl.u32 %v998, 16
        %v1051 = vrot.slane %v1049, 7
        %v1052 = vshll.u32 %v998, 16
        %v1054 = vor.u32 %v1051, %v1052
        %v1055 = vsel %vm1030, %v1047, %v1054
        %v1056 = vrot.slane %v1051, 4
        %v1058 = vshrl.u32 %v999, 16
        %v1060 = vrot.slane %v1058, 7
        %v1061 = vshll.u32 %v999, 16
        %v1063 = vor.u32 %v1060, %v1061
        %v1064 = vsel %vm1030, %v1056, %v1063
        %v1065 = vrot.slane %v1060, 4
        %v1067 = vshrl.u32 %v1000, 16
        %v1069 = vrot.slane %v1067, 7
        %v1070 = vshll.u32 %v1000, 16
        %v1072 = vor.u32 %v1069, %v1070
        %v1073 = vsel %vm1030, %v1065, %v1072
        %v1074 = vrot.slane %v1069, 4
        %v1076 = vshrl.u32 %v1001, 16
        %v1078 = vrot.slane %v1076, 7
        %v1079 = vshll.u32 %v1001, 16
        %v1081 = vor.u32 %v1078, %v1079
        %v1082 = vsel %vm1030, %v1074, %v1081
        %v1083 = vrot.slane %v1078, 4
        %v1085 = vshrl.u32 %v1002, 16
        %v1087 = vrot.slane %v1085, 7
        %v1088 = vshll.u32 %v1002, 16
        %v1090 = vor.u32 %v1087, %v1088
        %v1091 = vsel %vm1030, %v1083, %v1090
        %v1092 = vrot.slane %v1087, 4
        %v1094 = vshrl.u32 %v1003, 16
        %v1096 = vrot.slane %v1094, 7
        %v1097 = vshll.u32 %v1003, 16
        %v1099 = vor.u32 %v1096, %v1097
        %v1100 = vsel %vm1030, %v1092, %v1099
        %v1101 = vrot.slane %v1096, 4
        %v1103 = vshrl.u32 %v1004, 16
        %v1105 = vrot.slane %v1103, 7
        %v1106 = vshll.u32 %v1004, 16
        %v1108 = vor.u32 %v1105, %v1106
        %v1109 = vsel %vm1030, %v1101, %v1108
        %v1110 = vrot.slane %v1105, 4
        %v1112 = vshrl.u32 %v1005, 16
        %v1114 = vrot.slane %v1112, 7
        %v1115 = vshll.u32 %v1005, 16
        %v1117 = vor.u32 %v1114, %v1115
        %v1118 = vsel %vm1030, %v1110, %v1117
        %v1119 = vrot.slane %v1114, 4
        %v1121 = vshrl.u32 %v1006, 16
        %v1123 = vrot.slane %v1121, 7
        %v1124 = vshll.u32 %v1006, 16
        %v1126 = vor.u32 %v1123, %v1124
        %v1127 = vsel %vm1030, %v1119, %v1126
        %v1128 = vrot.slane %v1123, 4
        %v1130 = vshrl.u32 %v1007, 16
        %v1132 = vrot.slane %v1130, 7
        %v1133 = vshll.u32 %v1007, 16
        %v1135 = vor.u32 %v1132, %v1133
        %v1136 = vsel %vm1030, %v1128, %v1135
        %v1137 = vrot.slane %v1132, 4
        %v1139 = vshrl.u32 %v1008, 16
        %v1141 = vrot.slane %v1139, 7
        %v1142 = vshll.u32 %v1008, 16
        %v1144 = vor.u32 %v1141, %v1142
        %v1145 = vsel %vm1030, %v1137, %v1144
        %v1146 = vrot.slane %v1141, 4
        %v1148 = vshrl.u32 %v1009, 16
        %v1150 = vrot.slane %v1148, 7
        %v1151 = vshll.u32 %v1009, 16
        %v1153 = vor.u32 %v1150, %v1151
        %v1154 = vsel %vm1030, %v1146, %v1153
        %v1155 = vrot.slane %v1150, 4
        %v1157 = vshrl.u32 %v1010, 16
        %v1159 = vrot.slane %v1157, 7
        %v1160 = vshll.u32 %v1010, 16
        %v1162 = vor.u32 %v1159, %v1160
        %v1163 = vsel %vm1030, %v1155, %v1162
        %v1164 = vrot.slane %v1159, 4
        %v1166 = vshrl.u32 %v1011, 16
        %v1168 = vrot.slane %v1166, 7
        %v1169 = vshll.u32 %v1011, 16
        %v1171 = vor.u32 %v1168, %v1169
        %v1172 = vsel %vm1030, %v1164, %v1171
        %v1173 = vrot.slane %v1168, 4
        %v1175 = vshrl.u32 %v1012, 16
        %v1177 = vrot.slane %v1175, 7
        %v1178 = vshll.u32 %v1012, 16
        %v1180 = vor.u32 %v1177, %v1178
        %v1181 = vsel %vm1030, %v1173, %v1180
        %v1182 = vrot.slane %v1177, 4
        %v1184 = vshrl.u32 %v1013, 16
        %v1186 = vrot.slane %v1184, 7
        %v1187 = vshll.u32 %v1013, 16
        %v1189 = vor.u32 %v1186, %v1187
        %v1190 = vsel %vm1030, %v1182, %v1189
        %v1191 = vrot.slane %v1186, 4
        %v1193 = vshrl.u32 %v1014, 16
        %v1195 = vrot.slane %v1193, 7
        %v1196 = vshll.u32 %v1014, 16
        %v1198 = vor.u32 %v1195, %v1196
        %v1199 = vsel %vm1030, %v1191, %v1198
        %v1200 = vrot.slane %v1195, 4
        %v1202 = vshrl.u32 %v1015, 16
        %v1204 = vrot.slane %v1202, 7
        %v1205 = vshll.u32 %v1015, 16
        %v1207 = vor.u32 %v1204, %v1205
        %v1208 = vsel %vm1030, %v1200, %v1207
        %v1209 = vrot.slane %v1204, 4
        %v1211 = vshrl.u32 %v1016, 16
        %v1213 = vrot.slane %v1211, 7
        %v1214 = vshll.u32 %v1016, 16
        %v1216 = vor.u32 %v1213, %v1214
        %v1217 = vsel %vm1030, %v1209, %v1216
        %v1218 = vrot.slane %v1213, 4
        %v1220 = vshrl.u32 %v1017, 16
        %v1222 = vrot.slane %v1220, 7
        %v1223 = vshll.u32 %v1017, 16
        %v1225 = vor.u32 %v1222, %v1223
        %v1226 = vsel %vm1030, %v1218, %v1225
        %v1227 = vrot.slane %v1222, 4
        %v1229 = vshrl.u32 %v1018, 16
        %v1231 = vrot.slane %v1229, 7
        %v1232 = vshll.u32 %v1018, 16
        %v1234 = vor.u32 %v1231, %v1232
        %v1235 = vsel %vm1030, %v1227, %v1234
        %v1236 = vrot.slane %v1231, 4
        %v1238 = vshrl.u32 %v1019, 16
        %v1240 = vrot.slane %v1238, 7
        %v1241 = vshll.u32 %v1019, 16
        %v1243 = vor.u32 %v1240, %v1241
        %v1244 = vsel %vm1030, %v1236, %v1243
        %v1245 = vrot.slane %v1240, 4
        %v1247 = vshrl.u32 %v1020, 16
        %v1249 = vrot.slane %v1247, 7
        %v1250 = vshll.u32 %v1020, 16
        %v1252 = vor.u32 %v1249, %v1250
        %v1253 = vsel %vm1030, %v1245, %v1252
        %v1254 = vrot.slane %v1249, 4
        %v1256 = vshrl.u32 %v1021, 16
        %v1258 = vrot.slane %v1256, 7
        %v1259 = vshll.u32 %v1021, 16
        %v1261 = vor.u32 %v1258, %v1259
        %v1262 = vsel %vm1030, %v1254, %v1261
        %v1263 = vrot.slane %v1258, 4
        %v1265 = vshrl.u32 %v1022, 16
        %v1267 = vrot.slane %v1265, 7
        %v1268 = vshll.u32 %v1022, 16
        %v1270 = vor.u32 %v1267, %v1268
        %v1271 = vsel %vm1030, %v1263, %v1270
        %v1272 = vrot.slane %v1267, 4
        %v1274 = vshrl.u32 %v1023, 16
        %v1276 = vrot.slane %v1274, 7
        %v1277 = vshll.u32 %v1023, 16
        %v1279 = vor.u32 %v1276, %v1277
        %v1280 = vsel %vm1030, %v1272, %v1279
        %v1281 = vrot.slane %v1276, 4
        %v1283 = vshrl.u32 %v1024, 16
        %v1285 = vrot.slane %v1283, 7
        %v1286 = vshll.u32 %v1024, 16
        %v1288 = vor.u32 %v1285, %v1286
        %v1289 = vsel %vm1030, %v1281, %v1288
        %v1290 = vrot.slane %v1285, 4
        %v1292 = vshrl.u32 %v1025, 16
        %v1294 = vrot.slane %v1292, 7
        %v1295 = vshll.u32 %v1025, 16
        %v1297 = vor.u32 %v1294, %v1295
        %v1298 = vsel %vm1030, %v1290, %v1297
        %v1299 = vrot.slane %v1294, 4
        %v1301 = vshrl.u32 %v1026, 16
        %v1303 = vrot.slane %v1301, 7
        %v1304 = vshll.u32 %v1026, 16
        %v1306 = vor.u32 %v1303, %v1304
        %v1307 = vsel %vm1030, %v1299, %v1306
        %v1308 = vrot.slane %v1303, 4
        %v1310 = vshrl.u32 %v1027, 16
        %v1312 = vrot.slane %v1310, 7
        %v1313 = vshll.u32 %v1027, 16
        %v1315 = vor.u32 %v1312, %v1313
        %v1316 = vsel %vm1030, %v1308, %v1315
        %v1317 = vrot.slane %v1312, 4
        %vm1351 = vcmask 93184
        %vm1352 = vsmask.f32 7938
        %vm1353 = vmand %vm1351, %vm1352
        %v1354 = vld [vmem:[#allocation2 + $0x8] sm:$0xf]
        %v1355 = vsel %vm1353, %v1037, %v1354
        %1356 = vst [vmem:[#allocation2 + $0x8] sm:$0xf] %v1355
        %vm1357 = vcmask 93184
        %1358 = vst.msk [vmem:[#allocation2 + $0xc] sm:$0xf] %vm1357, %v1046
        %1359 = vst.msk [vmem:[#allocation2 + $0x10] sm:$0xf] %vm1357, %v1055
        %1360 = vst.msk [vmem:[#allocation2 + $0x14] sm:$0xf] %vm1357, %v1064
        %1361 = vst.msk [vmem:[#allocation2 + $0x18] sm:$0xf] %vm1357, %v1073
        %1362 = vst.msk [vmem:[#allocation2 + $0x1c] sm:$0xf] %vm1357, %v1082
        %1363 = vst.msk [vmem:[#allocation2 + $0x20] sm:$0xf] %vm1357, %v1091
        %1364 = vst.msk [vmem:[#allocation2 + $0x24] sm:$0xf] %vm1357, %v1100
        %1365 = vst.msk [vmem:[#allocation2 + $0x28] sm:$0xf] %vm1357, %v1109
        %1366 = vst.msk [vmem:[#allocation2 + $0x2c] sm:$0xf] %vm1357, %v1118
        %1367 = vst.msk [vmem:[#allocation2 + $0x30] sm:$0xf] %vm1357, %v1127
        %1368 = vst.msk [vmem:[#allocation2 + $0x34] sm:$0xf] %vm1357, %v1136
        %1369 = vst.msk [vmem:[#allocation2 + $0x38] sm:$0xf] %vm1357, %v1145
        %1370 = vst.msk [vmem:[#allocation2 + $0x3c] sm:$0xf] %vm1357, %v1154
        %1371 = vst.msk [vmem:[#allocation2 + $0x40] sm:$0xf] %vm1357, %v1163
        %1372 = vst.msk [vmem:[#allocation2 + $0x44] sm:$0xf] %vm1357, %v1172
        %1373 = vst.msk [vmem:[#allocation2 + $0x48] sm:$0xf] %vm1357, %v1181
        %1374 = vst.msk [vmem:[#allocation2 + $0x4c] sm:$0xf] %vm1357, %v1190
        %1375 = vst.msk [vmem:[#allocation2 + $0x50] sm:$0xf] %vm1357, %v1199
        %1376 = vst.msk [vmem:[#allocation2 + $0x54] sm:$0xf] %vm1357, %v1208
        %1377 = vst.msk [vmem:[#allocation2 + $0x58] sm:$0xf] %vm1357, %v1217
        %1378 = vst.msk [vmem:[#allocation2 + $0x5c] sm:$0xf] %vm1357, %v1226
        %1379 = vst.msk [vmem:[#allocation2 + $0x60] sm:$0xf] %vm1357, %v1235
        %1380 = vst.msk [vmem:[#allocation2 + $0x64] sm:$0xf] %vm1357, %v1244
        %1381 = vst.msk [vmem:[#allocation2 + $0x68] sm:$0xf] %vm1357, %v1253
        %1382 = vst.msk [vmem:[#allocation2 + $0x6c] sm:$0xf] %vm1357, %v1262
        %1383 = vst.msk [vmem:[#allocation2 + $0x70] sm:$0xf] %vm1357, %v1271
        %1384 = vst.msk [vmem:[#allocation2 + $0x74] sm:$0xf] %vm1357, %v1280
        %1385 = vst.msk [vmem:[#allocation2 + $0x78] sm:$0xf] %vm1357, %v1289
        %1386 = vst.msk [vmem:[#allocation2 + $0x7c] sm:$0xf] %vm1357, %v1298
        %1387 = vst.msk [vmem:[#allocation2 + $0x80] sm:$0xf] %vm1357, %v1307
        %1388 = vst.msk [vmem:[#allocation2 + $0x84] sm:$0xf] %vm1357, %v1316
        %vm1389 = vcmask 90112
        %vm1390 = vmand %vm1389, %vm1028
        %v1391 = vld [vmem:[#allocation2 + $0x88] sm:$0x1]
        %v1392 = vsel %vm1390, %v1317, %v1391
        %1393 = vst [vmem:[#allocation2 + $0x88] sm:$0x1] %v1392
        %v1394 = vpack.c.bf16 %v669, %v668
        %v1395 = vpack.c.bf16 %v671, %v670
        %v1396 = vpack.c.bf16 %v673, %v672
        %v1397 = vpack.c.bf16 %v675, %v674
        %v1398 = vpack.c.bf16 %v677, %v676
        %v1399 = vpack.c.bf16 %v679, %v678
        %v1400 = vpack.c.bf16 %v681, %v680
        %v1401 = vpack.c.bf16 %v683, %v682
        %v1402 = vpack.c.bf16 %v685, %v684
        %v1403 = vpack.c.bf16 %v687, %v686
        %v1404 = vpack.c.bf16 %v689, %v688
        %v1405 = vpack.c.bf16 %v691, %v690
        %v1406 = vpack.c.bf16 %v693, %v692
        %v1407 = vpack.c.bf16 %v695, %v694
        %v1408 = vpack.c.bf16 %v697, %v696
        %v1409 = vpack.c.bf16 %v699, %v698
        %v1426 = vunpack.c.l.b16 %v1394
        %v1427 = vunpack.c.h.b16 %v1394
        %v1428 = vunpack.c.l.b16 %v1395
        %v1429 = vunpack.c.h.b16 %v1395
        %v1430 = vunpack.c.l.b16 %v1396
        %v1431 = vunpack.c.h.b16 %v1396
        %v1432 = vunpack.c.l.b16 %v1397
        %v1433 = vunpack.c.h.b16 %v1397
        %v1434 = vunpack.c.l.b16 %v1398
        %v1435 = vunpack.c.h.b16 %v1398
        %v1436 = vunpack.c.l.b16 %v1399
        %v1437 = vunpack.c.h.b16 %v1399
        %v1438 = vunpack.c.l.b16 %v1400
        %v1439 = vunpack.c.h.b16 %v1400
        %v1440 = vunpack.c.l.b16 %v1401
        %v1441 = vunpack.c.h.b16 %v1401
        %v1442 = vunpack.c.l.b16 %v1402
        %v1443 = vunpack.c.h.b16 %v1402
        %v1444 = vunpack.c.l.b16 %v1403
        %v1445 = vunpack.c.h.b16 %v1403
        %v1446 = vunpack.c.l.b16 %v1404
        %v1447 = vunpack.c.h.b16 %v1404
        %v1448 = vunpack.c.l.b16 %v1405
        %v1449 = vunpack.c.h.b16 %v1405
        %v1450 = vunpack.c.l.b16 %v1406
        %v1451 = vunpack.c.h.b16 %v1406
        %v1452 = vunpack.c.l.b16 %v1407
        %v1453 = vunpack.c.h.b16 %v1407
        %v1454 = vunpack.c.l.b16 %v1408
        %v1455 = vunpack.c.h.b16 %v1408
        %v1456 = vunpack.c.l.b16 %v1409
        %v1457 = vunpack.c.h.b16 %v1409
        %v1458 = vpack.c.b16 %v1426, %v1426
        %v1459 = vpack.c.b16 %v1427, %v1427
        %v1460 = vpack.c.b16 %v1428, %v1428
        %v1461 = vpack.c.b16 %v1429, %v1429
        %v1462 = vpack.c.b16 %v1430, %v1430
        %v1463 = vpack.c.b16 %v1431, %v1431
        %v1464 = vpack.c.b16 %v1432, %v1432
        %v1465 = vpack.c.b16 %v1433, %v1433
        %v1466 = vpack.c.b16 %v1434, %v1434
        %v1467 = vpack.c.b16 %v1435, %v1435
        %v1468 = vpack.c.b16 %v1436, %v1436
        %v1469 = vpack.c.b16 %v1437, %v1437
        %v1470 = vpack.c.b16 %v1438, %v1438
        %v1471 = vpack.c.b16 %v1439, %v1439
        %v1472 = vpack.c.b16 %v1440, %v1440
        %v1473 = vpack.c.b16 %v1441, %v1441
        %v1474 = vpack.c.b16 %v1442, %v1442
        %v1475 = vpack.c.b16 %v1443, %v1443
        %v1476 = vpack.c.b16 %v1444, %v1444
        %v1477 = vpack.c.b16 %v1445, %v1445
        %v1478 = vpack.c.b16 %v1446, %v1446
        %v1479 = vpack.c.b16 %v1447, %v1447
        %v1480 = vpack.c.b16 %v1448, %v1448
        %v1481 = vpack.c.b16 %v1449, %v1449
        %v1482 = vpack.c.b16 %v1450, %v1450
        %v1483 = vpack.c.b16 %v1451, %v1451
        %v1484 = vpack.c.b16 %v1452, %v1452
        %v1485 = vpack.c.b16 %v1453, %v1453
        %v1486 = vpack.c.b16 %v1454, %v1454
        %v1487 = vpack.c.b16 %v1455, %v1455
        %v1488 = vpack.c.b16 %v1456, %v1456
        %v1489 = vpack.c.b16 %v1457, %v1457
        %1490 = vrot.lane.b32.xlu0 %v1458, 12
        %v1491 = vpop.permute.xlu0 %1490
        %1492 = vrot.lane.b32.xlu0 %v1459, 12
        %v1493 = vpop.permute.xlu0 %1492
        %1494 = vrot.lane.b32.xlu0 %v1460, 12
        %v1495 = vpop.permute.xlu0 %1494
        %1496 = vrot.lane.b32.xlu0 %v1461, 12
        %v1497 = vpop.permute.xlu0 %1496
        %1498 = vrot.lane.b32.xlu0 %v1462, 12
        %v1499 = vpop.permute.xlu0 %1498
        %1500 = vrot.lane.b32.xlu0 %v1463, 12
        %v1501 = vpop.permute.xlu0 %1500
        %1502 = vrot.lane.b32.xlu0 %v1464, 12
        %v1503 = vpop.permute.xlu0 %1502
        %1504 = vrot.lane.b32.xlu0 %v1465, 12
        %v1505 = vpop.permute.xlu0 %1504
        %1506 = vrot.lane.b32.xlu0 %v1466, 12
        %v1507 = vpop.permute.xlu0 %1506
        %1508 = vrot.lane.b32.xlu0 %v1467, 12
        %v1509 = vpop.permute.xlu0 %1508
        %1510 = vrot.lane.b32.xlu0 %v1468, 12
        %v1511 = vpop.permute.xlu0 %1510
        %1512 = vrot.lane.b32.xlu0 %v1469, 12
        %v1513 = vpop.permute.xlu0 %1512
        %1514 = vrot.lane.b32.xlu0 %v1470, 12
        %v1515 = vpop.permute.xlu0 %1514
        %1516 = vrot.lane.b32.xlu0 %v1471, 12
        %v1517 = vpop.permute.xlu0 %1516
        %1518 = vrot.lane.b32.xlu0 %v1472, 12
        %v1519 = vpop.permute.xlu0 %1518
        %1520 = vrot.lane.b32.xlu0 %v1473, 12
        %v1521 = vpop.permute.xlu0 %1520
        %1522 = vrot.lane.b32.xlu0 %v1474, 12
        %v1523 = vpop.permute.xlu0 %1522
        %1524 = vrot.lane.b32.xlu0 %v1475, 12
        %v1525 = vpop.permute.xlu0 %1524
        %1526 = vrot.lane.b32.xlu0 %v1476, 12
        %v1527 = vpop.permute.xlu0 %1526
        %1528 = vrot.lane.b32.xlu0 %v1477, 12
        %v1529 = vpop.permute.xlu0 %1528
        %1530 = vrot.lane.b32.xlu0 %v1478, 12
        %v1531 = vpop.permute.xlu0 %1530
        %1532 = vrot.lane.b32.xlu0 %v1479, 12
        %v1533 = vpop.permute.xlu0 %1532
        %1534 = vrot.lane.b32.xlu0 %v1480, 12
        %v1535 = vpop.permute.xlu0 %1534
        %1536 = vrot.lane.b32.xlu0 %v1481, 12
        %v1537 = vpop.permute.xlu0 %1536
        %1538 = vrot.lane.b32.xlu0 %v1482, 12
        %v1539 = vpop.permute.xlu0 %1538
        %1540 = vrot.lane.b32.xlu0 %v1483, 12
        %v1541 = vpop.permute.xlu0 %1540
        %1542 = vrot.lane.b32.xlu0 %v1484, 12
        %v1543 = vpop.permute.xlu0 %1542
        %1544 = vrot.lane.b32.xlu0 %v1485, 12
        %v1545 = vpop.permute.xlu0 %1544
        %1546 = vrot.lane.b32.xlu0 %v1486, 12
        %v1547 = vpop.permute.xlu0 %1546
        %1548 = vrot.lane.b32.xlu0 %v1487, 12
        %v1549 = vpop.permute.xlu0 %1548
        %1550 = vrot.lane.b32.xlu0 %v1488, 12
        %v1551 = vpop.permute.xlu0 %1550
        %1552 = vrot.lane.b32.xlu0 %v1489, 12
        %v1553 = vpop.permute.xlu0 %1552
        %vm1586 = vcmask 191584
        %1587 = vst.msk [vmem:[#allocation2 + $0x8] sm:$0xf] %vm1586, %v1491
        %1588 = vst.msk [vmem:[#allocation2 + $0xc] sm:$0xf] %vm1586, %v1493
        %1589 = vst.msk [vmem:[#allocation2 + $0x10] sm:$0xf] %vm1586, %v1495
        %1590 = vst.msk [vmem:[#allocation2 + $0x14] sm:$0xf] %vm1586, %v1497
        %1591 = vst.msk [vmem:[#allocation2 + $0x18] sm:$0xf] %vm1586, %v1499
        %1592 = vst.msk [vmem:[#allocation2 + $0x1c] sm:$0xf] %vm1586, %v1501
        %1593 = vst.msk [vmem:[#allocation2 + $0x20] sm:$0xf] %vm1586, %v1503
        %1594 = vst.msk [vmem:[#allocation2 + $0x24] sm:$0xf] %vm1586, %v1505
        %1595 = vst.msk [vmem:[#allocation2 + $0x28] sm:$0xf] %vm1586, %v1507
        %1596 = vst.msk [vmem:[#allocation2 + $0x2c] sm:$0xf] %vm1586, %v1509
        %1597 = vst.msk [vmem:[#allocation2 + $0x30] sm:$0xf] %vm1586, %v1511
        %1598 = vst.msk [vmem:[#allocation2 + $0x34] sm:$0xf] %vm1586, %v1513
        %1599 = vst.msk [vmem:[#allocation2 + $0x38] sm:$0xf] %vm1586, %v1515
        %1600 = vst.msk [vmem:[#allocation2 + $0x3c] sm:$0xf] %vm1586, %v1517
        %1601 = vst.msk [vmem:[#allocation2 + $0x40] sm:$0xf] %vm1586, %v1519
        %1602 = vst.msk [vmem:[#allocation2 + $0x44] sm:$0xf] %vm1586, %v1521
        %1603 = vst.msk [vmem:[#allocation2 + $0x48] sm:$0xf] %vm1586, %v1523
        %1604 = vst.msk [vmem:[#allocation2 + $0x4c] sm:$0xf] %vm1586, %v1525
        %1605 = vst.msk [vmem:[#allocation2 + $0x50] sm:$0xf] %vm1586, %v1527
        %1606 = vst.msk [vmem:[#allocation2 + $0x54] sm:$0xf] %vm1586, %v1529
        %1607 = vst.msk [vmem:[#allocation2 + $0x58] sm:$0xf] %vm1586, %v1531
        %1608 = vst.msk [vmem:[#allocation2 + $0x5c] sm:$0xf] %vm1586, %v1533
        %1609 = vst.msk [vmem:[#allocation2 + $0x60] sm:$0xf] %vm1586, %v1535
        %1610 = vst.msk [vmem:[#allocation2 + $0x64] sm:$0xf] %vm1586, %v1537
        %1611 = vst.msk [vmem:[#allocation2 + $0x68] sm:$0xf] %vm1586, %v1539
        %1612 = vst.msk [vmem:[#allocation2 + $0x6c] sm:$0xf] %vm1586, %v1541
        %1613 = vst.msk [vmem:[#allocation2 + $0x70] sm:$0xf] %vm1586, %v1543
        %1614 = vst.msk [vmem:[#allocation2 + $0x74] sm:$0xf] %vm1586, %v1545
        %1615 = vst.msk [vmem:[#allocation2 + $0x78] sm:$0xf] %vm1586, %v1547
        %1616 = vst.msk [vmem:[#allocation2 + $0x7c] sm:$0xf] %vm1586, %v1549
        %1617 = vst.msk [vmem:[#allocation2 + $0x80] sm:$0xf] %vm1586, %v1551
        %1618 = vst.msk [vmem:[#allocation2 + $0x84] sm:$0xf] %vm1586, %v1553
        %s1619 = scalar_lea.vmem %s3, 256
        %v1620 = vld [vmem:[%s1619] sm:$0xff]
        %v1621 = vld [vmem:[%s1619 + $0x8] sm:$0xff]
        %v1622 = vld [vmem:[%s1619 + $0x10] sm:$0xff]
        %v1623 = vld [vmem:[%s1619 + $0x18] sm:$0xff]
        %v1624 = vld [vmem:[%s1619 + $0x20] sm:$0xff]
        %v1625 = vld [vmem:[%s1619 + $0x28] sm:$0xff]
        %v1626 = vld [vmem:[%s1619 + $0x30] sm:$0xff]
        %v1627 = vld [vmem:[%s1619 + $0x38] sm:$0xff]
        %v1628 = vld [vmem:[%s1619 + $0x40] sm:$0xff]
        %v1629 = vld [vmem:[%s1619 + $0x48] sm:$0xff]
        %v1630 = vld [vmem:[%s1619 + $0x50] sm:$0xff]
        %v1631 = vld [vmem:[%s1619 + $0x58] sm:$0xff]
        %v1632 = vld [vmem:[%s1619 + $0x60] sm:$0xff]
        %v1633 = vld [vmem:[%s1619 + $0x68] sm:$0xff]
        %v1634 = vld [vmem:[%s1619 + $0x70] sm:$0xff]
        %v1635 = vld [vmem:[%s1619 + $0x78] sm:$0xff]
        %v1636 = vld [vmem:[%s1619 + $0x80] sm:$0xff]
        %v1637 = vld [vmem:[%s1619 + $0x88] sm:$0xff]
        %v1638 = vld [vmem:[%s1619 + $0x90] sm:$0xff]
        %v1639 = vld [vmem:[%s1619 + $0x98] sm:$0xff]
        %v1640 = vld [vmem:[%s1619 + $0xa0] sm:$0xff]
        %v1641 = vld [vmem:[%s1619 + $0xa8] sm:$0xff]
        %v1642 = vld [vmem:[%s1619 + $0xb0] sm:$0xff]
        %v1643 = vld [vmem:[%s1619 + $0xb8] sm:$0xff]
        %v1644 = vld [vmem:[%s1619 + $0xc0] sm:$0xff]
        %v1645 = vld [vmem:[%s1619 + $0xc8] sm:$0xff]
        %v1646 = vld [vmem:[%s1619 + $0xd0] sm:$0xff]
        %v1647 = vld [vmem:[%s1619 + $0xd8] sm:$0xff]
        %v1648 = vld [vmem:[%s1619 + $0xe0] sm:$0xff]
        %v1649 = vld [vmem:[%s1619 + $0xe8] sm:$0xff]
        %v1650 = vld [vmem:[%s1619 + $0xf0] sm:$0xff]
        %v1651 = vld [vmem:[%s1619 + $0xf8] sm:$0xff]
        %1653 = vset.pattern.permute.xlu0 0
        %1654 = vperm.xlu0 %1653, %v1620
        %v1655 = vpop.permute.xlu0 %1654
        %1658 = vset.pattern.permute.xlu0 0
        %1659 = vperm.xlu0 %1658, %v1621
        %v1660 = vpop.permute.xlu0 %1659
        %1663 = vset.pattern.permute.xlu0 0
        %1664 = vperm.xlu0 %1663, %v1622
        %v1665 = vpop.permute.xlu0 %1664
        %1668 = vset.pattern.permute.xlu0 0
        %1669 = vperm.xlu0 %1668, %v1623
        %v1670 = vpop.permute.xlu0 %1669
        %1673 = vset.pattern.permute.xlu0 0
        %1674 = vperm.xlu0 %1673, %v1624
        %v1675 = vpop.permute.xlu0 %1674
        %1678 = vset.pattern.permute.xlu0 0
        %1679 = vperm.xlu0 %1678, %v1625
        %v1680 = vpop.permute.xlu0 %1679
        %1683 = vset.pattern.permute.xlu0 0
        %1684 = vperm.xlu0 %1683, %v1626
        %v1685 = vpop.permute.xlu0 %1684
        %1688 = vset.pattern.permute.xlu0 0
        %1689 = vperm.xlu0 %1688, %v1627
        %v1690 = vpop.permute.xlu0 %1689
        %1693 = vset.pattern.permute.xlu0 0
        %1694 = vperm.xlu0 %1693, %v1628
        %v1695 = vpop.permute.xlu0 %1694
        %1698 = vset.pattern.permute.xlu0 0
        %1699 = vperm.xlu0 %1698, %v1629
        %v1700 = vpop.permute.xlu0 %1699
        %1703 = vset.pattern.permute.xlu0 0
        %1704 = vperm.xlu0 %1703, %v1630
        %v1705 = vpop.permute.xlu0 %1704
        %1708 = vset.pattern.permute.xlu0 0
        %1709 = vperm.xlu0 %1708, %v1631
        %v1710 = vpop.permute.xlu0 %1709
        %1713 = vset.pattern.permute.xlu0 0
        %1714 = vperm.xlu0 %1713, %v1632
        %v1715 = vpop.permute.xlu0 %1714
        %1718 = vset.pattern.permute.xlu0 0
        %1719 = vperm.xlu0 %1718, %v1633
        %v1720 = vpop.permute.xlu0 %1719
        %1723 = vset.pattern.permute.xlu0 0
        %1724 = vperm.xlu0 %1723, %v1634
        %v1725 = vpop.permute.xlu0 %1724
        %1728 = vset.pattern.permute.xlu0 0
        %1729 = vperm.xlu0 %1728, %v1635
        %v1730 = vpop.permute.xlu0 %1729
        %1733 = vset.pattern.permute.xlu0 0
        %1734 = vperm.xlu0 %1733, %v1636
        %v1735 = vpop.permute.xlu0 %1734
        %1738 = vset.pattern.permute.xlu0 0
        %1739 = vperm.xlu0 %1738, %v1637
        %v1740 = vpop.permute.xlu0 %1739
        %1743 = vset.pattern.permute.xlu0 0
        %1744 = vperm.xlu0 %1743, %v1638
        %v1745 = vpop.permute.xlu0 %1744
        %1748 = vset.pattern.permute.xlu0 0
        %1749 = vperm.xlu0 %1748, %v1639
        %v1750 = vpop.permute.xlu0 %1749
        %1753 = vset.pattern.permute.xlu0 0
        %1754 = vperm.xlu0 %1753, %v1640
        %v1755 = vpop.permute.xlu0 %1754
        %1758 = vset.pattern.permute.xlu0 0
        %1759 = vperm.xlu0 %1758, %v1641
        %v1760 = vpop.permute.xlu0 %1759
        %1763 = vset.pattern.permute.xlu0 0
        %1764 = vperm.xlu0 %1763, %v1642
        %v1765 = vpop.permute.xlu0 %1764
        %1768 = vset.pattern.permute.xlu0 0
        %1769 = vperm.xlu0 %1768, %v1643
        %v1770 = vpop.permute.xlu0 %1769
        %1773 = vset.pattern.permute.xlu0 0
        %1774 = vperm.xlu0 %1773, %v1644
        %v1775 = vpop.permute.xlu0 %1774
        %1778 = vset.pattern.permute.xlu0 0
        %1779 = vperm.xlu0 %1778, %v1645
        %v1780 = vpop.permute.xlu0 %1779
        %1783 = vset.pattern.permute.xlu0 0
        %1784 = vperm.xlu0 %1783, %v1646
        %v1785 = vpop.permute.xlu0 %1784
        %1788 = vset.pattern.permute.xlu0 0
        %1789 = vperm.xlu0 %1788, %v1647
        %v1790 = vpop.permute.xlu0 %1789
        %1793 = vset.pattern.permute.xlu0 0
        %1794 = vperm.xlu0 %1793, %v1648
        %v1795 = vpop.permute.xlu0 %1794
        %1798 = vset.pattern.permute.xlu0 0
        %1799 = vperm.xlu0 %1798, %v1649
        %v1800 = vpop.permute.xlu0 %1799
        %1803 = vset.pattern.permute.xlu0 0
        %1804 = vperm.xlu0 %1803, %v1650
        %v1805 = vpop.permute.xlu0 %1804
        %1808 = vset.pattern.permute.xlu0 0
        %1809 = vperm.xlu0 %1808, %v1651
        %v1810 = vpop.permute.xlu0 %1809
        %v1812 = vmul.f32 %v668, %v1655
        %v1813 = vmul.f32 %v669, %v1660
        %v1814 = vmul.f32 %v670, %v1665
        %v1815 = vmul.f32 %v671, %v1670
        %v1816 = vmul.f32 %v672, %v1675
        %v1817 = vmul.f32 %v673, %v1680
        %v1818 = vmul.f32 %v674, %v1685
        %v1819 = vmul.f32 %v675, %v1690
        %v1820 = vmul.f32 %v676, %v1695
        %v1821 = vmul.f32 %v677, %v1700
        %v1822 = vmul.f32 %v678, %v1705
        %v1823 = vmul.f32 %v679, %v1710
        %v1824 = vmul.f32 %v680, %v1715
        %v1825 = vmul.f32 %v681, %v1720
        %v1826 = vmul.f32 %v682, %v1725
        %v1827 = vmul.f32 %v683, %v1730
        %v1828 = vmul.f32 %v684, %v1735
        %v1829 = vmul.f32 %v685, %v1740
        %v1830 = vmul.f32 %v686, %v1745
        %v1831 = vmul.f32 %v687, %v1750
        %v1832 = vmul.f32 %v688, %v1755
        %v1833 = vmul.f32 %v689, %v1760
        %v1834 = vmul.f32 %v690, %v1765
        %v1835 = vmul.f32 %v691, %v1770
        %v1836 = vmul.f32 %v692, %v1775
        %v1837 = vmul.f32 %v693, %v1780
        %v1838 = vmul.f32 %v694, %v1785
        %v1839 = vmul.f32 %v695, %v1790
        %v1840 = vmul.f32 %v696, %v1795
        %v1841 = vmul.f32 %v697, %v1800
        %v1842 = vmul.f32 %v698, %v1805
        %v1843 = vmul.f32 %v699, %v1810
        %v1844 = vpack.c.bf16 %v1813, %v1812
        %v1845 = vpack.c.bf16 %v1815, %v1814
        %v1846 = vpack.c.bf16 %v1817, %v1816
        %v1847 = vpack.c.bf16 %v1819, %v1818
        %v1848 = vpack.c.bf16 %v1821, %v1820
        %v1849 = vpack.c.bf16 %v1823, %v1822
        %v1850 = vpack.c.bf16 %v1825, %v1824
        %v1851 = vpack.c.bf16 %v1827, %v1826
        %v1852 = vpack.c.bf16 %v1829, %v1828
        %v1853 = vpack.c.bf16 %v1831, %v1830
        %v1854 = vpack.c.bf16 %v1833, %v1832
        %v1855 = vpack.c.bf16 %v1835, %v1834
        %v1856 = vpack.c.bf16 %v1837, %v1836
        %v1857 = vpack.c.bf16 %v1839, %v1838
        %v1858 = vpack.c.bf16 %v1841, %v1840
        %v1859 = vpack.c.bf16 %v1843, %v1842
        %v1876 = vunpack.c.l.b16 %v1844
        %v1877 = vunpack.c.h.b16 %v1844
        %v1878 = vunpack.c.l.b16 %v1845
        %v1879 = vunpack.c.h.b16 %v1845
        %v1880 = vunpack.c.l.b16 %v1846
        %v1881 = vunpack.c.h.b16 %v1846
        %v1882 = vunpack.c.l.b16 %v1847
        %v1883 = vunpack.c.h.b16 %v1847
        %v1884 = vunpack.c.l.b16 %v1848
        %v1885 = vunpack.c.h.b16 %v1848
        %v1886 = vunpack.c.l.b16 %v1849
        %v1887 = vunpack.c.h.b16 %v1849
        %v1888 = vunpack.c.l.b16 %v1850
        %v1889 = vunpack.c.h.b16 %v1850
        %v1890 = vunpack.c.l.b16 %v1851
        %v1891 = vunpack.c.h.b16 %v1851
        %v1892 = vunpack.c.l.b16 %v1852
        %v1893 = vunpack.c.h.b16 %v1852
        %v1894 = vunpack.c.l.b16 %v1853
        %v1895 = vunpack.c.h.b16 %v1853
        %v1896 = vunpack.c.l.b16 %v1854
        %v1897 = vunpack.c.h.b16 %v1854
        %v1898 = vunpack.c.l.b16 %v1855
        %v1899 = vunpack.c.h.b16 %v1855
        %v1900 = vunpack.c.l.b16 %v1856
        %v1901 = vunpack.c.h.b16 %v1856
        %v1902 = vunpack.c.l.b16 %v1857
        %v1903 = vunpack.c.h.b16 %v1857
        %v1904 = vunpack.c.l.b16 %v1858
        %v1905 = vunpack.c.h.b16 %v1858
        %v1906 = vunpack.c.l.b16 %v1859
        %v1907 = vunpack.c.h.b16 %v1859
        %v1908 = vpack.c.b16 %v1876, %v1876
        %v1909 = vpack.c.b16 %v1877, %v1877
        %v1910 = vpack.c.b16 %v1878, %v1878
        %v1911 = vpack.c.b16 %v1879, %v1879
        %v1912 = vpack.c.b16 %v1880, %v1880
        %v1913 = vpack.c.b16 %v1881, %v1881
        %v1914 = vpack.c.b16 %v1882, %v1882
        %v1915 = vpack.c.b16 %v1883, %v1883
        %v1916 = vpack.c.b16 %v1884, %v1884
        %v1917 = vpack.c.b16 %v1885, %v1885
        %v1918 = vpack.c.b16 %v1886, %v1886
        %v1919 = vpack.c.b16 %v1887, %v1887
        %v1920 = vpack.c.b16 %v1888, %v1888
        %v1921 = vpack.c.b16 %v1889, %v1889
        %v1922 = vpack.c.b16 %v1890, %v1890
        %v1923 = vpack.c.b16 %v1891, %v1891
        %v1924 = vpack.c.b16 %v1892, %v1892
        %v1925 = vpack.c.b16 %v1893, %v1893
        %v1926 = vpack.c.b16 %v1894, %v1894
        %v1927 = vpack.c.b16 %v1895, %v1895
        %v1928 = vpack.c.b16 %v1896, %v1896
        %v1929 = vpack.c.b16 %v1897, %v1897
        %v1930 = vpack.c.b16 %v1898, %v1898
        %v1931 = vpack.c.b16 %v1899, %v1899
        %v1932 = vpack.c.b16 %v1900, %v1900
        %v1933 = vpack.c.b16 %v1901, %v1901
        %v1934 = vpack.c.b16 %v1902, %v1902
        %v1935 = vpack.c.b16 %v1903, %v1903
        %v1936 = vpack.c.b16 %v1904, %v1904
        %v1937 = vpack.c.b16 %v1905, %v1905
        %v1938 = vpack.c.b16 %v1906, %v1906
        %v1939 = vpack.c.b16 %v1907, %v1907
        %vm1940 = vsmask.f32 3328
        %vm1941 = vsmask.f32 7440
        %vm1942 = vmor %vm1940, %vm1941
        %v1944 = vshll.u32 %v1908, 16
        %v1946 = vrot.slane %v1944, 5
        %v1947 = vshrl.u32 %v1908, 16
        %v1949 = vrot.slane %v1947, 4
        %v1950 = vor.u32 %v1949, %v1946
        %v1951 = vrot.slane %v1950, 4
        %v1953 = vshll.u32 %v1909, 16
        %v1955 = vrot.slane %v1953, 5
        %v1956 = vsel %vm1942, %v1951, %v1955
        %v1957 = vshrl.u32 %v1909, 16
        %v1959 = vrot.slane %v1957, 4
        %v1960 = vor.u32 %v1959, %v1955
        %v1961 = vrot.slane %v1960, 4
        %v1963 = vshll.u32 %v1910, 16
        %v1965 = vrot.slane %v1963, 5
        %v1966 = vsel %vm1942, %v1961, %v1965
        %v1967 = vshrl.u32 %v1910, 16
        %v1969 = vrot.slane %v1967, 4
        %v1970 = vor.u32 %v1969, %v1965
        %v1971 = vrot.slane %v1970, 4
        %v1973 = vshll.u32 %v1911, 16
        %v1975 = vrot.slane %v1973, 5
        %v1976 = vsel %vm1942, %v1971, %v1975
        %v1977 = vshrl.u32 %v1911, 16
        %v1979 = vrot.slane %v1977, 4
        %v1980 = vor.u32 %v1979, %v1975
        %v1981 = vrot.slane %v1980, 4
        %v1983 = vshll.u32 %v1912, 16
        %v1985 = vrot.slane %v1983, 5
        %v1986 = vsel %vm1942, %v1981, %v1985
        %v1987 = vshrl.u32 %v1912, 16
        %v1989 = vrot.slane %v1987, 4
        %v1990 = vor.u32 %v1989, %v1985
        %v1991 = vrot.slane %v1990, 4
        %v1993 = vshll.u32 %v1913, 16
        %v1995 = vrot.slane %v1993, 5
        %v1996 = vsel %vm1942, %v1991, %v1995
        %v1997 = vshrl.u32 %v1913, 16
        %v1999 = vrot.slane %v1997, 4
        %v2000 = vor.u32 %v1999, %v1995
        %v2001 = vrot.slane %v2000, 4
        %v2003 = vshll.u32 %v1914, 16
        %v2005 = vrot.slane %v2003, 5
        %v2006 = vsel %vm1942, %v2001, %v2005
        %v2007 = vshrl.u32 %v1914, 16
        %v2009 = vrot.slane %v2007, 4
        %v2010 = vor.u32 %v2009, %v2005
        %v2011 = vrot.slane %v2010, 4
        %v2013 = vshll.u32 %v1915, 16
        %v2015 = vrot.slane %v2013, 5
        %v2016 = vsel %vm1942, %v2011, %v2015
        %v2017 = vshrl.u32 %v1915, 16
        %v2019 = vrot.slane %v2017, 4
        %v2020 = vor.u32 %v2019, %v2015
        %v2021 = vrot.slane %v2020, 4
        %v2023 = vshll.u32 %v1916, 16
        %v2025 = vrot.slane %v2023, 5
        %v2026 = vsel %vm1942, %v2021, %v2025
        %v2027 = vshrl.u32 %v1916, 16
        %v2029 = vrot.slane %v2027, 4
        %v2030 = vor.u32 %v2029, %v2025
        %v2031 = vrot.slane %v2030, 4
        %v2033 = vshll.u32 %v1917, 16
        %v2035 = vrot.slane %v2033, 5
        %v2036 = vsel %vm1942, %v2031, %v2035
        %v2037 = vshrl.u32 %v1917, 16
        %v2039 = vrot.slane %v2037, 4
        %v2040 = vor.u32 %v2039, %v2035
        %v2041 = vrot.slane %v2040, 4
        %v2043 = vshll.u32 %v1918, 16
        %v2045 = vrot.slane %v2043, 5
        %v2046 = vsel %vm1942, %v2041, %v2045
        %v2047 = vshrl.u32 %v1918, 16
        %v2049 = vrot.slane %v2047, 4
        %v2050 = vor.u32 %v2049, %v2045
        %v2051 = vrot.slane %v2050, 4
        %v2053 = vshll.u32 %v1919, 16
        %v2055 = vrot.slane %v2053, 5
        %v2056 = vsel %vm1942, %v2051, %v2055
        %v2057 = vshrl.u32 %v1919, 16
        %v2059 = vrot.slane %v2057, 4
        %v2060 = vor.u32 %v2059, %v2055
        %v2061 = vrot.slane %v2060, 4
        %v2063 = vshll.u32 %v1920, 16
        %v2065 = vrot.slane %v2063, 5
        %v2066 = vsel %vm1942, %v2061, %v2065
        %v2067 = vshrl.u32 %v1920, 16
        %v2069 = vrot.slane %v2067, 4
        %v2070 = vor.u32 %v2069, %v2065
        %v2071 = vrot.slane %v2070, 4
        %v2073 = vshll.u32 %v1921, 16
        %v2075 = vrot.slane %v2073, 5
        %v2076 = vsel %vm1942, %v2071, %v2075
        %v2077 = vshrl.u32 %v1921, 16
        %v2079 = vrot.slane %v2077, 4
        %v2080 = vor.u32 %v2079, %v2075
        %v2081 = vrot.slane %v2080, 4
        %v2083 = vshll.u32 %v1922, 16
        %v2085 = vrot.slane %v2083, 5
        %v2086 = vsel %vm1942, %v2081, %v2085
        %v2087 = vshrl.u32 %v1922, 16
        %v2089 = vrot.slane %v2087, 4
        %v2090 = vor.u32 %v2089, %v2085
        %v2091 = vrot.slane %v2090, 4
        %v2093 = vshll.u32 %v1923, 16
        %v2095 = vrot.slane %v2093, 5
        %v2096 = vsel %vm1942, %v2091, %v2095
        %v2097 = vshrl.u32 %v1923, 16
        %v2099 = vrot.slane %v2097, 4
        %v2100 = vor.u32 %v2099, %v2095
        %v2101 = vrot.slane %v2100, 4
        %v2103 = vshll.u32 %v1924, 16
        %v2105 = vrot.slane %v2103, 5
        %v2106 = vsel %vm1942, %v2101, %v2105
        %v2107 = vshrl.u32 %v1924, 16
        %v2109 = vrot.slane %v2107, 4
        %v2110 = vor.u32 %v2109, %v2105
        %v2111 = vrot.slane %v2110, 4
        %v2113 = vshll.u32 %v1925, 16
        %v2115 = vrot.slane %v2113, 5
        %v2116 = vsel %vm1942, %v2111, %v2115
        %v2117 = vshrl.u32 %v1925, 16
        %v2119 = vrot.slane %v2117, 4
        %v2120 = vor.u32 %v2119, %v2115
        %v2121 = vrot.slane %v2120, 4
        %v2123 = vshll.u32 %v1926, 16
        %v2125 = vrot.slane %v2123, 5
        %v2126 = vsel %vm1942, %v2121, %v2125
        %v2127 = vshrl.u32 %v1926, 16
        %v2129 = vrot.slane %v2127, 4
        %v2130 = vor.u32 %v2129, %v2125
        %v2131 = vrot.slane %v2130, 4
        %v2133 = vshll.u32 %v1927, 16
        %v2135 = vrot.slane %v2133, 5
        %v2136 = vsel %vm1942, %v2131, %v2135
        %v2137 = vshrl.u32 %v1927, 16
        %v2139 = vrot.slane %v2137, 4
        %v2140 = vor.u32 %v2139, %v2135
        %v2141 = vrot.slane %v2140, 4
        %v2143 = vshll.u32 %v1928, 16
        %v2145 = vrot.slane %v2143, 5
        %v2146 = vsel %vm1942, %v2141, %v2145
        %v2147 = vshrl.u32 %v1928, 16
        %v2149 = vrot.slane %v2147, 4
        %v2150 = vor.u32 %v2149, %v2145
        %v2151 = vrot.slane %v2150, 4
        %v2153 = vshll.u32 %v1929, 16
        %v2155 = vrot.slane %v2153, 5
        %v2156 = vsel %vm1942, %v2151, %v2155
        %v2157 = vshrl.u32 %v1929, 16
        %v2159 = vrot.slane %v2157, 4
        %v2160 = vor.u32 %v2159, %v2155
        %v2161 = vrot.slane %v2160, 4
        %v2163 = vshll.u32 %v1930, 16
        %v2165 = vrot.slane %v2163, 5
        %v2166 = vsel %vm1942, %v2161, %v2165
        %v2167 = vshrl.u32 %v1930, 16
        %v2169 = vrot.slane %v2167, 4
        %v2170 = vor.u32 %v2169, %v2165
        %v2171 = vrot.slane %v2170, 4
        %v2173 = vshll.u32 %v1931, 16
        %v2175 = vrot.slane %v2173, 5
        %v2176 = vsel %vm1942, %v2171, %v2175
        %v2177 = vshrl.u32 %v1931, 16
        %v2179 = vrot.slane %v2177, 4
        %v2180 = vor.u32 %v2179, %v2175
        %v2181 = vrot.slane %v2180, 4
        %v2183 = vshll.u32 %v1932, 16
        %v2185 = vrot.slane %v2183, 5
        %v2186 = vsel %vm1942, %v2181, %v2185
        %v2187 = vshrl.u32 %v1932, 16
        %v2189 = vrot.slane %v2187, 4
        %v2190 = vor.u32 %v2189, %v2185
        %v2191 = vrot.slane %v2190, 4
        %v2193 = vshll.u32 %v1933, 16
        %v2195 = vrot.slane %v2193, 5
        %v2196 = vsel %vm1942, %v2191, %v2195
        %v2197 = vshrl.u32 %v1933, 16
        %v2199 = vrot.slane %v2197, 4
        %v2200 = vor.u32 %v2199, %v2195
        %v2201 = vrot.slane %v2200, 4
        %v2203 = vshll.u32 %v1934, 16
        %v2205 = vrot.slane %v2203, 5
        %v2206 = vsel %vm1942, %v2201, %v2205
        %v2207 = vshrl.u32 %v1934, 16
        %v2209 = vrot.slane %v2207, 4
        %v2210 = vor.u32 %v2209, %v2205
        %v2211 = vrot.slane %v2210, 4
        %v2213 = vshll.u32 %v1935, 16
        %v2215 = vrot.slane %v2213, 5
        %v2216 = vsel %vm1942, %v2211, %v2215
        %v2217 = vshrl.u32 %v1935, 16
        %v2219 = vrot.slane %v2217, 4
        %v2220 = vor.u32 %v2219, %v2215
        %v2221 = vrot.slane %v2220, 4
        %v2223 = vshll.u32 %v1936, 16
        %v2225 = vrot.slane %v2223, 5
        %v2226 = vsel %vm1942, %v2221, %v2225
        %v2227 = vshrl.u32 %v1936, 16
        %v2229 = vrot.slane %v2227, 4
        %v2230 = vor.u32 %v2229, %v2225
        %v2231 = vrot.slane %v2230, 4
        %v2233 = vshll.u32 %v1937, 16
        %v2235 = vrot.slane %v2233, 5
        %v2236 = vsel %vm1942, %v2231, %v2235
        %v2237 = vshrl.u32 %v1937, 16
        %v2239 = vrot.slane %v2237, 4
        %v2240 = vor.u32 %v2239, %v2235
        %v2241 = vrot.slane %v2240, 4
        %v2243 = vshll.u32 %v1938, 16
        %v2245 = vrot.slane %v2243, 5
        %v2246 = vsel %vm1942, %v2241, %v2245
        %v2247 = vshrl.u32 %v1938, 16
        %v2249 = vrot.slane %v2247, 4
        %v2250 = vor.u32 %v2249, %v2245
        %v2251 = vrot.slane %v2250, 4
        %v2253 = vshll.u32 %v1939, 16
        %v2255 = vrot.slane %v2253, 5
        %v2256 = vsel %vm1942, %v2251, %v2255
        %v2257 = vshrl.u32 %v1939, 16
        %v2259 = vrot.slane %v2257, 4
        %v2260 = vor.u32 %v2259, %v2255
        %v2261 = vrot.slane %v2260, 4
        %2262 = vrot.lane.b32.xlu0 %v1946, 24
        %v2263 = vpop.permute.xlu0 %2262
        %2264 = vrot.lane.b32.xlu0 %v1956, 24
        %v2265 = vpop.permute.xlu0 %2264
        %2266 = vrot.lane.b32.xlu0 %v1966, 24
        %v2267 = vpop.permute.xlu0 %2266
        %2268 = vrot.lane.b32.xlu0 %v1976, 24
        %v2269 = vpop.permute.xlu0 %2268
        %2270 = vrot.lane.b32.xlu0 %v1986, 24
        %v2271 = vpop.permute.xlu0 %2270
        %2272 = vrot.lane.b32.xlu0 %v1996, 24
        %v2273 = vpop.permute.xlu0 %2272
        %2274 = vrot.lane.b32.xlu0 %v2006, 24
        %v2275 = vpop.permute.xlu0 %2274
        %2276 = vrot.lane.b32.xlu0 %v2016, 24
        %v2277 = vpop.permute.xlu0 %2276
        %2278 = vrot.lane.b32.xlu0 %v2026, 24
        %v2279 = vpop.permute.xlu0 %2278
        %2280 = vrot.lane.b32.xlu0 %v2036, 24
        %v2281 = vpop.permute.xlu0 %2280
        %2282 = vrot.lane.b32.xlu0 %v2046, 24
        %v2283 = vpop.permute.xlu0 %2282
        %2284 = vrot.lane.b32.xlu0 %v2056, 24
        %v2285 = vpop.permute.xlu0 %2284
        %2286 = vrot.lane.b32.xlu0 %v2066, 24
        %v2287 = vpop.permute.xlu0 %2286
        %2288 = vrot.lane.b32.xlu0 %v2076, 24
        %v2289 = vpop.permute.xlu0 %2288
        %2290 = vrot.lane.b32.xlu0 %v2086, 24
        %v2291 = vpop.permute.xlu0 %2290
        %2292 = vrot.lane.b32.xlu0 %v2096, 24
        %v2293 = vpop.permute.xlu0 %2292
        %2294 = vrot.lane.b32.xlu0 %v2106, 24
        %v2295 = vpop.permute.xlu0 %2294
        %2296 = vrot.lane.b32.xlu0 %v2116, 24
        %v2297 = vpop.permute.xlu0 %2296
        %2298 = vrot.lane.b32.xlu0 %v2126, 24
        %v2299 = vpop.permute.xlu0 %2298
        %2300 = vrot.lane.b32.xlu0 %v2136, 24
        %v2301 = vpop.permute.xlu0 %2300
        %2302 = vrot.lane.b32.xlu0 %v2146, 24
        %v2303 = vpop.permute.xlu0 %2302
        %2304 = vrot.lane.b32.xlu0 %v2156, 24
        %v2305 = vpop.permute.xlu0 %2304
        %2306 = vrot.lane.b32.xlu0 %v2166, 24
        %v2307 = vpop.permute.xlu0 %2306
        %2308 = vrot.lane.b32.xlu0 %v2176, 24
        %v2309 = vpop.permute.xlu0 %2308
        %2310 = vrot.lane.b32.xlu0 %v2186, 24
        %v2311 = vpop.permute.xlu0 %2310
        %2312 = vrot.lane.b32.xlu0 %v2196, 24
        %v2313 = vpop.permute.xlu0 %2312
        %2314 = vrot.lane.b32.xlu0 %v2206, 24
        %v2315 = vpop.permute.xlu0 %2314
        %2316 = vrot.lane.b32.xlu0 %v2216, 24
        %v2317 = vpop.permute.xlu0 %2316
        %2318 = vrot.lane.b32.xlu0 %v2226, 24
        %v2319 = vpop.permute.xlu0 %2318
        %2320 = vrot.lane.b32.xlu0 %v2236, 24
        %v2321 = vpop.permute.xlu0 %2320
        %2322 = vrot.lane.b32.xlu0 %v2246, 24
        %v2323 = vpop.permute.xlu0 %2322
        %2324 = vrot.lane.b32.xlu0 %v2256, 24
        %v2325 = vpop.permute.xlu0 %2324
        %2326 = vrot.lane.b32.xlu0 %v2261, 24
        %v2327 = vpop.permute.xlu0 %2326
        %vm2361 = vcmask 289987
        %vm2362 = vsmask.f32 7950
        %vm2363 = vmand %vm2361, %vm2362
        %v2364 = vld [vmem:[#allocation2 + $0x4] sm:$0x8]
        %v2365 = vsel %vm2363, %v2263, %v2364
        %2366 = vst [vmem:[#allocation2 + $0x4] sm:$0x8] %v2365
        %vm2367 = vcmask 289984
        %2368 = vst.msk [vmem:[#allocation2 + $0x8] sm:$0xf] %vm2367, %v2265
        %2369 = vst.msk [vmem:[#allocation2 + $0xc] sm:$0xf] %vm2367, %v2267
        %2370 = vst.msk [vmem:[#allocation2 + $0x10] sm:$0xf] %vm2367, %v2269
        %2371 = vst.msk [vmem:[#allocation2 + $0x14] sm:$0xf] %vm2367, %v2271
        %2372 = vst.msk [vmem:[#allocation2 + $0x18] sm:$0xf] %vm2367, %v2273
        %2373 = vst.msk [vmem:[#allocation2 + $0x1c] sm:$0xf] %vm2367, %v2275
        %2374 = vst.msk [vmem:[#allocation2 + $0x20] sm:$0xf] %vm2367, %v2277
        %2375 = vst.msk [vmem:[#allocation2 + $0x24] sm:$0xf] %vm2367, %v2279
        %2376 = vst.msk [vmem:[#allocation2 + $0x28] sm:$0xf] %vm2367, %v2281
        %2377 = vst.msk [vmem:[#allocation2 + $0x2c] sm:$0xf] %vm2367, %v2283
        %2378 = vst.msk [vmem:[#allocation2 + $0x30] sm:$0xf] %vm2367, %v2285
        %2379 = vst.msk [vmem:[#allocation2 + $0x34] sm:$0xf] %vm2367, %v2287
        %2380 = vst.msk [vmem:[#allocation2 + $0x38] sm:$0xf] %vm2367, %v2289
        %2381 = vst.msk [vmem:[#allocation2 + $0x3c] sm:$0xf] %vm2367, %v2291
        %2382 = vst.msk [vmem:[#allocation2 + $0x40] sm:$0xf] %vm2367, %v2293
        %2383 = vst.msk [vmem:[#allocation2 + $0x44] sm:$0xf] %vm2367, %v2295
        %2384 = vst.msk [vmem:[#allocation2 + $0x48] sm:$0xf] %vm2367, %v2297
        %2385 = vst.msk [vmem:[#allocation2 + $0x4c] sm:$0xf] %vm2367, %v2299
        %2386 = vst.msk [vmem:[#allocation2 + $0x50] sm:$0xf] %vm2367, %v2301
        %2387 = vst.msk [vmem:[#allocation2 + $0x54] sm:$0xf] %vm2367, %v2303
        %2388 = vst.msk [vmem:[#allocation2 + $0x58] sm:$0xf] %vm2367, %v2305
        %2389 = vst.msk [vmem:[#allocation2 + $0x5c] sm:$0xf] %vm2367, %v2307
        %2390 = vst.msk [vmem:[#allocation2 + $0x60] sm:$0xf] %vm2367, %v2309
        %2391 = vst.msk [vmem:[#allocation2 + $0x64] sm:$0xf] %vm2367, %v2311
        %2392 = vst.msk [vmem:[#allocation2 + $0x68] sm:$0xf] %vm2367, %v2313
        %2393 = vst.msk [vmem:[#allocation2 + $0x6c] sm:$0xf] %vm2367, %v2315
        %2394 = vst.msk [vmem:[#allocation2 + $0x70] sm:$0xf] %vm2367, %v2317
        %2395 = vst.msk [vmem:[#allocation2 + $0x74] sm:$0xf] %vm2367, %v2319
        %2396 = vst.msk [vmem:[#allocation2 + $0x78] sm:$0xf] %vm2367, %v2321
        %2397 = vst.msk [vmem:[#allocation2 + $0x7c] sm:$0xf] %vm2367, %v2323
        %2398 = vst.msk [vmem:[#allocation2 + $0x80] sm:$0xf] %vm2367, %v2325
        %vm2399 = vcmask 289984
        %vm2400 = vmand %vm2399, %vm1940
        %v2401 = vld [vmem:[#allocation2 + $0x84] sm:$0xf]
        %v2402 = vsel %vm2400, %v2327, %v2401
        %2403 = vst [vmem:[#allocation2 + $0x84] sm:$0xf] %v2402
        %v2404 = vld [vmem:[#allocation2] sm:$0xf]
        %v2405 = vld [vmem:[#allocation2 + $0x4] sm:$0xf]
        %v2406 = vld [vmem:[#allocation2 + $0x8] sm:$0xf]
        %v2407 = vld [vmem:[#allocation2 + $0xc] sm:$0xf]
        %v2408 = vld [vmem:[#allocation2 + $0x10] sm:$0xf]
        %v2409 = vld [vmem:[#allocation2 + $0x14] sm:$0xf]
        %v2410 = vld [vmem:[#allocation2 + $0x18] sm:$0xf]
        %v2411 = vld [vmem:[#allocation2 + $0x1c] sm:$0xf]
        %v2412 = vld [vmem:[#allocation2 + $0x20] sm:$0xf]
        %v2413 = vld [vmem:[#allocation2 + $0x24] sm:$0xf]
        %v2414 = vld [vmem:[#allocation2 + $0x28] sm:$0xf]
        %v2415 = vld [vmem:[#allocation2 + $0x2c] sm:$0xf]
        %v2416 = vld [vmem:[#allocation2 + $0x30] sm:$0xf]
        %v2417 = vld [vmem:[#allocation2 + $0x34] sm:$0xf]
        %v2418 = vld [vmem:[#allocation2 + $0x38] sm:$0xf]
        %v2419 = vld [vmem:[#allocation2 + $0x3c] sm:$0xf]
        %v2420 = vld [vmem:[#allocation2 + $0x40] sm:$0xf]
        %v2421 = vld [vmem:[#allocation2 + $0x44] sm:$0xf]
        %v2422 = vld [vmem:[#allocation2 + $0x48] sm:$0xf]
        %v2423 = vld [vmem:[#allocation2 + $0x4c] sm:$0xf]
        %v2424 = vld [vmem:[#allocation2 + $0x50] sm:$0xf]
        %v2425 = vld [vmem:[#allocation2 + $0x54] sm:$0xf]
        %v2426 = vld [vmem:[#allocation2 + $0x58] sm:$0xf]
        %v2427 = vld [vmem:[#allocation2 + $0x5c] sm:$0xf]
        %v2428 = vld [vmem:[#allocation2 + $0x60] sm:$0xf]
        %v2429 = vld [vmem:[#allocation2 + $0x64] sm:$0xf]
        %v2430 = vld [vmem:[#allocation2 + $0x68] sm:$0xf]
        %v2431 = vld [vmem:[#allocation2 + $0x6c] sm:$0xf]
        %v2432 = vld [vmem:[#allocation2 + $0x70] sm:$0xf]
        %v2433 = vld [vmem:[#allocation2 + $0x74] sm:$0xf]
        %v2434 = vld [vmem:[#allocation2 + $0x78] sm:$0xf]
        %v2435 = vld [vmem:[#allocation2 + $0x7c] sm:$0xf]
        %v2436 = vld [vmem:[%s1] sm:$0xf]
        %v2437 = vld [vmem:[%s1 + $0x4] sm:$0xf]
        %v2438 = vld [vmem:[%s1 + $0x8] sm:$0xf]
        %v2439 = vld [vmem:[%s1 + $0xc] sm:$0xf]
        %v2440 = vld [vmem:[%s1 + $0x10] sm:$0x3]
        %v2441 = vld [vmem:[#allocation2 + $0x80] sm:$0xf]
        %v2442 = vld [vmem:[#allocation2 + $0x84] sm:$0xf]
        %s2443 = scalar_lea.vmem %s1, 20
        %v2444 = vld [vmem:[%s2443] sm:$0xf]
        %v2445 = vld [vmem:[%s2443 + $0x4] sm:$0xf]
        %v2446 = vld [vmem:[%s2443 + $0x8] sm:$0xf]
        %v2447 = vld [vmem:[%s2443 + $0xc] sm:$0xf]
        %v2448 = vld [vmem:[%s2443 + $0x10] sm:$0x3]
        %v2481 = vunpack.c.l.b16 %v2406
        %v2482 = vunpack.c.l.b16 %v2407
        %v2483 = vunpack.c.l.b16 %v2408
        %v2484 = vunpack.c.l.b16 %v2409
        %v2485 = vunpack.c.l.b16 %v2410
        %v2486 = vunpack.c.l.b16 %v2411
        %v2487 = vunpack.c.l.b16 %v2412
        %v2488 = vunpack.c.l.b16 %v2413
        %v2489 = vunpack.c.l.b16 %v2414
        %v2490 = vunpack.c.l.b16 %v2415
        %v2491 = vunpack.c.l.b16 %v2416
        %v2492 = vunpack.c.l.b16 %v2417
        %v2493 = vunpack.c.l.b16 %v2418
        %v2494 = vunpack.c.l.b16 %v2419
        %v2495 = vunpack.c.l.b16 %v2420
        %v2496 = vunpack.c.l.b16 %v2421
        %v2497 = vunpack.c.l.b16 %v2422
        %v2498 = vunpack.c.l.b16 %v2423
        %v2499 = vunpack.c.l.b16 %v2424
        %v2500 = vunpack.c.l.b16 %v2425
        %v2501 = vunpack.c.l.b16 %v2426
        %v2502 = vunpack.c.l.b16 %v2427
        %v2503 = vunpack.c.l.b16 %v2428
        %v2504 = vunpack.c.l.b16 %v2429
        %v2505 = vunpack.c.l.b16 %v2430
        %v2506 = vunpack.c.l.b16 %v2431
        %v2507 = vunpack.c.l.b16 %v2432
        %v2508 = vunpack.c.l.b16 %v2433
        %v2509 = vunpack.c.l.b16 %v2434
        %v2510 = vunpack.c.l.b16 %v2435
        %v2511 = vunpack.c.l.b16 %v2441
        %v2512 = vunpack.c.l.b16 %v2442
        %v2513 = vpack.c.b16 %v2482, %v2481
        %v2514 = vpack.c.b16 %v2484, %v2483
        %v2515 = vpack.c.b16 %v2486, %v2485
        %v2516 = vpack.c.b16 %v2488, %v2487
        %v2517 = vpack.c.b16 %v2490, %v2489
        %v2518 = vpack.c.b16 %v2492, %v2491
        %v2519 = vpack.c.b16 %v2494, %v2493
        %v2520 = vpack.c.b16 %v2496, %v2495
        %v2521 = vpack.c.b16 %v2498, %v2497
        %v2522 = vpack.c.b16 %v2500, %v2499
        %v2523 = vpack.c.b16 %v2502, %v2501
        %v2524 = vpack.c.b16 %v2504, %v2503
        %v2525 = vpack.c.b16 %v2506, %v2505
        %v2526 = vpack.c.b16 %v2508, %v2507
        %v2527 = vpack.c.b16 %v2510, %v2509
        %v2528 = vpack.c.b16 %v2512, %v2511
        %v2534 = vunpack.c.l.b16 %v2444
        %v2535 = vunpack.c.l.b16 %v2445
        %v2536 = vunpack.c.l.b16 %v2446
        %v2537 = vunpack.c.l.b16 %v2447
        %v2538 = vunpack.c.l.b16 %v2448
        %v2539 = vpack.c.b16 %v2535, %v2534
        %v2540 = vpack.c.b16 %v2537, %v2536
        %v2541 = vpack.c.b16 %v2538, %v2538
        %vm2544 = vcmask 293888
        %v2546 = vsel %vm2544, %v2513, 0
        %v2549 = vsel %vm2544, %v2514, 0
        %v2552 = vsel %vm2544, %v2515, 0
        %v2555 = vsel %vm2544, %v2516, 0
        %v2558 = vsel %vm2544, %v2517, 0
        %v2561 = vsel %vm2544, %v2518, 0
        %v2564 = vsel %vm2544, %v2519, 0
        %v2567 = vsel %vm2544, %v2520, 0
        %v2570 = vsel %vm2544, %v2521, 0
        %v2573 = vsel %vm2544, %v2522, 0
        %v2576 = vsel %vm2544, %v2523, 0
        %v2579 = vsel %vm2544, %v2524, 0
        %v2582 = vsel %vm2544, %v2525, 0
        %v2585 = vsel %vm2544, %v2526, 0
        %v2588 = vsel %vm2544, %v2527, 0
        %v2591 = vsel %vm2544, %v2528, 0
        %vm2593 = vcmask 1041408
        %v2595 = vsel %vm2593, %v2541, 0
        %2597 = vmatprep.subr.bf16.mxu0 0
        %2598 = vmatpush1.bf16.msra.mxu0 %v2539
        %2599 = vmatprep.subr.bf16.mxu0 0
        %2600 = vmatpush1.bf16.msra.mxu0 %v2540
        %2601 = vmatprep.subr.bf16.mxu0 0
        %2602 = vmatpush1.bf16.msra.mxu0 %v2595
        %2603 = vmatprep.subr.bf16.mxu0 0
        %2604 = vmatpush1.bf16.msra.mxu0 0
        %2605 = vmatprep.subr.bf16.mxu0 0
        %2606 = vmatpush1.bf16.msra.mxu0 0
        %2607 = vmatprep.subr.bf16.mxu0 0
        %2608 = vmatpush1.bf16.msra.mxu0 0
        %2609 = vmatprep.subr.bf16.mxu0 0
        %2610 = vmatpush1.bf16.msra.mxu0 0
        %2611 = vmatprep.subr.bf16.mxu0 0
        %2612 = vmatpush1.bf16.msra.mxu0 0
        %2613 = vmatprep.subr.bf16.mxu0 0
        %2614 = vmatpush1.bf16.msra.mxu0 0
        %2615 = vmatprep.subr.bf16.mxu0 0
        %2616 = vmatpush1.bf16.msra.mxu0 0
        %2617 = vmatprep.subr.bf16.mxu0 0
        %2618 = vmatpush1.bf16.msra.mxu0 0
        %2619 = vmatprep.subr.bf16.mxu0 0
        %2620 = vmatpush1.bf16.msra.mxu0 0
        %2621 = vmatprep.subr.bf16.mxu0 0
        %2622 = vmatpush1.bf16.msra.mxu0 0
        %2623 = vmatprep.subr.bf16.mxu0 0
        %2624 = vmatpush1.bf16.msra.mxu0 0
        %2625 = vmatprep.subr.bf16.mxu0 0
        %2626 = vmatpush1.bf16.msra.mxu0 0
        %2627 = vmatprep.subr.bf16.mxu0 0
        %2628 = vmatpush1.bf16.msra.mxu0 0
        %2629 = vmatprep.mubr.bf16.mxu0 0
        %2630 = vmatmul.mubr.bf16.gmra.mrb[0].mxu0 %v2546
        %v2631 = vpop.f32.mrb[0].mxu0
        %v2632 = vadd.f32 0.0, %v2631
        %v2633 = vpop.f32.mrb[0].mxu0
        %v2634 = vpop.f32.mrb[0].mxu0
        %v2635 = vadd.f32 0.0, %v2634
        %v2636 = vpop.f32.mrb[0].mxu0
        %2637 = vmatprep.mubr.bf16.mxu0 0
        %2638 = vmatmul.mubr.bf16.gmra.mrb[0].mxu0 %v2549
        %v2639 = vpop.f32.mrb[0].mxu0
        %v2640 = vadd.f32 0.0, %v2639
        %v2641 = vpop.f32.mrb[0].mxu0
        %v2642 = vpop.f32.mrb[0].mxu0
        %v2643 = vadd.f32 0.0, %v2642
        %v2644 = vpop.f32.mrb[0].mxu0
        %2645 = vmatprep.mubr.bf16.mxu0 0
        %2646 = vmatmul.mubr.bf16.gmra.mrb[0].mxu0 %v2552
        %v2647 = vpop.f32.mrb[0].mxu0
        %v2648 = vadd.f32 0.0, %v2647
        %v2649 = vpop.f32.mrb[0].mxu0
        %v2650 = vpop.f32.mrb[0].mxu0
        %v2651 = vadd.f32 0.0, %v2650
        %v2652 = vpop.f32.mrb[0].mxu0
        %2653 = vmatprep.mubr.bf16.mxu0 0
        %2654 = vmatmul.mubr.bf16.gmra.mrb[0].mxu0 %v2555
        %v2655 = vpop.f32.mrb[0].mxu0
        %v2656 = vadd.f32 0.0, %v2655
        %v2657 = vpop.f32.mrb[0].mxu0
        %v2658 = vpop.f32.mrb[0].mxu0
        %v2659 = vadd.f32 0.0, %v2658
        %v2660 = vpop.f32.mrb[0].mxu0
        %2661 = vmatprep.mubr.bf16.mxu0 0
        %2662 = vmatmul.mubr.bf16.gmra.mrb[0].mxu0 %v2558
        %v2663 = vpop.f32.mrb[0].mxu0
        %v2664 = vadd.f32 0.0, %v2663
        %v2665 = vpop.f32.mrb[0].mxu0
        %v2666 = vpop.f32.mrb[0].mxu0
        %v2667 = vadd.f32 0.0, %v2666
        %v2668 = vpop.f32.mrb[0].mxu0
        %2669 = vmatprep.mubr.bf16.mxu0 0
        %2670 = vmatmul.mubr.bf16.gmra.mrb[0].mxu0 %v2561
        %v2671 = vpop.f32.mrb[0].mxu0
        %v2672 = vadd.f32 0.0, %v2671
        %v2673 = vpop.f32.mrb[0].mxu0
        %v2674 = vpop.f32.mrb[0].mxu0
        %v2675 = vadd.f32 0.0, %v2674
        %v2676 = vpop.f32.mrb[0].mxu0
        %2677 = vmatprep.mubr.bf16.mxu0 0
        %2678 = vmatmul.mubr.bf16.gmra.mrb[0].mxu0 %v2564
        %v2679 = vpop.f32.mrb[0].mxu0
        %v2680 = vadd.f32 0.0, %v2679
        %v2681 = vpop.f32.mrb[0].mxu0
        %v2682 = vpop.f32.mrb[0].mxu0
        %v2683 = vadd.f32 0.0, %v2682
        %v2684 = vpop.f32.mrb[0].mxu0
        %2685 = vmatprep.mubr.bf16.mxu0 0
        %2686 = vmatmul.mubr.bf16.gmra.mrb[0].mxu0 %v2567
        %v2687 = vpop.f32.mrb[0].mxu0
        %v2688 = vadd.f32 0.0, %v2687
        %v2689 = vpop.f32.mrb[0].mxu0
        %v2690 = vpop.f32.mrb[0].mxu0
        %v2691 = vadd.f32 0.0, %v2690
        %v2692 = vpop.f32.mrb[0].mxu0
        %2693 = vmatprep.mubr.bf16.mxu0 0
        %2694 = vmatmul.mubr.bf16.gmra.mrb[0].mxu0 %v2570
        %v2695 = vpop.f32.mrb[0].mxu0
        %v2696 = vadd.f32 0.0, %v2695
        %v2697 = vpop.f32.mrb[0].mxu0
        %v2698 = vpop.f32.mrb[0].mxu0
        %v2699 = vadd.f32 0.0, %v2698
        %v2700 = vpop.f32.mrb[0].mxu0
        %2701 = vmatprep.mubr.bf16.mxu0 0
        %2702 = vmatmul.mubr.bf16.gmra.mrb[0].mxu0 %v2573
        %v2703 = vpop.f32.mrb[0].mxu0
        %v2704 = vadd.f32 0.0, %v2703
        %v2705 = vpop.f32.mrb[0].mxu0
        %v2706 = vpop.f32.mrb[0].mxu0
        %v2707 = vadd.f32 0.0, %v2706
        %v2708 = vpop.f32.mrb[0].mxu0
        %2709 = vmatprep.mubr.bf16.mxu0 0
        %2710 = vmatmul.mubr.bf16.gmra.mrb[0].mxu0 %v2576
        %v2711 = vpop.f32.mrb[0].mxu0
        %v2712 = vadd.f32 0.0, %v2711
        %v2713 = vpop.f32.mrb[0].mxu0
        %v2714 = vpop.f32.mrb[0].mxu0
        %v2715 = vadd.f32 0.0, %v2714
        %v2716 = vpop.f32.mrb[0].mxu0
        %2717 = vmatprep.mubr.bf16.mxu0 0
        %2718 = vmatmul.mubr.bf16.gmra.mrb[0].mxu0 %v2579
        %v2719 = vpop.f32.mrb[0].mxu0
        %v2720 = vadd.f32 0.0, %v2719
        %v2721 = vpop.f32.mrb[0].mxu0
        %v2722 = vpop.f32.mrb[0].mxu0
        %v2723 = vadd.f32 0.0, %v2722
        %v2724 = vpop.f32.mrb[0].mxu0
        %2725 = vmatprep.mubr.bf16.mxu0 0
        %2726 = vmatmul.mubr.bf16.gmra.mrb[0].mxu0 %v2582
        %v2727 = vpop.f32.mrb[0].mxu0
        %v2728 = vadd.f32 0.0, %v2727
        %v2729 = vpop.f32.mrb[0].mxu0
        %v2730 = vpop.f32.mrb[0].mxu0
        %v2731 = vadd.f32 0.0, %v2730
        %v2732 = vpop.f32.mrb[0].mxu0
        %2733 = vmatprep.mubr.bf16.mxu0 0
        %2734 = vmatmul.mubr.bf16.gmra.mrb[0].mxu0 %v2585
        %v2735 = vpop.f32.mrb[0].mxu0
        %v2736 = vadd.f32 0.0, %v2735
        %v2737 = vpop.f32.mrb[0].mxu0
        %v2738 = vpop.f32.mrb[0].mxu0
        %v2739 = vadd.f32 0.0, %v2738
        %v2740 = vpop.f32.mrb[0].mxu0
        %2741 = vmatprep.mubr.bf16.mxu0 0
        %2742 = vmatmul.mubr.bf16.gmra.mrb[0].mxu0 %v2588
        %v2743 = vpop.f32.mrb[0].mxu0
        %v2744 = vadd.f32 0.0, %v2743
        %v2745 = vpop.f32.mrb[0].mxu0
        %v2746 = vpop.f32.mrb[0].mxu0
        %v2747 = vadd.f32 0.0, %v2746
        %v2748 = vpop.f32.mrb[0].mxu0
        %2749 = vmatprep.mubr.bf16.mxu0 0
        %2750 = vmatmul.mubr.bf16.gmra.mrb[0].mxu0 %v2591
        %v2751 = vpop.f32.mrb[0].mxu0
        %v2752 = vadd.f32 0.0, %v2751
        %v2753 = vpop.f32.mrb[0].mxu0
        %v2754 = vpop.f32.mrb[0].mxu0
        %v2755 = vadd.f32 0.0, %v2754
        %v2756 = vpop.f32.mrb[0].mxu0
        %2757 = vdwg.mxu0
        %v2760 = vunpack.c.l.b16 %v2404
        %v2761 = vunpack.c.l.b16 %v2405
        %v2762 = vpack.c.b16 %v2761, %v2760
        %v2768 = vunpack.c.l.b16 %v2436
        %v2769 = vunpack.c.l.b16 %v2437
        %v2770 = vunpack.c.l.b16 %v2438
        %v2771 = vunpack.c.l.b16 %v2439
        %v2772 = vunpack.c.l.b16 %v2440
        %v2773 = vpack.c.b16 %v2769, %v2768
        %v2774 = vpack.c.b16 %v2771, %v2770
        %v2775 = vpack.c.b16 %v2772, %v2772
        %v2779 = vsel %vm2544, %v2762, 0
        %v2782 = vsel %vm2593, %v2775, 0
        %2784 = vmatprep.subr.bf16.mxu0 0
        %2785 = vmatpush1.bf16.msra.mxu0 %v2773
        %2786 = vmatprep.subr.bf16.mxu0 0
        %2787 = vmatpush1.bf16.msra.mxu0 %v2774
        %2788 = vmatprep.subr.bf16.mxu0 0
        %2789 = vmatpush1.bf16.msra.mxu0 %v2782
        %2790 = vmatprep.subr.bf16.mxu0 0
        %2791 = vmatpush1.bf16.msra.mxu0 0
        %2792 = vmatprep.subr.bf16.mxu0 0
        %2793 = vmatpush1.bf16.msra.mxu0 0
        %2794 = vmatprep.subr.bf16.mxu0 0
        %2795 = vmatpush1.bf16.msra.mxu0 0
        %2796 = vmatprep.subr.bf16.mxu0 0
        %2797 = vmatpush1.bf16.msra.mxu0 0
        %2798 = vmatprep.subr.bf16.mxu0 0
        %2799 = vmatpush1.bf16.msra.mxu0 0
        %2800 = vmatprep.subr.bf16.mxu0 0
        %2801 = vmatpush1.bf16.msra.mxu0 0
        %2802 = vmatprep.subr.bf16.mxu0 0
        %2803 = vmatpush1.bf16.msra.mxu0 0
        %2804 = vmatprep.subr.bf16.mxu0 0
        %2805 = vmatpush1.bf16.msra.mxu0 0
        %2806 = vmatprep.subr.bf16.mxu0 0
        %2807 = vmatpush1.bf16.msra.mxu0 0
        %2808 = vmatprep.subr.bf16.mxu0 0
        %2809 = vmatpush1.bf16.msra.mxu0 0
        %2810 = vmatprep.subr.bf16.mxu0 0
        %2811 = vmatpush1.bf16.msra.mxu0 0
        %2812 = vmatprep.subr.bf16.mxu0 0
        %2813 = vmatpush1.bf16.msra.mxu0 0
        %2814 = vmatprep.subr.bf16.mxu0 0
        %2815 = vmatpush1.bf16.msra.mxu0 0
        %2816 = vmatprep.mubr.bf16.mxu0 0
        %2817 = vmatmul.mubr.bf16.gmra.mrb[0].mxu0 %v2779
        %v2818 = vpop.f32.mrb[0].mxu0
        %v2819 = vadd.f32 %v2632, %v2818
        %v2820 = vpop.f32.mrb[0].mxu0
        %v2821 = vpop.f32.mrb[0].mxu0
        %v2822 = vadd.f32 %v2635, %v2821
        %v2823 = vpop.f32.mrb[0].mxu0
        %2824 = vmatprep.mubr.bf16.mxu0 0
        %2825 = vmatmul.mubr.bf16.gmra.mrb[0].mxu0 %v2546
        %v2826 = vpop.f32.mrb[0].mxu0
        %v2827 = vadd.f32 %v2640, %v2826
        %v2828 = vpop.f32.mrb[0].mxu0
        %v2829 = vpop.f32.mrb[0].mxu0
        %v2830 = vadd.f32 %v2643, %v2829
        %v2831 = vpop.f32.mrb[0].mxu0
        %2832 = vmatprep.mubr.bf16.mxu0 0
        %2833 = vmatmul.mubr.bf16.gmra.mrb[0].mxu0 %v2549
        %v2834 = vpop.f32.mrb[0].mxu0
        %v2835 = vadd.f32 %v2648, %v2834
        %v2836 = vpop.f32.mrb[0].mxu0
        %v2837 = vpop.f32.mrb[0].mxu0
        %v2838 = vadd.f32 %v2651, %v2837
        %v2839 = vpop.f32.mrb[0].mxu0
        %2840 = vmatprep.mubr.bf16.mxu0 0
        %2841 = vmatmul.mubr.bf16.gmra.mrb[0].mxu0 %v2552
        %v2842 = vpop.f32.mrb[0].mxu0
        %v2843 = vadd.f32 %v2656, %v2842
        %v2844 = vpop.f32.mrb[0].mxu0
        %v2845 = vpop.f32.mrb[0].mxu0
        %v2846 = vadd.f32 %v2659, %v2845
        %v2847 = vpop.f32.mrb[0].mxu0
        %2848 = vmatprep.mubr.bf16.mxu0 0
        %2849 = vmatmul.mubr.bf16.gmra.mrb[0].mxu0 %v2555
        %v2850 = vpop.f32.mrb[0].mxu0
        %v2851 = vadd.f32 %v2664, %v2850
        %v2852 = vpop.f32.mrb[0].mxu0
        %v2853 = vpop.f32.mrb[0].mxu0
        %v2854 = vadd.f32 %v2667, %v2853
        %v2855 = vpop.f32.mrb[0].mxu0
        %2856 = vmatprep.mubr.bf16.mxu0 0
        %2857 = vmatmul.mubr.bf16.gmra.mrb[0].mxu0 %v2558
        %v2858 = vpop.f32.mrb[0].mxu0
        %v2859 = vadd.f32 %v2672, %v2858
        %v2860 = vpop.f32.mrb[0].mxu0
        %v2861 = vpop.f32.mrb[0].mxu0
        %v2862 = vadd.f32 %v2675, %v2861
        %v2863 = vpop.f32.mrb[0].mxu0
        %2864 = vmatprep.mubr.bf16.mxu0 0
        %2865 = vmatmul.mubr.bf16.gmra.mrb[0].mxu0 %v2561
        %v2866 = vpop.f32.mrb[0].mxu0
        %v2867 = vadd.f32 %v2680, %v2866
        %v2868 = vpop.f32.mrb[0].mxu0
        %v2869 = vpop.f32.mrb[0].mxu0
        %v2870 = vadd.f32 %v2683, %v2869
        %v2871 = vpop.f32.mrb[0].mxu0
        %2872 = vmatprep.mubr.bf16.mxu0 0
        %2873 = vmatmul.mubr.bf16.gmra.mrb[0].mxu0 %v2564
        %v2874 = vpop.f32.mrb[0].mxu0
        %v2875 = vadd.f32 %v2688, %v2874
        %v2876 = vpop.f32.mrb[0].mxu0
        %v2877 = vpop.f32.mrb[0].mxu0
        %v2878 = vadd.f32 %v2691, %v2877
        %v2879 = vpop.f32.mrb[0].mxu0
        %2880 = vmatprep.mubr.bf16.mxu0 0
        %2881 = vmatmul.mubr.bf16.gmra.mrb[0].mxu0 %v2567
        %v2882 = vpop.f32.mrb[0].mxu0
        %v2883 = vadd.f32 %v2696, %v2882
        %v2884 = vpop.f32.mrb[0].mxu0
        %v2885 = vpop.f32.mrb[0].mxu0
        %v2886 = vadd.f32 %v2699, %v2885
        %v2887 = vpop.f32.mrb[0].mxu0
        %2888 = vmatprep.mubr.bf16.mxu0 0
        %2889 = vmatmul.mubr.bf16.gmra.mrb[0].mxu0 %v2570
        %v2890 = vpop.f32.mrb[0].mxu0
        %v2891 = vadd.f32 %v2704, %v2890
        %v2892 = vpop.f32.mrb[0].mxu0
        %v2893 = vpop.f32.mrb[0].mxu0
        %v2894 = vadd.f32 %v2707, %v2893
        %v2895 = vpop.f32.mrb[0].mxu0
        %2896 = vmatprep.mubr.bf16.mxu0 0
        %2897 = vmatmul.mubr.bf16.gmra.mrb[0].mxu0 %v2573
        %v2898 = vpop.f32.mrb[0].mxu0
        %v2899 = vadd.f32 %v2712, %v2898
        %v2900 = vpop.f32.mrb[0].mxu0
        %v2901 = vpop.f32.mrb[0].mxu0
        %v2902 = vadd.f32 %v2715, %v2901
        %v2903 = vpop.f32.mrb[0].mxu0
        %2904 = vmatprep.mubr.bf16.mxu0 0
        %2905 = vmatmul.mubr.bf16.gmra.mrb[0].mxu0 %v2576
        %v2906 = vpop.f32.mrb[0].mxu0
        %v2907 = vadd.f32 %v2720, %v2906
        %v2908 = vpop.f32.mrb[0].mxu0
        %v2909 = vpop.f32.mrb[0].mxu0
        %v2910 = vadd.f32 %v2723, %v2909
        %v2911 = vpop.f32.mrb[0].mxu0
        %2912 = vmatprep.mubr.bf16.mxu0 0
        %2913 = vmatmul.mubr.bf16.gmra.mrb[0].mxu0 %v2579
        %v2914 = vpop.f32.mrb[0].mxu0
        %v2915 = vadd.f32 %v2728, %v2914
        %v2916 = vpop.f32.mrb[0].mxu0
        %v2917 = vpop.f32.mrb[0].mxu0
        %v2918 = vadd.f32 %v2731, %v2917
        %v2919 = vpop.f32.mrb[0].mxu0
        %2920 = vmatprep.mubr.bf16.mxu0 0
        %2921 = vmatmul.mubr.bf16.gmra.mrb[0].mxu0 %v2582
        %v2922 = vpop.f32.mrb[0].mxu0
        %v2923 = vadd.f32 %v2736, %v2922
        %v2924 = vpop.f32.mrb[0].mxu0
        %v2925 = vpop.f32.mrb[0].mxu0
        %v2926 = vadd.f32 %v2739, %v2925
        %v2927 = vpop.f32.mrb[0].mxu0
        %2928 = vmatprep.mubr.bf16.mxu0 0
        %2929 = vmatmul.mubr.bf16.gmra.mrb[0].mxu0 %v2585
        %v2930 = vpop.f32.mrb[0].mxu0
        %v2931 = vadd.f32 %v2744, %v2930
        %v2932 = vpop.f32.mrb[0].mxu0
        %v2933 = vpop.f32.mrb[0].mxu0
        %v2934 = vadd.f32 %v2747, %v2933
        %v2935 = vpop.f32.mrb[0].mxu0
        %2936 = vmatprep.mubr.bf16.mxu0 0
        %2937 = vmatmul.mubr.bf16.gmra.mrb[0].mxu0 %v2588
        %v2938 = vpop.f32.mrb[0].mxu0
        %v2939 = vadd.f32 %v2752, %v2938
        %v2940 = vpop.f32.mrb[0].mxu0
        %v2941 = vpop.f32.mrb[0].mxu0
        %v2942 = vadd.f32 %v2755, %v2941
        %v2943 = vpop.f32.mrb[0].mxu0
        %2944 = vdwg.mxu0
        %v2945 = vld [vmem:[#allocation2 + $0x10] sm:$0xf]
        %v2946 = vld [vmem:[#allocation2 + $0x14] sm:$0xf]
        %v2947 = vld [vmem:[#allocation2 + $0x18] sm:$0xf]
        %v2948 = vld [vmem:[#allocation2 + $0x1c] sm:$0xf]
        %v2949 = vld [vmem:[#allocation2 + $0x20] sm:$0xf]
        %v2950 = vld [vmem:[#allocation2 + $0x24] sm:$0xf]
        %v2951 = vld [vmem:[#allocation2 + $0x28] sm:$0xf]
        %v2952 = vld [vmem:[#allocation2 + $0x2c] sm:$0xf]
        %v2953 = vld [vmem:[#allocation2 + $0x30] sm:$0xf]
        %v2954 = vld [vmem:[#allocation2 + $0x34] sm:$0xf]
        %v2955 = vld [vmem:[#allocation2 + $0x38] sm:$0xf]
        %v2956 = vld [vmem:[#allocation2 + $0x3c] sm:$0xf]
        %v2957 = vld [vmem:[#allocation2 + $0x40] sm:$0xf]
        %v2958 = vld [vmem:[#allocation2 + $0x44] sm:$0xf]
        %v2959 = vld [vmem:[#allocation2 + $0x48] sm:$0xf]
        %v2960 = vld [vmem:[#allocation2 + $0x4c] sm:$0xf]
        %v2961 = vld [vmem:[#allocation2 + $0x50] sm:$0xf]
        %v2962 = vld [vmem:[#allocation2 + $0x54] sm:$0xf]
        %v2963 = vld [vmem:[#allocation2 + $0x58] sm:$0xf]
        %v2964 = vld [vmem:[#allocation2 + $0x5c] sm:$0xf]
        %v2965 = vld [vmem:[#allocation2 + $0x60] sm:$0xf]
        %v2966 = vld [vmem:[#allocation2 + $0x64] sm:$0xf]
        %v2967 = vld [vmem:[#allocation2 + $0x68] sm:$0xf]
        %v2968 = vld [vmem:[#allocation2 + $0x6c] sm:$0xf]
        %v2969 = vld [vmem:[#allocation2 + $0x70] sm:$0xf]
        %v2970 = vld [vmem:[#allocation2 + $0x74] sm:$0xf]
        %v2971 = vld [vmem:[#allocation2 + $0x78] sm:$0xf]
        %v2972 = vld [vmem:[#allocation2 + $0x7c] sm:$0xf]
        %v2973 = vld [vmem:[#allocation2 + $0x80] sm:$0xf]
        %v2974 = vld [vmem:[#allocation2 + $0x84] sm:$0xf]
        %v2975 = vld [vmem:[#allocation2 + $0x88] sm:$0xf]
        %v2976 = vld [vmem:[#allocation2 + $0x8c] sm:$0xf]
        %s2977 = scalar_lea.vmem %s1, 40
        %v2978 = vld [vmem:[%s2977] sm:$0xf]
        %v2979 = vld [vmem:[%s2977 + $0x4] sm:$0xf]
        %v2980 = vld [vmem:[%s2977 + $0x8] sm:$0xf]
        %v2981 = vld [vmem:[%s2977 + $0xc] sm:$0xf]
        %v2982 = vld [vmem:[%s2977 + $0x10] sm:$0x3]
        %v3015 = vunpack.c.l.b16 %v2945
        %v3016 = vunpack.c.l.b16 %v2946
        %v3017 = vunpack.c.l.b16 %v2947
        %v3018 = vunpack.c.l.b16 %v2948
        %v3019 = vunpack.c.l.b16 %v2949
        %v3020 = vunpack.c.l.b16 %v2950
        %v3021 = vunpack.c.l.b16 %v2951
        %v3022 = vunpack.c.l.b16 %v2952
        %v3023 = vunpack.c.l.b16 %v2953
        %v3024 = vunpack.c.l.b16 %v2954
        %v3025 = vunpack.c.l.b16 %v2955
        %v3026 = vunpack.c.l.b16 %v2956
        %v3027 = vunpack.c.l.b16 %v2957
        %v3028 = vunpack.c.l.b16 %v2958
        %v3029 = vunpack.c.l.b16 %v2959
        %v3030 = vunpack.c.l.b16 %v2960
        %v3031 = vunpack.c.l.b16 %v2961
        %v3032 = vunpack.c.l.b16 %v2962
        %v3033 = vunpack.c.l.b16 %v2963
        %v3034 = vunpack.c.l.b16 %v2964
        %v3035 = vunpack.c.l.b16 %v2965
        %v3036 = vunpack.c.l.b16 %v2966
        %v3037 = vunpack.c.l.b16 %v2967
        %v3038 = vunpack.c.l.b16 %v2968
        %v3039 = vunpack.c.l.b16 %v2969
        %v3040 = vunpack.c.l.b16 %v2970
        %v3041 = vunpack.c.l.b16 %v2971
        %v3042 = vunpack.c.l.b16 %v2972
        %v3043 = vunpack.c.l.b16 %v2973
        %v3044 = vunpack.c.l.b16 %v2974
        %v3045 = vunpack.c.l.b16 %v2975
        %v3046 = vunpack.c.l.b16 %v2976
        %v3047 = vpack.c.b16 %v3016, %v3015
        %v3048 = vpack.c.b16 %v3018, %v3017
        %v3049 = vpack.c.b16 %v3020, %v3019
        %v3050 = vpack.c.b16 %v3022, %v3021
        %v3051 = vpack.c.b16 %v3024, %v3023
        %v3052 = vpack.c.b16 %v3026, %v3025
        %v3053 = vpack.c.b16 %v3028, %v3027
        %v3054 = vpack.c.b16 %v3030, %v3029
        %v3055 = vpack.c.b16 %v3032, %v3031
        %v3056 = vpack.c.b16 %v3034, %v3033
        %v3057 = vpack.c.b16 %v3036, %v3035
        %v3058 = vpack.c.b16 %v3038, %v3037
        %v3059 = vpack.c.b16 %v3040, %v3039
        %v3060 = vpack.c.b16 %v3042, %v3041
        %v3061 = vpack.c.b16 %v3044, %v3043
        %v3062 = vpack.c.b16 %v3046, %v3045
        %v3068 = vunpack.c.l.b16 %v2978
        %v3069 = vunpack.c.l.b16 %v2979
        %v3070 = vunpack.c.l.b16 %v2980
        %v3071 = vunpack.c.l.b16 %v2981
        %v3072 = vunpack.c.l.b16 %v2982
        %v3073 = vpack.c.b16 %v3069, %v3068
        %v3074 = vpack.c.b16 %v3071, %v3070
        %v3075 = vpack.c.b16 %v3072, %v3072
        %v3079 = vsel %vm2544, %v3047, 0
        %v3082 = vsel %vm2544, %v3048, 0
        %v3085 = vsel %vm2544, %v3049, 0
        %v3088 = vsel %vm2544, %v3050, 0
        %v3091 = vsel %vm2544, %v3051, 0
        %v3094 = vsel %vm2544, %v3052, 0
        %v3097 = vsel %vm2544, %v3053, 0
        %v3100 = vsel %vm2544, %v3054, 0
        %v3103 = vsel %vm2544, %v3055, 0
        %v3106 = vsel %vm2544, %v3056, 0
        %v3109 = vsel %vm2544, %v3057, 0
        %v3112 = vsel %vm2544, %v3058, 0
        %v3115 = vsel %vm2544, %v3059, 0
        %v3118 = vsel %vm2544, %v3060, 0
        %v3121 = vsel %vm2544, %v3061, 0
        %v3124 = vsel %vm2544, %v3062, 0
        %v3127 = vsel %vm2593, %v3075, 0
        %3129 = vmatprep.subr.bf16.mxu0 0
        %3130 = vmatpush1.bf16.msra.mxu0 %v3073
        %3131 = vmatprep.subr.bf16.mxu0 0
        %3132 = vmatpush1.bf16.msra.mxu0 %v3074
        %3133 = vmatprep.subr.bf16.mxu0 0
        %3134 = vmatpush1.bf16.msra.mxu0 %v3127
        %3135 = vmatprep.subr.bf16.mxu0 0
        %3136 = vmatpush1.bf16.msra.mxu0 0
        %3137 = vmatprep.subr.bf16.mxu0 0
        %3138 = vmatpush1.bf16.msra.mxu0 0
        %3139 = vmatprep.subr.bf16.mxu0 0
        %3140 = vmatpush1.bf16.msra.mxu0 0
        %3141 = vmatprep.subr.bf16.mxu0 0
        %3142 = vmatpush1.bf16.msra.mxu0 0
        %3143 = vmatprep.subr.bf16.mxu0 0
        %3144 = vmatpush1.bf16.msra.mxu0 0
        %3145 = vmatprep.subr.bf16.mxu0 0
        %3146 = vmatpush1.bf16.msra.mxu0 0
        %3147 = vmatprep.subr.bf16.mxu0 0
        %3148 = vmatpush1.bf16.msra.mxu0 0
        %3149 = vmatprep.subr.bf16.mxu0 0
        %3150 = vmatpush1.bf16.msra.mxu0 0
        %3151 = vmatprep.subr.bf16.mxu0 0
        %3152 = vmatpush1.bf16.msra.mxu0 0
        %3153 = vmatprep.subr.bf16.mxu0 0
        %3154 = vmatpush1.bf16.msra.mxu0 0
        %3155 = vmatprep.subr.bf16.mxu0 0
        %3156 = vmatpush1.bf16.msra.mxu0 0
        %3157 = vmatprep.subr.bf16.mxu0 0
        %3158 = vmatpush1.bf16.msra.mxu0 0
        %3159 = vmatprep.subr.bf16.mxu0 0
        %3160 = vmatpush1.bf16.msra.mxu0 0
        %3161 = vmatprep.mubr.bf16.mxu0 0
        %3162 = vmatmul.mubr.bf16.gmra.mrb[0].mxu0 %v3079
        %v3163 = vpop.f32.mrb[0].mxu0
        %v3164 = vadd.f32 0.0, %v3163
        %v3165 = vpop.f32.mrb[0].mxu0
        %v3166 = vpop.f32.mrb[0].mxu0
        %v3167 = vadd.f32 0.0, %v3166
        %v3168 = vpop.f32.mrb[0].mxu0
        %3169 = vmatprep.mubr.bf16.mxu0 0
        %3170 = vmatmul.mubr.bf16.gmra.mrb[0].mxu0 %v3082
        %v3171 = vpop.f32.mrb[0].mxu0
        %v3172 = vadd.f32 0.0, %v3171
        %v3173 = vpop.f32.mrb[0].mxu0
        %v3174 = vpop.f32.mrb[0].mxu0
        %v3175 = vadd.f32 0.0, %v3174
        %v3176 = vpop.f32.mrb[0].mxu0
        %3177 = vmatprep.mubr.bf16.mxu0 0
        %3178 = vmatmul.mubr.bf16.gmra.mrb[0].mxu0 %v3085
        %v3179 = vpop.f32.mrb[0].mxu0
        %v3180 = vadd.f32 0.0, %v3179
        %v3181 = vpop.f32.mrb[0].mxu0
        %v3182 = vpop.f32.mrb[0].mxu0
        %v3183 = vadd.f32 0.0, %v3182
        %v3184 = vpop.f32.mrb[0].mxu0
        %3185 = vmatprep.mubr.bf16.mxu0 0
        %3186 = vmatmul.mubr.bf16.gmra.mrb[0].mxu0 %v3088
        %v3187 = vpop.f32.mrb[0].mxu0
        %v3188 = vadd.f32 0.0, %v3187
        %v3189 = vpop.f32.mrb[0].mxu0
        %v3190 = vpop.f32.mrb[0].mxu0
        %v3191 = vadd.f32 0.0, %v3190
        %v3192 = vpop.f32.mrb[0].mxu0
        %3193 = vmatprep.mubr.bf16.mxu0 0
        %3194 = vmatmul.mubr.bf16.gmra.mrb[0].mxu0 %v3091
        %v3195 = vpop.f32.mrb[0].mxu0
        %v3196 = vadd.f32 0.0, %v3195
        %v3197 = vpop.f32.mrb[0].mxu0
        %v3198 = vpop.f32.mrb[0].mxu0
        %v3199 = vadd.f32 0.0, %v3198
        %v3200 = vpop.f32.mrb[0].mxu0
        %3201 = vmatprep.mubr.bf16.mxu0 0
        %3202 = vmatmul.mubr.bf16.gmra.mrb[0].mxu0 %v3094
        %v3203 = vpop.f32.mrb[0].mxu0
        %v3204 = vadd.f32 0.0, %v3203
        %v3205 = vpop.f32.mrb[0].mxu0
        %v3206 = vpop.f32.mrb[0].mxu0
        %v3207 = vadd.f32 0.0, %v3206
        %v3208 = vpop.f32.mrb[0].mxu0
        %3209 = vmatprep.mubr.bf16.mxu0 0
        %3210 = vmatmul.mubr.bf16.gmra.mrb[0].mxu0 %v3097
        %v3211 = vpop.f32.mrb[0].mxu0
        %v3212 = vadd.f32 0.0, %v3211
        %v3213 = vpop.f32.mrb[0].mxu0
        %v3214 = vpop.f32.mrb[0].mxu0
        %v3215 = vadd.f32 0.0, %v3214
        %v3216 = vpop.f32.mrb[0].mxu0
        %3217 = vmatprep.mubr.bf16.mxu0 0
        %3218 = vmatmul.mubr.bf16.gmra.mrb[0].mxu0 %v3100
        %v3219 = vpop.f32.mrb[0].mxu0
        %v3220 = vadd.f32 0.0, %v3219
        %v3221 = vpop.f32.mrb[0].mxu0
        %v3222 = vpop.f32.mrb[0].mxu0
        %v3223 = vadd.f32 0.0, %v3222
        %v3224 = vpop.f32.mrb[0].mxu0
        %3225 = vmatprep.mubr.bf16.mxu0 0
        %3226 = vmatmul.mubr.bf16.gmra.mrb[0].mxu0 %v3103
        %v3227 = vpop.f32.mrb[0].mxu0
        %v3228 = vadd.f32 0.0, %v3227
        %v3229 = vpop.f32.mrb[0].mxu0
        %v3230 = vpop.f32.mrb[0].mxu0
        %v3231 = vadd.f32 0.0, %v3230
        %v3232 = vpop.f32.mrb[0].mxu0
        %3233 = vmatprep.mubr.bf16.mxu0 0
        %3234 = vmatmul.mubr.bf16.gmra.mrb[0].mxu0 %v3106
        %v3235 = vpop.f32.mrb[0].mxu0
        %v3236 = vadd.f32 0.0, %v3235
        %v3237 = vpop.f32.mrb[0].mxu0
        %v3238 = vpop.f32.mrb[0].mxu0
        %v3239 = vadd.f32 0.0, %v3238
        %v3240 = vpop.f32.mrb[0].mxu0
        %3241 = vmatprep.mubr.bf16.mxu0 0
        %3242 = vmatmul.mubr.bf16.gmra.mrb[0].mxu0 %v3109
        %v3243 = vpop.f32.mrb[0].mxu0
        %v3244 = vadd.f32 0.0, %v3243
        %v3245 = vpop.f32.mrb[0].mxu0
        %v3246 = vpop.f32.mrb[0].mxu0
        %v3247 = vadd.f32 0.0, %v3246
        %v3248 = vpop.f32.mrb[0].mxu0
        %3249 = vmatprep.mubr.bf16.mxu0 0
        %3250 = vmatmul.mubr.bf16.gmra.mrb[0].mxu0 %v3112
        %v3251 = vpop.f32.mrb[0].mxu0
        %v3252 = vadd.f32 0.0, %v3251
        %v3253 = vpop.f32.mrb[0].mxu0
        %v3254 = vpop.f32.mrb[0].mxu0
        %v3255 = vadd.f32 0.0, %v3254
        %v3256 = vpop.f32.mrb[0].mxu0
        %3257 = vmatprep.mubr.bf16.mxu0 0
        %3258 = vmatmul.mubr.bf16.gmra.mrb[0].mxu0 %v3115
        %v3259 = vpop.f32.mrb[0].mxu0
        %v3260 = vadd.f32 0.0, %v3259
        %v3261 = vpop.f32.mrb[0].mxu0
        %v3262 = vpop.f32.mrb[0].mxu0
        %v3263 = vadd.f32 0.0, %v3262
        %v3264 = vpop.f32.mrb[0].mxu0
        %3265 = vmatprep.mubr.bf16.mxu0 0
        %3266 = vmatmul.mubr.bf16.gmra.mrb[0].mxu0 %v3118
        %v3267 = vpop.f32.mrb[0].mxu0
        %v3268 = vadd.f32 0.0, %v3267
        %v3269 = vpop.f32.mrb[0].mxu0
        %v3270 = vpop.f32.mrb[0].mxu0
        %v3271 = vadd.f32 0.0, %v3270
        %v3272 = vpop.f32.mrb[0].mxu0
        %3273 = vmatprep.mubr.bf16.mxu0 0
        %3274 = vmatmul.mubr.bf16.gmra.mrb[0].mxu0 %v3121
        %v3275 = vpop.f32.mrb[0].mxu0
        %v3276 = vadd.f32 0.0, %v3275
        %v3277 = vpop.f32.mrb[0].mxu0
        %v3278 = vpop.f32.mrb[0].mxu0
        %v3279 = vadd.f32 0.0, %v3278
        %v3280 = vpop.f32.mrb[0].mxu0
        %3281 = vmatprep.mubr.bf16.mxu0 0
        %3282 = vmatmul.mubr.bf16.gmra.mrb[0].mxu0 %v3124
        %v3283 = vpop.f32.mrb[0].mxu0
        %v3284 = vadd.f32 0.0, %v3283
        %v3285 = vpop.f32.mrb[0].mxu0
        %v3286 = vpop.f32.mrb[0].mxu0
        %v3287 = vadd.f32 0.0, %v3286
        %v3288 = vpop.f32.mrb[0].mxu0
        %3289 = vdwg.mxu0
        %v3290 = vadd.f32 %v2819, %v3164
        %v3291 = vadd.f32 %v2822, %v3167
        %v3292 = vadd.f32 %v2827, %v3172
        %v3293 = vadd.f32 %v2830, %v3175
        %v3294 = vadd.f32 %v2835, %v3180
        %v3295 = vadd.f32 %v2838, %v3183
        %v3296 = vadd.f32 %v2843, %v3188
        %v3297 = vadd.f32 %v2846, %v3191
        %v3298 = vadd.f32 %v2851, %v3196
        %v3299 = vadd.f32 %v2854, %v3199
        %v3300 = vadd.f32 %v2859, %v3204
        %v3301 = vadd.f32 %v2862, %v3207
        %v3302 = vadd.f32 %v2867, %v3212
        %v3303 = vadd.f32 %v2870, %v3215
        %v3304 = vadd.f32 %v2875, %v3220
        %v3305 = vadd.f32 %v2878, %v3223
        %v3306 = vadd.f32 %v2883, %v3228
        %v3307 = vadd.f32 %v2886, %v3231
        %v3308 = vadd.f32 %v2891, %v3236
        %v3309 = vadd.f32 %v2894, %v3239
        %v3310 = vadd.f32 %v2899, %v3244
        %v3311 = vadd.f32 %v2902, %v3247
        %v3312 = vadd.f32 %v2907, %v3252
        %v3313 = vadd.f32 %v2910, %v3255
        %v3314 = vadd.f32 %v2915, %v3260
        %v3315 = vadd.f32 %v2918, %v3263
        %v3316 = vadd.f32 %v2923, %v3268
        %v3317 = vadd.f32 %v2926, %v3271
        %v3318 = vadd.f32 %v2931, %v3276
        %v3319 = vadd.f32 %v2934, %v3279
        %v3320 = vadd.f32 %v2939, %v3284
        %v3321 = vadd.f32 %v2942, %v3287
        %v3322 = vld [vmem:[%s2] sm:$0x1]
        %v3324 = vlaneseq
        %v3325 = vshrl.u32 %v3324, 7
        %v3326 = vsub.s32 0, %v3325
        %v3327 = vrot.slane %v3322, %v3326
        %v3329 = vadd.f32 %v3290, %v3327
        %v3330 = vadd.f32 %v3291, %v3327
        %v3331 = vadd.f32 %v3292, %v3327
        %v3332 = vadd.f32 %v3293, %v3327
        %v3333 = vadd.f32 %v3294, %v3327
        %v3334 = vadd.f32 %v3295, %v3327
        %v3335 = vadd.f32 %v3296, %v3327
        %v3336 = vadd.f32 %v3297, %v3327
        %v3337 = vadd.f32 %v3298, %v3327
        %v3338 = vadd.f32 %v3299, %v3327
        %v3339 = vadd.f32 %v3300, %v3327
        %v3340 = vadd.f32 %v3301, %v3327
        %v3341 = vadd.f32 %v3302, %v3327
        %v3342 = vadd.f32 %v3303, %v3327
        %v3343 = vadd.f32 %v3304, %v3327
        %v3344 = vadd.f32 %v3305, %v3327
        %v3345 = vadd.f32 %v3306, %v3327
        %v3346 = vadd.f32 %v3307, %v3327
        %v3347 = vadd.f32 %v3308, %v3327
        %v3348 = vadd.f32 %v3309, %v3327
        %v3349 = vadd.f32 %v3310, %v3327
        %v3350 = vadd.f32 %v3311, %v3327
        %v3351 = vadd.f32 %v3312, %v3327
        %v3352 = vadd.f32 %v3313, %v3327
        %v3353 = vadd.f32 %v3314, %v3327
        %v3354 = vadd.f32 %v3315, %v3327
        %v3355 = vadd.f32 %v3316, %v3327
        %v3356 = vadd.f32 %v3317, %v3327
        %v3357 = vadd.f32 %v3318, %v3327
        %v3358 = vadd.f32 %v3319, %v3327
        %v3359 = vadd.f32 %v3320, %v3327
        %v3360 = vadd.f32 %v3321, %v3327
        %v3361 = vmax.f32 %v3329, 0.0
        %v3362 = vmax.f32 %v3330, 0.0
        %v3363 = vmax.f32 %v3331, 0.0
        %v3364 = vmax.f32 %v3332, 0.0
        %v3365 = vmax.f32 %v3333, 0.0
        %v3366 = vmax.f32 %v3334, 0.0
        %v3367 = vmax.f32 %v3335, 0.0
        %v3368 = vmax.f32 %v3336, 0.0
        %v3369 = vmax.f32 %v3337, 0.0
        %v3370 = vmax.f32 %v3338, 0.0
        %v3371 = vmax.f32 %v3339, 0.0
        %v3372 = vmax.f32 %v3340, 0.0
        %v3373 = vmax.f32 %v3341, 0.0
        %v3374 = vmax.f32 %v3342, 0.0
        %v3375 = vmax.f32 %v3343, 0.0
        %v3376 = vmax.f32 %v3344, 0.0
        %v3377 = vmax.f32 %v3345, 0.0
        %v3378 = vmax.f32 %v3346, 0.0
        %v3379 = vmax.f32 %v3347, 0.0
        %v3380 = vmax.f32 %v3348, 0.0
        %v3381 = vmax.f32 %v3349, 0.0
        %v3382 = vmax.f32 %v3350, 0.0
        %v3383 = vmax.f32 %v3351, 0.0
        %v3384 = vmax.f32 %v3352, 0.0
        %v3385 = vmax.f32 %v3353, 0.0
        %v3386 = vmax.f32 %v3354, 0.0
        %v3387 = vmax.f32 %v3355, 0.0
        %v3388 = vmax.f32 %v3356, 0.0
        %v3389 = vmax.f32 %v3357, 0.0
        %v3390 = vmax.f32 %v3358, 0.0
        %v3391 = vmax.f32 %v3359, 0.0
        %v3392 = vmax.f32 %v3360, 0.0
        %vm3393 = vcmask 261120
        %3394 = vst.msk [vmem:[#allocation5] sm:$0xff] %vm3393, %v3361
        %3395 = vst.msk [vmem:[#allocation5 + $0x8] sm:$0xff] %vm3393, %v3362
        %3396 = vst.msk [vmem:[#allocation5 + $0x10] sm:$0xff] %vm3393, %v3363
        %3397 = vst.msk [vmem:[#allocation5 + $0x18] sm:$0xff] %vm3393, %v3364
        %3398 = vst.msk [vmem:[#allocation5 + $0x20] sm:$0xff] %vm3393, %v3365
        %3399 = vst.msk [vmem:[#allocation5 + $0x28] sm:$0xff] %vm3393, %v3366
        %3400 = vst.msk [vmem:[#allocation5 + $0x30] sm:$0xff] %vm3393, %v3367
        %3401 = vst.msk [vmem:[#allocation5 + $0x38] sm:$0xff] %vm3393, %v3368
        %3402 = vst.msk [vmem:[#allocation5 + $0x40] sm:$0xff] %vm3393, %v3369
        %3403 = vst.msk [vmem:[#allocation5 + $0x48] sm:$0xff] %vm3393, %v3370
        %3404 = vst.msk [vmem:[#allocation5 + $0x50] sm:$0xff] %vm3393, %v3371
        %3405 = vst.msk [vmem:[#allocation5 + $0x58] sm:$0xff] %vm3393, %v3372
        %3406 = vst.msk [vmem:[#allocation5 + $0x60] sm:$0xff] %vm3393, %v3373
        %3407 = vst.msk [vmem:[#allocation5 + $0x68] sm:$0xff] %vm3393, %v3374
        %3408 = vst.msk [vmem:[#allocation5 + $0x70] sm:$0xff] %vm3393, %v3375
        %3409 = vst.msk [vmem:[#allocation5 + $0x78] sm:$0xff] %vm3393, %v3376
        %3410 = vst.msk [vmem:[#allocation5 + $0x80] sm:$0xff] %vm3393, %v3377
        %3411 = vst.msk [vmem:[#allocation5 + $0x88] sm:$0xff] %vm3393, %v3378
        %3412 = vst.msk [vmem:[#allocation5 + $0x90] sm:$0xff] %vm3393, %v3379
        %3413 = vst.msk [vmem:[#allocation5 + $0x98] sm:$0xff] %vm3393, %v3380
        %3414 = vst.msk [vmem:[#allocation5 + $0xa0] sm:$0xff] %vm3393, %v3381
        %3415 = vst.msk [vmem:[#allocation5 + $0xa8] sm:$0xff] %vm3393, %v3382
        %3416 = vst.msk [vmem:[#allocation5 + $0xb0] sm:$0xff] %vm3393, %v3383
        %3417 = vst.msk [vmem:[#allocation5 + $0xb8] sm:$0xff] %vm3393, %v3384
        %3418 = vst.msk [vmem:[#allocation5 + $0xc0] sm:$0xff] %vm3393, %v3385
        %3419 = vst.msk [vmem:[#allocation5 + $0xc8] sm:$0xff] %vm3393, %v3386
        %3420 = vst.msk [vmem:[#allocation5 + $0xd0] sm:$0xff] %vm3393, %v3387
        %3421 = vst.msk [vmem:[#allocation5 + $0xd8] sm:$0xff] %vm3393, %v3388
        %3422 = vst.msk [vmem:[#allocation5 + $0xe0] sm:$0xff] %vm3393, %v3389
        %3423 = vst.msk [vmem:[#allocation5 + $0xe8] sm:$0xff] %vm3393, %v3390
        %3424 = vst.msk [vmem:[#allocation5 + $0xf0] sm:$0xff] %vm3393, %v3391
        %3425 = vst.msk [vmem:[#allocation5 + $0xf8] sm:$0xff] %vm3393, %v3392
        %v3426 = vld [vmem:[#allocation5] ss:$2 sm:$0xff]
        %s3427 = scalar_lea.vmem [#allocation5], 16
        %v3428 = vld [vmem:[%s3427] ss:$2 sm:$0xff]
        %s3429 = scalar_lea.vmem [#allocation5], 32
        %v3430 = vld [vmem:[%s3429] ss:$2 sm:$0xff]
        %s3431 = scalar_lea.vmem [#allocation5], 48
        %v3432 = vld [vmem:[%s3431] ss:$2 sm:$0xff]
        %s3433 = scalar_lea.vmem [#allocation5], 64
        %v3434 = vld [vmem:[%s3433] ss:$2 sm:$0xff]
        %s3435 = scalar_lea.vmem [#allocation5], 80
        %v3436 = vld [vmem:[%s3435] ss:$2 sm:$0xff]
        %s3437 = scalar_lea.vmem [#allocation5], 96
        %v3438 = vld [vmem:[%s3437] ss:$2 sm:$0xff]
        %s3439 = scalar_lea.vmem [#allocation5], 112
        %v3440 = vld [vmem:[%s3439] ss:$2 sm:$0xff]
        %s3441 = scalar_lea.vmem [#allocation5], 128
        %v3442 = vld [vmem:[%s3441] ss:$2 sm:$0xff]
        %s3443 = scalar_lea.vmem [#allocation5], 144
        %v3444 = vld [vmem:[%s3443] ss:$2 sm:$0xff]
        %s3445 = scalar_lea.vmem [#allocation5], 160
        %v3446 = vld [vmem:[%s3445] ss:$2 sm:$0xff]
        %s3447 = scalar_lea.vmem [#allocation5], 176
        %v3448 = vld [vmem:[%s3447] ss:$2 sm:$0xff]
        %s3449 = scalar_lea.vmem [#allocation5], 192
        %v3450 = vld [vmem:[%s3449] ss:$2 sm:$0xff]
        %s3451 = scalar_lea.vmem [#allocation5], 208
        %v3452 = vld [vmem:[%s3451] ss:$2 sm:$0xff]
        %s3453 = scalar_lea.vmem [#allocation5], 224
        %v3454 = vld [vmem:[%s3453] ss:$2 sm:$0xff]
        %s3455 = scalar_lea.vmem [#allocation5], 240
        %v3456 = vld [vmem:[%s3455] ss:$2 sm:$0xff]
        %s3457 = scalar_lea.vmem [#allocation5], 1
        %v3458 = vld [vmem:[%s3457] ss:$2 sm:$0xff]
        %s3459 = scalar_lea.vmem [#allocation5], 17
        %v3460 = vld [vmem:[%s3459] ss:$2 sm:$0xff]
        %s3461 = scalar_lea.vmem [#allocation5], 33
        %v3462 = vld [vmem:[%s3461] ss:$2 sm:$0xff]
        %s3463 = scalar_lea.vmem [#allocation5], 49
        %v3464 = vld [vmem:[%s3463] ss:$2 sm:$0xff]
        %s3465 = scalar_lea.vmem [#allocation5], 65
        %v3466 = vld [vmem:[%s3465] ss:$2 sm:$0xff]
        %s3467 = scalar_lea.vmem [#allocation5], 81
        %v3468 = vld [vmem:[%s3467] ss:$2 sm:$0xff]
        %s3469 = scalar_lea.vmem [#allocation5], 97
        %v3470 = vld [vmem:[%s3469] ss:$2 sm:$0xff]
        %s3471 = scalar_lea.vmem [#allocation5], 113
        %v3472 = vld [vmem:[%s3471] ss:$2 sm:$0xff]
        %s3473 = scalar_lea.vmem [#allocation5], 129
        %v3474 = vld [vmem:[%s3473] ss:$2 sm:$0xff]
        %s3475 = scalar_lea.vmem [#allocation5], 145
        %v3476 = vld [vmem:[%s3475] ss:$2 sm:$0xff]
        %s3477 = scalar_lea.vmem [#allocation5], 161
        %v3478 = vld [vmem:[%s3477] ss:$2 sm:$0xff]
        %s3479 = scalar_lea.vmem [#allocation5], 177
        %v3480 = vld [vmem:[%s3479] ss:$2 sm:$0xff]
        %s3481 = scalar_lea.vmem [#allocation5], 193
        %v3482 = vld [vmem:[%s3481] ss:$2 sm:$0xff]
        %s3483 = scalar_lea.vmem [#allocation5], 209
        %v3484 = vld [vmem:[%s3483] ss:$2 sm:$0xff]
        %s3485 = scalar_lea.vmem [#allocation5], 225
        %v3486 = vld [vmem:[%s3485] ss:$2 sm:$0xff]
        %s3487 = scalar_lea.vmem [#allocation5], 241
        %v3488 = vld [vmem:[%s3487] ss:$2 sm:$0xff]
        %v3489 = vmax.f32 %v3426, %v3458
        %v3490 = vmax.f32 %v3428, %v3460
        %v3491 = vmax.f32 %v3430, %v3462
        %v3492 = vmax.f32 %v3432, %v3464
        %v3493 = vmax.f32 %v3434, %v3466
        %v3494 = vmax.f32 %v3436, %v3468
        %v3495 = vmax.f32 %v3438, %v3470
        %v3496 = vmax.f32 %v3440, %v3472
        %v3497 = vmax.f32 %v3442, %v3474
        %v3498 = vmax.f32 %v3444, %v3476
        %v3499 = vmax.f32 %v3446, %v3478
        %v3500 = vmax.f32 %v3448, %v3480
        %v3501 = vmax.f32 %v3450, %v3482
        %v3502 = vmax.f32 %v3452, %v3484
        %v3503 = vmax.f32 %v3454, %v3486
        %v3504 = vmax.f32 %v3456, %v3488
        %v3505 = vmax.f32 %v3489, %v3490
        %3506 = vst.msk [vmem:[#allocation5] sm:$0xff] %vm3393, %v3505
        %v3507 = vmax.f32 %v3491, %v3492
        %3508 = vst.msk [vmem:[#allocation5 + $0x8] sm:$0xff] %vm3393, %v3507
        %v3509 = vmax.f32 %v3493, %v3494
        %3510 = vst.msk [vmem:[#allocation5 + $0x10] sm:$0xff] %vm3393, %v3509
        %v3511 = vmax.f32 %v3495, %v3496
        %3512 = vst.msk [vmem:[#allocation5 + $0x18] sm:$0xff] %vm3393, %v3511
        %v3513 = vmax.f32 %v3497, %v3498
        %3514 = vst.msk [vmem:[#allocation5 + $0x20] sm:$0xff] %vm3393, %v3513
        %v3515 = vmax.f32 %v3499, %v3500
        %3516 = vst.msk [vmem:[#allocation5 + $0x28] sm:$0xff] %vm3393, %v3515
        %v3517 = vmax.f32 %v3501, %v3502
        %3518 = vst.msk [vmem:[#allocation5 + $0x30] sm:$0xff] %vm3393, %v3517
        %v3519 = vmax.f32 %v3503, %v3504
        %3520 = vst.msk [vmem:[#allocation5 + $0x38] sm:$0xff] %vm3393, %v3519
        %v3521 = vld [vmem:[#allocation5] sm:$0xff]
        %v3522 = vld [vmem:[#allocation5 + $0x8] sm:$0xff]
        %v3523 = vld [vmem:[#allocation5 + $0x10] sm:$0xff]
        %v3524 = vld [vmem:[#allocation5 + $0x18] sm:$0xff]
        %v3525 = vld [vmem:[#allocation5 + $0x20] sm:$0xff]
        %v3526 = vld [vmem:[#allocation5 + $0x28] sm:$0xff]
        %v3527 = vld [vmem:[#allocation5 + $0x30] sm:$0xff]
        %v3528 = vld [vmem:[#allocation5 + $0x38] sm:$0xff]
        %vm3529 = vcmask 781312
        %3530 = vst.msk [vmem:[#allocation3] sm:$0xf] %vm3529, 0
        %3531 = vst.msk [vmem:[#allocation3 + $0x4] sm:$0xf] %vm3529, 0
        %3532 = vst.msk [vmem:[#allocation3 + $0x20] sm:$0xf] %vm3529, 0
        %3533 = vst.msk [vmem:[#allocation3 + $0x24] sm:$0xf] %vm3529, 0
        %3534 = vst.msk [vmem:[#allocation3 + $0x28] sm:$0xf] %vm3529, 0
        %v3535 = vld [vmem:[%s6] sm:$0xff]
        %v3536 = vld [vmem:[%s6 + $0x8] sm:$0xff]
        %v3537 = vld [vmem:[%s6 + $0x10] sm:$0xff]
        %v3538 = vld [vmem:[%s6 + $0x18] sm:$0xff]
        %v3539 = vld [vmem:[%s6 + $0x20] sm:$0xff]
        %v3540 = vld [vmem:[%s6 + $0x28] sm:$0xff]
        %v3541 = vld [vmem:[%s6 + $0x30] sm:$0xff]
        %v3542 = vld [vmem:[%s6 + $0x38] sm:$0xff]
        %3544 = vset.pattern.permute.xlu0 0
        %3545 = vperm.xlu0 %3544, %v3535
        %v3546 = vpop.permute.xlu0 %3545
        %3549 = vset.pattern.permute.xlu0 0
        %3550 = vperm.xlu0 %3549, %v3536
        %v3551 = vpop.permute.xlu0 %3550
        %3554 = vset.pattern.permute.xlu0 0
        %3555 = vperm.xlu0 %3554, %v3537
        %v3556 = vpop.permute.xlu0 %3555
        %3559 = vset.pattern.permute.xlu0 0
        %3560 = vperm.xlu0 %3559, %v3538
        %v3561 = vpop.permute.xlu0 %3560
        %3564 = vset.pattern.permute.xlu0 0
        %3565 = vperm.xlu0 %3564, %v3539
        %v3566 = vpop.permute.xlu0 %3565
        %3569 = vset.pattern.permute.xlu0 0
        %3570 = vperm.xlu0 %3569, %v3540
        %v3571 = vpop.permute.xlu0 %3570
        %3574 = vset.pattern.permute.xlu0 0
        %3575 = vperm.xlu0 %3574, %v3541
        %v3576 = vpop.permute.xlu0 %3575
        %3579 = vset.pattern.permute.xlu0 0
        %3580 = vperm.xlu0 %3579, %v3542
        %v3581 = vpop.permute.xlu0 %3580
        %v3583 = vmul.f32 %v3521, %v3546
        %v3584 = vmul.f32 %v3522, %v3551
        %v3585 = vmul.f32 %v3523, %v3556
        %v3586 = vmul.f32 %v3524, %v3561
        %v3587 = vmul.f32 %v3525, %v3566
        %v3588 = vmul.f32 %v3526, %v3571
        %v3589 = vmul.f32 %v3527, %v3576
        %v3590 = vmul.f32 %v3528, %v3581
        %v3591 = vpack.c.bf16 %v3584, %v3583
        %v3592 = vpack.c.bf16 %v3586, %v3585
        %v3593 = vpack.c.bf16 %v3588, %v3587
        %v3594 = vpack.c.bf16 %v3590, %v3589
        %v3599 = vunpack.c.l.b16 %v3591
        %v3600 = vunpack.c.h.b16 %v3591
        %v3601 = vunpack.c.l.b16 %v3592
        %v3602 = vunpack.c.h.b16 %v3592
        %v3603 = vunpack.c.l.b16 %v3593
        %v3604 = vunpack.c.h.b16 %v3593
        %v3605 = vunpack.c.l.b16 %v3594
        %v3606 = vunpack.c.h.b16 %v3594
        %v3607 = vpack.c.b16 %v3599, %v3599
        %v3608 = vpack.c.b16 %v3600, %v3600
        %v3609 = vpack.c.b16 %v3601, %v3601
        %v3610 = vpack.c.b16 %v3602, %v3602
        %v3611 = vpack.c.b16 %v3603, %v3603
        %v3612 = vpack.c.b16 %v3604, %v3604
        %v3613 = vpack.c.b16 %v3605, %v3605
        %v3614 = vpack.c.b16 %v3606, %v3606
        %v3616 = vshrl.u32 %v3607, 16
        %v3618 = vrot.slane %v3616, 7
        %v3619 = vshll.u32 %v3607, 16
        %v3621 = vor.u32 %v3618, %v3619
        %v3622 = vrot.slane %v3618, 4
        %v3624 = vshrl.u32 %v3608, 16
        %v3626 = vrot.slane %v3624, 7
        %v3627 = vshll.u32 %v3608, 16
        %v3629 = vor.u32 %v3626, %v3627
        %v3630 = vsel %vm1030, %v3622, %v3629
        %v3631 = vrot.slane %v3626, 4
        %v3633 = vshrl.u32 %v3609, 16
        %v3635 = vrot.slane %v3633, 7
        %v3636 = vshll.u32 %v3609, 16
        %v3638 = vor.u32 %v3635, %v3636
        %v3639 = vsel %vm1030, %v3631, %v3638
        %v3640 = vrot.slane %v3635, 4
        %v3642 = vshrl.u32 %v3610, 16
        %v3644 = vrot.slane %v3642, 7
        %v3645 = vshll.u32 %v3610, 16
        %v3647 = vor.u32 %v3644, %v3645
        %v3648 = vsel %vm1030, %v3640, %v3647
        %v3649 = vrot.slane %v3644, 4
        %v3651 = vshrl.u32 %v3611, 16
        %v3653 = vrot.slane %v3651, 7
        %v3654 = vshll.u32 %v3611, 16
        %v3656 = vor.u32 %v3653, %v3654
        %v3657 = vsel %vm1030, %v3649, %v3656
        %v3658 = vrot.slane %v3653, 4
        %v3660 = vshrl.u32 %v3612, 16
        %v3662 = vrot.slane %v3660, 7
        %v3663 = vshll.u32 %v3612, 16
        %v3665 = vor.u32 %v3662, %v3663
        %v3666 = vsel %vm1030, %v3658, %v3665
        %v3667 = vrot.slane %v3662, 4
        %v3669 = vshrl.u32 %v3613, 16
        %v3671 = vrot.slane %v3669, 7
        %v3672 = vshll.u32 %v3613, 16
        %v3674 = vor.u32 %v3671, %v3672
        %v3675 = vsel %vm1030, %v3667, %v3674
        %v3676 = vrot.slane %v3671, 4
        %v3678 = vshrl.u32 %v3614, 16
        %v3680 = vrot.slane %v3678, 7
        %v3681 = vshll.u32 %v3614, 16
        %v3683 = vor.u32 %v3680, %v3681
        %v3684 = vsel %vm1030, %v3676, %v3683
        %v3685 = vrot.slane %v3680, 4
        %vm3695 = vcmask 257024
        %vm3696 = vmand %vm3695, %vm1352
        %v3697 = vld [vmem:[#allocation3 + $0x4] sm:$0xf]
        %v3698 = vsel %vm3696, %v3621, %v3697
        %3699 = vst [vmem:[#allocation3 + $0x4] sm:$0xf] %v3698
        %vm3700 = vcmask 257024
        %3701 = vst.msk [vmem:[#allocation3 + $0x8] sm:$0xf] %vm3700, %v3630
        %3702 = vst.msk [vmem:[#allocation3 + $0xc] sm:$0xf] %vm3700, %v3639
        %3703 = vst.msk [vmem:[#allocation3 + $0x10] sm:$0xf] %vm3700, %v3648
        %3704 = vst.msk [vmem:[#allocation3 + $0x14] sm:$0xf] %vm3700, %v3657
        %3705 = vst.msk [vmem:[#allocation3 + $0x18] sm:$0xf] %vm3700, %v3666
        %3706 = vst.msk [vmem:[#allocation3 + $0x1c] sm:$0xf] %vm3700, %v3675
        %3707 = vst.msk [vmem:[#allocation3 + $0x20] sm:$0xf] %vm3700, %v3684
        %vm3708 = vcmask 253952
        %vm3709 = vmand %vm3708, %vm1028
        %v3710 = vld [vmem:[#allocation3 + $0x24] sm:$0x1]
        %v3711 = vsel %vm3709, %v3685, %v3710
        %3712 = vst [vmem:[#allocation3 + $0x24] sm:$0x1] %v3711
        %v3713 = vpack.c.bf16 %v3522, %v3521
        %v3714 = vpack.c.bf16 %v3524, %v3523
        %v3715 = vpack.c.bf16 %v3526, %v3525
        %v3716 = vpack.c.bf16 %v3528, %v3527
        %v3721 = vunpack.c.l.b16 %v3713
        %v3722 = vunpack.c.h.b16 %v3713
        %v3723 = vunpack.c.l.b16 %v3714
        %v3724 = vunpack.c.h.b16 %v3714
        %v3725 = vunpack.c.l.b16 %v3715
        %v3726 = vunpack.c.h.b16 %v3715
        %v3727 = vunpack.c.l.b16 %v3716
        %v3728 = vunpack.c.h.b16 %v3716
        %v3729 = vpack.c.b16 %v3721, %v3721
        %v3730 = vpack.c.b16 %v3722, %v3722
        %v3731 = vpack.c.b16 %v3723, %v3723
        %v3732 = vpack.c.b16 %v3724, %v3724
        %v3733 = vpack.c.b16 %v3725, %v3725
        %v3734 = vpack.c.b16 %v3726, %v3726
        %v3735 = vpack.c.b16 %v3727, %v3727
        %v3736 = vpack.c.b16 %v3728, %v3728
        %3737 = vrot.lane.b32.xlu0 %v3729, 32
        %v3738 = vpop.permute.xlu0 %3737
        %3739 = vrot.lane.b32.xlu0 %v3730, 32
        %v3740 = vpop.permute.xlu0 %3739
        %3741 = vrot.lane.b32.xlu0 %v3731, 32
        %v3742 = vpop.permute.xlu0 %3741
        %3743 = vrot.lane.b32.xlu0 %v3732, 32
        %v3744 = vpop.permute.xlu0 %3743
        %3745 = vrot.lane.b32.xlu0 %v3733, 32
        %v3746 = vpop.permute.xlu0 %3745
        %3747 = vrot.lane.b32.xlu0 %v3734, 32
        %v3748 = vpop.permute.xlu0 %3747
        %3749 = vrot.lane.b32.xlu0 %v3735, 32
        %v3750 = vpop.permute.xlu0 %3749
        %3751 = vrot.lane.b32.xlu0 %v3736, 32
        %v3752 = vpop.permute.xlu0 %3751
        %vm3761 = vcmask 519424
        %3762 = vst.msk [vmem:[#allocation3 + $0x4] sm:$0xf] %vm3761, %v3738
        %3763 = vst.msk [vmem:[#allocation3 + $0x8] sm:$0xf] %vm3761, %v3740
        %3764 = vst.msk [vmem:[#allocation3 + $0xc] sm:$0xf] %vm3761, %v3742
        %3765 = vst.msk [vmem:[#allocation3 + $0x10] sm:$0xf] %vm3761, %v3744
        %3766 = vst.msk [vmem:[#allocation3 + $0x14] sm:$0xf] %vm3761, %v3746
        %3767 = vst.msk [vmem:[#allocation3 + $0x18] sm:$0xf] %vm3761, %v3748
        %3768 = vst.msk [vmem:[#allocation3 + $0x1c] sm:$0xf] %vm3761, %v3750
        %3769 = vst.msk [vmem:[#allocation3 + $0x20] sm:$0xf] %vm3761, %v3752
        %s3770 = scalar_lea.vmem %s6, 64
        %v3771 = vld [vmem:[%s3770] sm:$0xff]
        %v3772 = vld [vmem:[%s3770 + $0x8] sm:$0xff]
        %v3773 = vld [vmem:[%s3770 + $0x10] sm:$0xff]
        %v3774 = vld [vmem:[%s3770 + $0x18] sm:$0xff]
        %v3775 = vld [vmem:[%s3770 + $0x20] sm:$0xff]
        %v3776 = vld [vmem:[%s3770 + $0x28] sm:$0xff]
        %v3777 = vld [vmem:[%s3770 + $0x30] sm:$0xff]
        %v3778 = vld [vmem:[%s3770 + $0x38] sm:$0xff]
        %3780 = vset.pattern.permute.xlu0 0
        %3781 = vperm.xlu0 %3780, %v3771
        %v3782 = vpop.permute.xlu0 %3781
        %3785 = vset.pattern.permute.xlu0 0
        %3786 = vperm.xlu0 %3785, %v3772
        %v3787 = vpop.permute.xlu0 %3786
        %3790 = vset.pattern.permute.xlu0 0
        %3791 = vperm.xlu0 %3790, %v3773
        %v3792 = vpop.permute.xlu0 %3791
        %3795 = vset.pattern.permute.xlu0 0
        %3796 = vperm.xlu0 %3795, %v3774
        %v3797 = vpop.permute.xlu0 %3796
        %3800 = vset.pattern.permute.xlu0 0
        %3801 = vperm.xlu0 %3800, %v3775
        %v3802 = vpop.permute.xlu0 %3801
        %3805 = vset.pattern.permute.xlu0 0
        %3806 = vperm.xlu0 %3805, %v3776
        %v3807 = vpop.permute.xlu0 %3806
        %3810 = vset.pattern.permute.xlu0 0
        %3811 = vperm.xlu0 %3810, %v3777
        %v3812 = vpop.permute.xlu0 %3811
        %3815 = vset.pattern.permute.xlu0 0
        %3816 = vperm.xlu0 %3815, %v3778
        %v3817 = vpop.permute.xlu0 %3816
        %v3819 = vmul.f32 %v3521, %v3782
        %v3820 = vmul.f32 %v3522, %v3787
        %v3821 = vmul.f32 %v3523, %v3792
        %v3822 = vmul.f32 %v3524, %v3797
        %v3823 = vmul.f32 %v3525, %v3802
        %v3824 = vmul.f32 %v3526, %v3807
        %v3825 = vmul.f32 %v3527, %v3812
        %v3826 = vmul.f32 %v3528, %v3817
        %v3827 = vpack.c.bf16 %v3820, %v3819
        %v3828 = vpack.c.bf16 %v3822, %v3821
        %v3829 = vpack.c.bf16 %v3824, %v3823
        %v3830 = vpack.c.bf16 %v3826, %v3825
        %v3835 = vunpack.c.l.b16 %v3827
        %v3836 = vunpack.c.h.b16 %v3827
        %v3837 = vunpack.c.l.b16 %v3828
        %v3838 = vunpack.c.h.b16 %v3828
        %v3839 = vunpack.c.l.b16 %v3829
        %v3840 = vunpack.c.h.b16 %v3829
        %v3841 = vunpack.c.l.b16 %v3830
        %v3842 = vunpack.c.h.b16 %v3830
        %v3843 = vpack.c.b16 %v3835, %v3835
        %v3844 = vpack.c.b16 %v3836, %v3836
        %v3845 = vpack.c.b16 %v3837, %v3837
        %v3846 = vpack.c.b16 %v3838, %v3838
        %v3847 = vpack.c.b16 %v3839, %v3839
        %v3848 = vpack.c.b16 %v3840, %v3840
        %v3849 = vpack.c.b16 %v3841, %v3841
        %v3850 = vpack.c.b16 %v3842, %v3842
        %v3852 = vshll.u32 %v3843, 16
        %v3854 = vrot.slane %v3852, 5
        %v3855 = vshrl.u32 %v3843, 16
        %v3857 = vrot.slane %v3855, 4
        %v3858 = vor.u32 %v3857, %v3854
        %v3859 = vrot.slane %v3858, 4
        %v3861 = vshll.u32 %v3844, 16
        %v3863 = vrot.slane %v3861, 5
        %v3864 = vsel %vm1942, %v3859, %v3863
        %v3865 = vshrl.u32 %v3844, 16
        %v3867 = vrot.slane %v3865, 4
        %v3868 = vor.u32 %v3867, %v3863
        %v3869 = vrot.slane %v3868, 4
        %v3871 = vshll.u32 %v3845, 16
        %v3873 = vrot.slane %v3871, 5
        %v3874 = vsel %vm1942, %v3869, %v3873
        %v3875 = vshrl.u32 %v3845, 16
        %v3877 = vrot.slane %v3875, 4
        %v3878 = vor.u32 %v3877, %v3873
        %v3879 = vrot.slane %v3878, 4
        %v3881 = vshll.u32 %v3846, 16
        %v3883 = vrot.slane %v3881, 5
        %v3884 = vsel %vm1942, %v3879, %v3883
        %v3885 = vshrl.u32 %v3846, 16
        %v3887 = vrot.slane %v3885, 4
        %v3888 = vor.u32 %v3887, %v3883
        %v3889 = vrot.slane %v3888, 4
        %v3891 = vshll.u32 %v3847, 16
        %v3893 = vrot.slane %v3891, 5
        %v3894 = vsel %vm1942, %v3889, %v3893
        %v3895 = vshrl.u32 %v3847, 16
        %v3897 = vrot.slane %v3895, 4
        %v3898 = vor.u32 %v3897, %v3893
        %v3899 = vrot.slane %v3898, 4
        %v3901 = vshll.u32 %v3848, 16
        %v3903 = vrot.slane %v3901, 5
        %v3904 = vsel %vm1942, %v3899, %v3903
        %v3905 = vshrl.u32 %v3848, 16
        %v3907 = vrot.slane %v3905, 4
        %v3908 = vor.u32 %v3907, %v3903
        %v3909 = vrot.slane %v3908, 4
        %v3911 = vshll.u32 %v3849, 16
        %v3913 = vrot.slane %v3911, 5
        %v3914 = vsel %vm1942, %v3909, %v3913
        %v3915 = vshrl.u32 %v3849, 16
        %v3917 = vrot.slane %v3915, 4
        %v3918 = vor.u32 %v3917, %v3913
        %v3919 = vrot.slane %v3918, 4
        %v3921 = vshll.u32 %v3850, 16
        %v3923 = vrot.slane %v3921, 5
        %v3924 = vsel %vm1942, %v3919, %v3923
        %v3925 = vshrl.u32 %v3850, 16
        %v3927 = vrot.slane %v3925, 4
        %v3928 = vor.u32 %v3927, %v3923
        %v3929 = vrot.slane %v3928, 4
        %3930 = vrot.lane.b32.xlu0 %v3854, 64
        %v3931 = vpop.permute.xlu0 %3930
        %3932 = vrot.lane.b32.xlu0 %v3864, 64
        %v3933 = vpop.permute.xlu0 %3932
        %3934 = vrot.lane.b32.xlu0 %v3874, 64
        %v3935 = vpop.permute.xlu0 %3934
        %3936 = vrot.lane.b32.xlu0 %v3884, 64
        %v3937 = vpop.permute.xlu0 %3936
        %3938 = vrot.lane.b32.xlu0 %v3894, 64
        %v3939 = vpop.permute.xlu0 %3938
        %3940 = vrot.lane.b32.xlu0 %v3904, 64
        %v3941 = vpop.permute.xlu0 %3940
        %3942 = vrot.lane.b32.xlu0 %v3914, 64
        %v3943 = vpop.permute.xlu0 %3942
        %3944 = vrot.lane.b32.xlu0 %v3924, 64
        %v3945 = vpop.permute.xlu0 %3944
        %3946 = vrot.lane.b32.xlu0 %v3929, 64
        %v3947 = vpop.permute.xlu0 %3946
        %vm3957 = vcmask 781827
        %vm3958 = vmand %vm3957, %vm2362
        %v3959 = vld [vmem:[#allocation3] sm:$0x8]
        %v3960 = vsel %vm3958, %v3931, %v3959
        %3961 = vst [vmem:[#allocation3] sm:$0x8] %v3960
        %vm3962 = vcmask 781824
        %3963 = vst.msk [vmem:[#allocation3 + $0x4] sm:$0xf] %vm3962, %v3933
        %3964 = vst.msk [vmem:[#allocation3 + $0x8] sm:$0xf] %vm3962, %v3935
        %3965 = vst.msk [vmem:[#allocation3 + $0xc] sm:$0xf] %vm3962, %v3937
        %3966 = vst.msk [vmem:[#allocation3 + $0x10] sm:$0xf] %vm3962, %v3939
        %3967 = vst.msk [vmem:[#allocation3 + $0x14] sm:$0xf] %vm3962, %v3941
        %3968 = vst.msk [vmem:[#allocation3 + $0x18] sm:$0xf] %vm3962, %v3943
        %3969 = vst.msk [vmem:[#allocation3 + $0x1c] sm:$0xf] %vm3962, %v3945
        %vm3970 = vcmask 781824
        %vm3971 = vmand %vm3970, %vm1940
        %v3972 = vld [vmem:[#allocation3 + $0x20] sm:$0xf]
        %v3973 = vsel %vm3971, %v3947, %v3972
        %3974 = vst [vmem:[#allocation3 + $0x20] sm:$0xf] %v3973
        %v3975 = vld [vmem:[#allocation3] sm:$0xf]
        %v3976 = vld [vmem:[#allocation3 + $0x4] sm:$0xf]
        %v3977 = vld [vmem:[#allocation3 + $0x8] sm:$0xf]
        %v3978 = vld [vmem:[#allocation3 + $0xc] sm:$0xf]
        %v3979 = vld [vmem:[#allocation3 + $0x10] sm:$0xf]
        %v3980 = vld [vmem:[#allocation3 + $0x14] sm:$0xf]
        %v3981 = vld [vmem:[#allocation3 + $0x18] sm:$0xf]
        %v3982 = vld [vmem:[#allocation3 + $0x1c] sm:$0xf]
        %v3983 = vld [vmem:[%s4] sm:$0xf]
        %v3984 = vld [vmem:[%s4 + $0x4] sm:$0xf]
        %v3985 = vld [vmem:[%s4 + $0x8] sm:$0xf]
        %v3986 = vld [vmem:[%s4 + $0xc] sm:$0xf]
        %v3987 = vld [vmem:[%s4 + $0x10] sm:$0xf]
        %v3988 = vld [vmem:[%s4 + $0x14] sm:$0xf]
        %v3989 = vld [vmem:[%s4 + $0x18] sm:$0xf]
        %v3990 = vld [vmem:[%s4 + $0x1c] sm:$0xf]
        %v3991 = vld [vmem:[%s4 + $0x20] sm:$0xf]
        %v3992 = vld [vmem:[%s4 + $0x24] sm:$0xf]
        %v3993 = vld [vmem:[%s4 + $0x28] sm:$0xf]
        %v3994 = vld [vmem:[%s4 + $0x2c] sm:$0xf]
        %v3995 = vld [vmem:[#allocation3 + $0x20] sm:$0xf]
        %s3996 = scalar_lea.vmem %s4, 48
        %v3997 = vld [vmem:[%s3996] sm:$0xf]
        %v3998 = vld [vmem:[%s3996 + $0x4] sm:$0xf]
        %v3999 = vld [vmem:[%s3996 + $0x8] sm:$0xf]
        %v4000 = vld [vmem:[%s3996 + $0xc] sm:$0xf]
        %v4001 = vld [vmem:[%s3996 + $0x10] sm:$0xf]
        %v4002 = vld [vmem:[%s3996 + $0x14] sm:$0xf]
        %v4003 = vld [vmem:[%s3996 + $0x18] sm:$0xf]
        %v4004 = vld [vmem:[%s3996 + $0x1c] sm:$0xf]
        %v4005 = vld [vmem:[%s3996 + $0x20] sm:$0xf]
        %v4006 = vld [vmem:[%s3996 + $0x24] sm:$0xf]
        %v4007 = vld [vmem:[%s3996 + $0x28] sm:$0xf]
        %v4008 = vld [vmem:[%s3996 + $0x2c] sm:$0xf]
        %v4017 = vunpack.c.l.b16 %v3976
        %v4018 = vunpack.c.l.b16 %v3977
        %v4019 = vunpack.c.l.b16 %v3978
        %v4020 = vunpack.c.l.b16 %v3979
        %v4021 = vunpack.c.l.b16 %v3980
        %v4022 = vunpack.c.l.b16 %v3981
        %v4023 = vunpack.c.l.b16 %v3982
        %v4024 = vunpack.c.l.b16 %v3995
        %v4025 = vpack.c.b16 %v4018, %v4017
        %v4026 = vpack.c.b16 %v4020, %v4019
        %v4027 = vpack.c.b16 %v4022, %v4021
        %v4028 = vpack.c.b16 %v4024, %v4023
        %v4041 = vunpack.c.l.b16 %v3997
        %v4042 = vunpack.c.l.b16 %v3998
        %v4043 = vunpack.c.l.b16 %v3999
        %v4044 = vunpack.c.l.b16 %v4000
        %v4045 = vunpack.c.l.b16 %v4001
        %v4046 = vunpack.c.l.b16 %v4002
        %v4047 = vunpack.c.l.b16 %v4003
        %v4048 = vunpack.c.l.b16 %v4004
        %v4049 = vunpack.c.l.b16 %v4005
        %v4050 = vunpack.c.l.b16 %v4006
        %v4051 = vunpack.c.l.b16 %v4007
        %v4052 = vunpack.c.l.b16 %v4008
        %v4053 = vpack.c.b16 %v4042, %v4041
        %v4054 = vpack.c.b16 %v4044, %v4043
        %v4055 = vpack.c.b16 %v4046, %v4045
        %v4056 = vpack.c.b16 %v4048, %v4047
        %v4057 = vpack.c.b16 %v4050, %v4049
        %v4058 = vpack.c.b16 %v4052, %v4051
        %vm4065 = vcmask 785408
        %v4067 = vsel %vm4065, %v4025, 0
        %v4070 = vsel %vm4065, %v4026, 0
        %v4073 = vsel %vm4065, %v4027, 0
        %v4076 = vsel %vm4065, %v4028, 0
        %4078 = vmatprep.subr.bf16.mxu0 0
        %4079 = vmatpush1.bf16.msra.mxu0 %v4053
        %4080 = vmatprep.subr.bf16.mxu0 0
        %4081 = vmatpush1.bf16.msra.mxu0 %v4054
        %4082 = vmatprep.subr.bf16.mxu0 0
        %4083 = vmatpush1.bf16.msra.mxu0 %v4055
        %4084 = vmatprep.subr.bf16.mxu0 0
        %4085 = vmatpush1.bf16.msra.mxu0 %v4056
        %4086 = vmatprep.subr.bf16.mxu0 0
        %4087 = vmatpush1.bf16.msra.mxu0 %v4057
        %4088 = vmatprep.subr.bf16.mxu0 0
        %4089 = vmatpush1.bf16.msra.mxu0 %v4058
        %4090 = vmatprep.subr.bf16.mxu0 0
        %4091 = vmatpush1.bf16.msra.mxu0 0
        %4092 = vmatprep.subr.bf16.mxu0 0
        %4093 = vmatpush1.bf16.msra.mxu0 0
        %4094 = vmatprep.subr.bf16.mxu0 0
        %4095 = vmatpush1.bf16.msra.mxu0 0
        %4096 = vmatprep.subr.bf16.mxu0 0
        %4097 = vmatpush1.bf16.msra.mxu0 0
        %4098 = vmatprep.subr.bf16.mxu0 0
        %4099 = vmatpush1.bf16.msra.mxu0 0
        %4100 = vmatprep.subr.bf16.mxu0 0
        %4101 = vmatpush1.bf16.msra.mxu0 0
        %4102 = vmatprep.subr.bf16.mxu0 0
        %4103 = vmatpush1.bf16.msra.mxu0 0
        %4104 = vmatprep.subr.bf16.mxu0 0
        %4105 = vmatpush1.bf16.msra.mxu0 0
        %4106 = vmatprep.subr.bf16.mxu0 0
        %4107 = vmatpush1.bf16.msra.mxu0 0
        %4108 = vmatprep.subr.bf16.mxu0 0
        %4109 = vmatpush1.bf16.msra.mxu0 0
        %4110 = vmatprep.mubr.bf16.mxu0 0
        %4111 = vmatmul.mubr.bf16.gmra.mrb[0].mxu0 %v4067
        %v4112 = vpop.f32.mrb[0].mxu0
        %v4113 = vadd.f32 0.0, %v4112
        %v4114 = vpop.f32.mrb[0].mxu0
        %v4115 = vpop.f32.mrb[0].mxu0
        %v4116 = vadd.f32 0.0, %v4115
        %v4117 = vpop.f32.mrb[0].mxu0
        %4118 = vmatprep.mubr.bf16.mxu0 0
        %4119 = vmatmul.mubr.bf16.gmra.mrb[0].mxu0 %v4070
        %v4120 = vpop.f32.mrb[0].mxu0
        %v4121 = vadd.f32 0.0, %v4120
        %v4122 = vpop.f32.mrb[0].mxu0
        %v4123 = vpop.f32.mrb[0].mxu0
        %v4124 = vadd.f32 0.0, %v4123
        %v4125 = vpop.f32.mrb[0].mxu0
        %4126 = vmatprep.mubr.bf16.mxu0 0
        %4127 = vmatmul.mubr.bf16.gmra.mrb[0].mxu0 %v4073
        %v4128 = vpop.f32.mrb[0].mxu0
        %v4129 = vadd.f32 0.0, %v4128
        %v4130 = vpop.f32.mrb[0].mxu0
        %v4131 = vpop.f32.mrb[0].mxu0
        %v4132 = vadd.f32 0.0, %v4131
        %v4133 = vpop.f32.mrb[0].mxu0
        %4134 = vmatprep.mubr.bf16.mxu0 0
        %4135 = vmatmul.mubr.bf16.gmra.mrb[0].mxu0 %v4076
        %v4136 = vpop.f32.mrb[0].mxu0
        %v4137 = vadd.f32 0.0, %v4136
        %v4138 = vpop.f32.mrb[0].mxu0
        %v4139 = vpop.f32.mrb[0].mxu0
        %v4140 = vadd.f32 0.0, %v4139
        %v4141 = vpop.f32.mrb[0].mxu0
        %4142 = vdwg.mxu0
        %v4144 = vunpack.c.l.b16 %v3975
        %v4145 = vpack.c.b16 %v4017, %v4144
        %v4146 = vpack.c.b16 %v4019, %v4018
        %v4147 = vpack.c.b16 %v4021, %v4020
        %v4148 = vpack.c.b16 %v4023, %v4022
        %v4161 = vunpack.c.l.b16 %v3983
        %v4162 = vunpack.c.l.b16 %v3984
        %v4163 = vunpack.c.l.b16 %v3985
        %v4164 = vunpack.c.l.b16 %v3986
        %v4165 = vunpack.c.l.b16 %v3987
        %v4166 = vunpack.c.l.b16 %v3988
        %v4167 = vunpack.c.l.b16 %v3989
        %v4168 = vunpack.c.l.b16 %v3990
        %v4169 = vunpack.c.l.b16 %v3991
        %v4170 = vunpack.c.l.b16 %v3992
        %v4171 = vunpack.c.l.b16 %v3993
        %v4172 = vunpack.c.l.b16 %v3994
        %v4173 = vpack.c.b16 %v4162, %v4161
        %v4174 = vpack.c.b16 %v4164, %v4163
        %v4175 = vpack.c.b16 %v4166, %v4165
        %v4176 = vpack.c.b16 %v4168, %v4167
        %v4177 = vpack.c.b16 %v4170, %v4169
        %v4178 = vpack.c.b16 %v4172, %v4171
        %v4186 = vsel %vm4065, %v4145, 0
        %v4189 = vsel %vm4065, %v4146, 0
        %v4192 = vsel %vm4065, %v4147, 0
        %v4195 = vsel %vm4065, %v4148, 0
        %4197 = vmatprep.subr.bf16.mxu0 0
        %4198 = vmatpush1.bf16.msra.mxu0 %v4173
        %4199 = vmatprep.subr.bf16.mxu0 0
        %4200 = vmatpush1.bf16.msra.mxu0 %v4174
        %4201 = vmatprep.subr.bf16.mxu0 0
        %4202 = vmatpush1.bf16.msra.mxu0 %v4175
        %4203 = vmatprep.subr.bf16.mxu0 0
        %4204 = vmatpush1.bf16.msra.mxu0 %v4176
        %4205 = vmatprep.subr.bf16.mxu0 0
        %4206 = vmatpush1.bf16.msra.mxu0 %v4177
        %4207 = vmatprep.subr.bf16.mxu0 0
        %4208 = vmatpush1.bf16.msra.mxu0 %v4178
        %4209 = vmatprep.subr.bf16.mxu0 0
        %4210 = vmatpush1.bf16.msra.mxu0 0
        %4211 = vmatprep.subr.bf16.mxu0 0
        %4212 = vmatpush1.bf16.msra.mxu0 0
        %4213 = vmatprep.subr.bf16.mxu0 0
        %4214 = vmatpush1.bf16.msra.mxu0 0
        %4215 = vmatprep.subr.bf16.mxu0 0
        %4216 = vmatpush1.bf16.msra.mxu0 0
        %4217 = vmatprep.subr.bf16.mxu0 0
        %4218 = vmatpush1.bf16.msra.mxu0 0
        %4219 = vmatprep.subr.bf16.mxu0 0
        %4220 = vmatpush1.bf16.msra.mxu0 0
        %4221 = vmatprep.subr.bf16.mxu0 0
        %4222 = vmatpush1.bf16.msra.mxu0 0
        %4223 = vmatprep.subr.bf16.mxu0 0
        %4224 = vmatpush1.bf16.msra.mxu0 0
        %4225 = vmatprep.subr.bf16.mxu0 0
        %4226 = vmatpush1.bf16.msra.mxu0 0
        %4227 = vmatprep.subr.bf16.mxu0 0
        %4228 = vmatpush1.bf16.msra.mxu0 0
        %4229 = vmatprep.mubr.bf16.mxu0 0
        %4230 = vmatmul.mubr.bf16.gmra.mrb[0].mxu0 %v4186
        %v4231 = vpop.f32.mrb[0].mxu0
        %v4232 = vadd.f32 %v4113, %v4231
        %v4233 = vpop.f32.mrb[0].mxu0
        %v4234 = vpop.f32.mrb[0].mxu0
        %v4235 = vadd.f32 %v4116, %v4234
        %v4236 = vpop.f32.mrb[0].mxu0
        %4237 = vmatprep.mubr.bf16.mxu0 0
        %4238 = vmatmul.mubr.bf16.gmra.mrb[0].mxu0 %v4189
        %v4239 = vpop.f32.mrb[0].mxu0
        %v4240 = vadd.f32 %v4121, %v4239
        %v4241 = vpop.f32.mrb[0].mxu0
        %v4242 = vpop.f32.mrb[0].mxu0
        %v4243 = vadd.f32 %v4124, %v4242
        %v4244 = vpop.f32.mrb[0].mxu0
        %4245 = vmatprep.mubr.bf16.mxu0 0
        %4246 = vmatmul.mubr.bf16.gmra.mrb[0].mxu0 %v4192
        %v4247 = vpop.f32.mrb[0].mxu0
        %v4248 = vadd.f32 %v4129, %v4247
        %v4249 = vpop.f32.mrb[0].mxu0
        %v4250 = vpop.f32.mrb[0].mxu0
        %v4251 = vadd.f32 %v4132, %v4250
        %v4252 = vpop.f32.mrb[0].mxu0
        %4253 = vmatprep.mubr.bf16.mxu0 0
        %4254 = vmatmul.mubr.bf16.gmra.mrb[0].mxu0 %v4195
        %v4255 = vpop.f32.mrb[0].mxu0
        %v4256 = vadd.f32 %v4137, %v4255
        %v4257 = vpop.f32.mrb[0].mxu0
        %v4258 = vpop.f32.mrb[0].mxu0
        %v4259 = vadd.f32 %v4140, %v4258
        %v4260 = vpop.f32.mrb[0].mxu0
        %4261 = vdwg.mxu0
        %v4262 = vld [vmem:[#allocation3 + $0x8] sm:$0xf]
        %v4263 = vld [vmem:[#allocation3 + $0xc] sm:$0xf]
        %v4264 = vld [vmem:[#allocation3 + $0x10] sm:$0xf]
        %v4265 = vld [vmem:[#allocation3 + $0x14] sm:$0xf]
        %v4266 = vld [vmem:[#allocation3 + $0x18] sm:$0xf]
        %v4267 = vld [vmem:[#allocation3 + $0x1c] sm:$0xf]
        %v4268 = vld [vmem:[#allocation3 + $0x20] sm:$0xf]
        %v4269 = vld [vmem:[#allocation3 + $0x24] sm:$0xf]
        %s4270 = scalar_lea.vmem %s4, 96
        %v4271 = vld [vmem:[%s4270] sm:$0xf]
        %v4272 = vld [vmem:[%s4270 + $0x4] sm:$0xf]
        %v4273 = vld [vmem:[%s4270 + $0x8] sm:$0xf]
        %v4274 = vld [vmem:[%s4270 + $0xc] sm:$0xf]
        %v4275 = vld [vmem:[%s4270 + $0x10] sm:$0xf]
        %v4276 = vld [vmem:[%s4270 + $0x14] sm:$0xf]
        %v4277 = vld [vmem:[%s4270 + $0x18] sm:$0xf]
        %v4278 = vld [vmem:[%s4270 + $0x1c] sm:$0xf]
        %v4279 = vld [vmem:[%s4270 + $0x20] sm:$0xf]
        %v4280 = vld [vmem:[%s4270 + $0x24] sm:$0xf]
        %v4281 = vld [vmem:[%s4270 + $0x28] sm:$0xf]
        %v4282 = vld [vmem:[%s4270 + $0x2c] sm:$0xf]
        %v4291 = vunpack.c.l.b16 %v4262
        %v4292 = vunpack.c.l.b16 %v4263
        %v4293 = vunpack.c.l.b16 %v4264
        %v4294 = vunpack.c.l.b16 %v4265
        %v4295 = vunpack.c.l.b16 %v4266
        %v4296 = vunpack.c.l.b16 %v4267
        %v4297 = vunpack.c.l.b16 %v4268
        %v4298 = vunpack.c.l.b16 %v4269
        %v4299 = vpack.c.b16 %v4292, %v4291
        %v4300 = vpack.c.b16 %v4294, %v4293
        %v4301 = vpack.c.b16 %v4296, %v4295
        %v4302 = vpack.c.b16 %v4298, %v4297
        %v4315 = vunpack.c.l.b16 %v4271
        %v4316 = vunpack.c.l.b16 %v4272
        %v4317 = vunpack.c.l.b16 %v4273
        %v4318 = vunpack.c.l.b16 %v4274
        %v4319 = vunpack.c.l.b16 %v4275
        %v4320 = vunpack.c.l.b16 %v4276
        %v4321 = vunpack.c.l.b16 %v4277
        %v4322 = vunpack.c.l.b16 %v4278
        %v4323 = vunpack.c.l.b16 %v4279
        %v4324 = vunpack.c.l.b16 %v4280
        %v4325 = vunpack.c.l.b16 %v4281
        %v4326 = vunpack.c.l.b16 %v4282
        %v4327 = vpack.c.b16 %v4316, %v4315
        %v4328 = vpack.c.b16 %v4318, %v4317
        %v4329 = vpack.c.b16 %v4320, %v4319
        %v4330 = vpack.c.b16 %v4322, %v4321
        %v4331 = vpack.c.b16 %v4324, %v4323
        %v4332 = vpack.c.b16 %v4326, %v4325
        %v4340 = vsel %vm4065, %v4299, 0
        %v4343 = vsel %vm4065, %v4300, 0
        %v4346 = vsel %vm4065, %v4301, 0
        %v4349 = vsel %vm4065, %v4302, 0
        %4351 = vmatprep.subr.bf16.mxu0 0
        %4352 = vmatpush1.bf16.msra.mxu0 %v4327
        %4353 = vmatprep.subr.bf16.mxu0 0
        %4354 = vmatpush1.bf16.msra.mxu0 %v4328
        %4355 = vmatprep.subr.bf16.mxu0 0
        %4356 = vmatpush1.bf16.msra.mxu0 %v4329
        %4357 = vmatprep.subr.bf16.mxu0 0
        %4358 = vmatpush1.bf16.msra.mxu0 %v4330
        %4359 = vmatprep.subr.bf16.mxu0 0
        %4360 = vmatpush1.bf16.msra.mxu0 %v4331
        %4361 = vmatprep.subr.bf16.mxu0 0
        %4362 = vmatpush1.bf16.msra.mxu0 %v4332
        %4363 = vmatprep.subr.bf16.mxu0 0
        %4364 = vmatpush1.bf16.msra.mxu0 0
        %4365 = vmatprep.subr.bf16.mxu0 0
        %4366 = vmatpush1.bf16.msra.mxu0 0
        %4367 = vmatprep.subr.bf16.mxu0 0
        %4368 = vmatpush1.bf16.msra.mxu0 0
        %4369 = vmatprep.subr.bf16.mxu0 0
        %4370 = vmatpush1.bf16.msra.mxu0 0
        %4371 = vmatprep.subr.bf16.mxu0 0
        %4372 = vmatpush1.bf16.msra.mxu0 0
        %4373 = vmatprep.subr.bf16.mxu0 0
        %4374 = vmatpush1.bf16.msra.mxu0 0
        %4375 = vmatprep.subr.bf16.mxu0 0
        %4376 = vmatpush1.bf16.msra.mxu0 0
        %4377 = vmatprep.subr.bf16.mxu0 0
        %4378 = vmatpush1.bf16.msra.mxu0 0
        %4379 = vmatprep.subr.bf16.mxu0 0
        %4380 = vmatpush1.bf16.msra.mxu0 0
        %4381 = vmatprep.subr.bf16.mxu0 0
        %4382 = vmatpush1.bf16.msra.mxu0 0
        %4383 = vmatprep.mubr.bf16.mxu0 0
        %4384 = vmatmul.mubr.bf16.gmra.mrb[0].mxu0 %v4340
        %v4385 = vpop.f32.mrb[0].mxu0
        %v4386 = vadd.f32 0.0, %v4385
        %v4387 = vpop.f32.mrb[0].mxu0
        %v4388 = vpop.f32.mrb[0].mxu0
        %v4389 = vadd.f32 0.0, %v4388
        %v4390 = vpop.f32.mrb[0].mxu0
        %4391 = vmatprep.mubr.bf16.mxu0 0
        %4392 = vmatmul.mubr.bf16.gmra.mrb[0].mxu0 %v4343
        %v4393 = vpop.f32.mrb[0].mxu0
        %v4394 = vadd.f32 0.0, %v4393
        %v4395 = vpop.f32.mrb[0].mxu0
        %v4396 = vpop.f32.mrb[0].mxu0
        %v4397 = vadd.f32 0.0, %v4396
        %v4398 = vpop.f32.mrb[0].mxu0
        %4399 = vmatprep.mubr.bf16.mxu0 0
        %4400 = vmatmul.mubr.bf16.gmra.mrb[0].mxu0 %v4346
        %v4401 = vpop.f32.mrb[0].mxu0
        %v4402 = vadd.f32 0.0, %v4401
        %v4403 = vpop.f32.mrb[0].mxu0
        %v4404 = vpop.f32.mrb[0].mxu0
        %v4405 = vadd.f32 0.0, %v4404
        %v4406 = vpop.f32.mrb[0].mxu0
        %4407 = vmatprep.mubr.bf16.mxu0 0
        %4408 = vmatmul.mubr.bf16.gmra.mrb[0].mxu0 %v4349
        %v4409 = vpop.f32.mrb[0].mxu0
        %v4410 = vadd.f32 0.0, %v4409
        %v4411 = vpop.f32.mrb[0].mxu0
        %v4412 = vpop.f32.mrb[0].mxu0
        %v4413 = vadd.f32 0.0, %v4412
        %v4414 = vpop.f32.mrb[0].mxu0
        %4415 = vdwg.mxu0
        %v4416 = vadd.f32 %v4232, %v4386
        %v4417 = vadd.f32 %v4235, %v4389
        %v4418 = vadd.f32 %v4240, %v4394
        %v4419 = vadd.f32 %v4243, %v4397
        %v4420 = vadd.f32 %v4248, %v4402
        %v4421 = vadd.f32 %v4251, %v4405
        %v4422 = vadd.f32 %v4256, %v4410
        %v4423 = vadd.f32 %v4259, %v4413
        %v4424 = vld [vmem:[%s5] sm:$0x1]
        %v4426 = vlaneseq
        %v4427 = vshrl.u32 %v4426, 7
        %v4428 = vsub.s32 0, %v4427
        %v4429 = vrot.slane %v4424, %v4428
        %v4431 = vadd.f32 %v4416, %v4429
        %v4432 = vadd.f32 %v4417, %v4429
        %v4433 = vadd.f32 %v4418, %v4429
        %v4434 = vadd.f32 %v4419, %v4429
        %v4435 = vadd.f32 %v4420, %v4429
        %v4436 = vadd.f32 %v4421, %v4429
        %v4437 = vadd.f32 %v4422, %v4429
        %v4438 = vadd.f32 %v4423, %v4429
        %v4439 = vmax.f32 %v4431, 0.0
        %v4440 = vmax.f32 %v4432, 0.0
        %v4441 = vmax.f32 %v4433, 0.0
        %v4442 = vmax.f32 %v4434, 0.0
        %v4443 = vmax.f32 %v4435, 0.0
        %v4444 = vmax.f32 %v4436, 0.0
        %v4445 = vmax.f32 %v4437, 0.0
        %v4446 = vmax.f32 %v4438, 0.0
        %vm4447 = vcmask 523264
        %4448 = vst.msk [vmem:[#allocation6] sm:$0xff] %vm4447, %v4439
        %4449 = vst.msk [vmem:[#allocation6 + $0x8] sm:$0xff] %vm4447, %v4440
        %4450 = vst.msk [vmem:[#allocation6 + $0x10] sm:$0xff] %vm4447, %v4441
        %4451 = vst.msk [vmem:[#allocation6 + $0x18] sm:$0xff] %vm4447, %v4442
        %4452 = vst.msk [vmem:[#allocation6 + $0x20] sm:$0xff] %vm4447, %v4443
        %4453 = vst.msk [vmem:[#allocation6 + $0x28] sm:$0xff] %vm4447, %v4444
        %4454 = vst.msk [vmem:[#allocation6 + $0x30] sm:$0xff] %vm4447, %v4445
        %4455 = vst.msk [vmem:[#allocation6 + $0x38] sm:$0xff] %vm4447, %v4446
        %v4456 = vld [vmem:[#allocation6] ss:$2 sm:$0xff]
        %s4457 = scalar_lea.vmem [#allocation6], 16
        %v4458 = vld [vmem:[%s4457] ss:$2 sm:$0xff]
        %s4459 = scalar_lea.vmem [#allocation6], 32
        %v4460 = vld [vmem:[%s4459] ss:$2 sm:$0xff]
        %s4461 = scalar_lea.vmem [#allocation6], 48
        %v4462 = vld [vmem:[%s4461] ss:$2 sm:$0xff]
        %s4463 = scalar_lea.vmem [#allocation6], 1
        %v4464 = vld [vmem:[%s4463] ss:$2 sm:$0xff]
        %s4465 = scalar_lea.vmem [#allocation6], 17
        %v4466 = vld [vmem:[%s4465] ss:$2 sm:$0xff]
        %s4467 = scalar_lea.vmem [#allocation6], 33
        %v4468 = vld [vmem:[%s4467] ss:$2 sm:$0xff]
        %s4469 = scalar_lea.vmem [#allocation6], 49
        %v4470 = vld [vmem:[%s4469] ss:$2 sm:$0xff]
        %v4471 = vmax.f32 %v4456, %v4464
        %v4472 = vmax.f32 %v4458, %v4466
        %v4473 = vmax.f32 %v4460, %v4468
        %v4474 = vmax.f32 %v4462, %v4470
        %v4476 = vrot.slane %v4471, 4
        %v4478 = vmax.f32 %v4471, %v4476
        %vm4479 = vcmask 519168
        %4480 = vst.msk [vmem:[#allocation6] sm:$0xf] %vm4479, %v4478
        %v4482 = vrot.slane %v4472, 4
        %v4484 = vmax.f32 %v4472, %v4482
        %4485 = vst.msk [vmem:[#allocation6 + $0x4] sm:$0xf] %vm4479, %v4484
        %v4487 = vrot.slane %v4473, 4
        %v4489 = vmax.f32 %v4473, %v4487
        %4490 = vst.msk [vmem:[#allocation6 + $0x8] sm:$0xf] %vm4479, %v4489
        %v4492 = vrot.slane %v4474, 4
        %v4494 = vmax.f32 %v4474, %v4492
        %4495 = vst.msk [vmem:[#allocation6 + $0xc] sm:$0xf] %vm4479, %v4494
        %v4496 = vld [vmem:[#allocation6] sm:$0xff]
        %v4497 = vld [vmem:[#allocation6 + $0x8] sm:$0xff]
        %vm4498 = vcmask 1043456
        %vm4499 = vcmask 523268
        %vm4500 = vmor %vm4499, %vm4498
        %4501 = vst.msk [vmem:[#allocation4] sm:$0xff] %vm4500, 0
        %4502 = vst.msk [vmem:[#allocation4 + $0x8] sm:$0xff] %vm4500, 0
        %4503 = vst.msk [vmem:[#allocation4 + $0x10] sm:$0xff] %vm4500, 0
        %4504 = vst.msk [vmem:[#allocation4 + $0x18] sm:$0xff] %vm4500, 0
        %4505 = vst.msk [vmem:[#allocation4 + $0x20] sm:$0xff] %vm4500, 0
        %v4506 = vld [vmem:[%s9] sm:$0xff]
        %v4507 = vld [vmem:[%s9 + $0x8] sm:$0xff]
        %4509 = vset.pattern.permute.xlu0 0
        %4510 = vperm.xlu0 %4509, %v4506
        %v4511 = vpop.permute.xlu0 %4510
        %4514 = vset.pattern.permute.xlu0 0
        %4515 = vperm.xlu0 %4514, %v4507
        %v4516 = vpop.permute.xlu0 %4515
        %v4518 = vmul.f32 %v4496, %v4511
        %v4519 = vmul.f32 %v4497, %v4516
        %v4520 = vpack.c.bf16 %v4519, %v4518
        %v4522 = vunpack.c.l.b16 %v4520
        %v4523 = vunpack.c.h.b16 %v4520
        %v4524 = vpack.c.b16 %v4522, %v4522
        %v4525 = vpack.c.b16 %v4523, %v4523
        %v4527 = vshrl.u32 %v4524, 16
        %v4529 = vrot.slane %v4527, 7
        %v4530 = vshll.u32 %v4524, 16
        %v4532 = vor.u32 %v4529, %v4530
        %v4533 = vrot.slane %v4529, 4
        %v4535 = vshrl.u32 %v4525, 16
        %v4537 = vrot.slane %v4535, 7
        %v4538 = vshll.u32 %v4525, 16
        %v4540 = vor.u32 %v4537, %v4538
        %v4541 = vsel %vm1030, %v4533, %v4540
        %v4542 = vrot.slane %v4537, 4
        %vm4546 = vcmask 519168
        %vm4547 = vmand %vm4546, %vm1352
        %v4548 = vld [vmem:[#allocation4 + $0x8] sm:$0xf]
        %v4549 = vsel %vm4547, %v4532, %v4548
        %4550 = vst [vmem:[#allocation4 + $0x8] sm:$0xf] %v4549
        %4551 = vst.msk [vmem:[#allocation4 + $0x10] sm:$0xf] %vm4479, %v4541
        %vm4552 = vcmask 516096
        %vm4553 = vmand %vm4552, %vm1028
        %v4554 = vld [vmem:[#allocation4 + $0x18] sm:$0x1]
        %v4555 = vsel %vm4553, %v4542, %v4554
        %4556 = vst [vmem:[#allocation4 + $0x18] sm:$0x1] %v4555
        %v4557 = vpack.c.bf16 %v4497, %v4496
        %v4559 = vunpack.c.l.b16 %v4557
        %v4560 = vunpack.c.h.b16 %v4557
        %v4561 = vpack.c.b16 %v4559, %v4559
        %v4562 = vpack.c.b16 %v4560, %v4560
        %4563 = vrot.lane.b32.xlu0 %v4561, 64
        %v4564 = vpop.permute.xlu0 %4563
        %4565 = vrot.lane.b32.xlu0 %v4562, 64
        %v4566 = vpop.permute.xlu0 %4565
        %vm4569 = vcmask 1043968
        %4570 = vst.msk [vmem:[#allocation4 + $0x8] sm:$0xf] %vm4569, %v4564
        %4571 = vst.msk [vmem:[#allocation4 + $0x10] sm:$0xf] %vm4569, %v4566
        %s4572 = scalar_lea.vmem %s9, 16
        %v4573 = vld [vmem:[%s4572] sm:$0xff]
        %v4574 = vld [vmem:[%s4572 + $0x8] sm:$0xff]
        %4576 = vset.pattern.permute.xlu0 0
        %4577 = vperm.xlu0 %4576, %v4573
        %v4578 = vpop.permute.xlu0 %4577
        %4581 = vset.pattern.permute.xlu0 0
        %4582 = vperm.xlu0 %4581, %v4574
        %v4583 = vpop.permute.xlu0 %4582
        %v4585 = vmul.f32 %v4496, %v4578
        %v4586 = vmul.f32 %v4497, %v4583
        %v4587 = vpack.c.bf16 %v4586, %v4585
        %v4589 = vunpack.c.l.b16 %v4587
        %v4590 = vunpack.c.h.b16 %v4587
        %v4591 = vpack.c.b16 %v4589, %v4589
        %v4592 = vpack.c.b16 %v4590, %v4590
        %v4594 = vshll.u32 %v4591, 16
        %v4596 = vrot.slane %v4594, 5
        %v4597 = vshrl.u32 %v4591, 16
        %v4599 = vrot.slane %v4597, 4
        %v4600 = vor.u32 %v4599, %v4596
        %v4601 = vrot.slane %v4600, 4
        %v4603 = vshll.u32 %v4592, 16
        %v4605 = vrot.slane %v4603, 5
        %v4606 = vsel %vm1942, %v4601, %v4605
        %v4607 = vshrl.u32 %v4592, 16
        %v4609 = vrot.slane %v4607, 4
        %v4610 = vor.u32 %v4609, %v4605
        %v4611 = vrot.slane %v4610, 4
        %vm4615 = vcmask 519171
        %vm4616 = vmand %vm4615, %vm2362
        %v4617 = vld [vmem:[#allocation4 + $0x4] sm:$0x8]
        %v4618 = vsel %vm4616, %v4596, %v4617
        %4619 = vst [vmem:[#allocation4 + $0x4] sm:$0x8] %v4618
        %4620 = vst.msk [vmem:[#allocation4 + $0xc] sm:$0xf] %vm4479, %v4606
        %vm4621 = vmand %vm4546, %vm1940
        %v4622 = vld [vmem:[#allocation4 + $0x14] sm:$0xf]
        %v4623 = vsel %vm4621, %v4611, %v4622
        %4624 = vst [vmem:[#allocation4 + $0x14] sm:$0xf] %v4623
        %v4625 = vld [vmem:[#allocation4] sm:$0xcc]
        %v4626 = vld [vmem:[#allocation4 + $0x8] sm:$0xff]
        %v4627 = vld [vmem:[#allocation4 + $0x10] sm:$0x33]
        %v4628 = vld [vmem:[%s7] sm:$0xf]
        %v4629 = vld [vmem:[%s7 + $0x4] sm:$0xf]
        %v4630 = vld [vmem:[%s7 + $0x8] sm:$0xf]
        %v4631 = vld [vmem:[%s7 + $0xc] sm:$0xf]
        %v4632 = vld [vmem:[%s7 + $0x10] sm:$0xf]
        %v4633 = vld [vmem:[%s7 + $0x14] sm:$0xf]
        %v4634 = vld [vmem:[%s7 + $0x18] sm:$0xf]
        %v4635 = vld [vmem:[%s7 + $0x1c] sm:$0xf]
        %v4636 = vld [vmem:[%s7 + $0x20] sm:$0xf]
        %v4637 = vld [vmem:[%s7 + $0x24] sm:$0xf]
        %v4638 = vld [vmem:[%s7 + $0x28] sm:$0xf]
        %v4639 = vld [vmem:[%s7 + $0x2c] sm:$0xf]
        %v4640 = vld [vmem:[%s7 + $0x30] sm:$0xf]
        %v4641 = vld [vmem:[%s7 + $0x34] sm:$0xf]
        %v4642 = vld [vmem:[%s7 + $0x38] sm:$0xf]
        %v4643 = vld [vmem:[%s7 + $0x3c] sm:$0xf]
        %v4644 = vld [vmem:[%s7 + $0x40] sm:$0xf]
        %v4645 = vld [vmem:[%s7 + $0x44] sm:$0xf]
        %v4646 = vld [vmem:[%s7 + $0x48] sm:$0xf]
        %v4647 = vld [vmem:[%s7 + $0x4c] sm:$0xf]
        %v4648 = vld [vmem:[%s7 + $0x50] sm:$0xf]
        %v4649 = vld [vmem:[%s7 + $0x54] sm:$0xf]
        %v4650 = vld [vmem:[%s7 + $0x58] sm:$0xf]
        %v4651 = vld [vmem:[%s7 + $0x5c] sm:$0xf]
        %v4652 = vld [vmem:[#allocation4 + $0x10] sm:$0xff]
        %s4653 = scalar_lea.vmem %s7, 96
        %v4654 = vld [vmem:[%s4653] sm:$0xf]
        %v4655 = vld [vmem:[%s4653 + $0x4] sm:$0xf]
        %v4656 = vld [vmem:[%s4653 + $0x8] sm:$0xf]
        %v4657 = vld [vmem:[%s4653 + $0xc] sm:$0xf]
        %v4658 = vld [vmem:[%s4653 + $0x10] sm:$0xf]
        %v4659 = vld [vmem:[%s4653 + $0x14] sm:$0xf]
        %v4660 = vld [vmem:[%s4653 + $0x18] sm:$0xf]
        %v4661 = vld [vmem:[%s4653 + $0x1c] sm:$0xf]
        %v4662 = vld [vmem:[%s4653 + $0x20] sm:$0xf]
        %v4663 = vld [vmem:[%s4653 + $0x24] sm:$0xf]
        %v4664 = vld [vmem:[%s4653 + $0x28] sm:$0xf]
        %v4665 = vld [vmem:[%s4653 + $0x2c] sm:$0xf]
        %v4666 = vld [vmem:[%s4653 + $0x30] sm:$0xf]
        %v4667 = vld [vmem:[%s4653 + $0x34] sm:$0xf]
        %v4668 = vld [vmem:[%s4653 + $0x38] sm:$0xf]
        %v4669 = vld [vmem:[%s4653 + $0x3c] sm:$0xf]
        %v4670 = vld [vmem:[%s4653 + $0x40] sm:$0xf]
        %v4671 = vld [vmem:[%s4653 + $0x44] sm:$0xf]
        %v4672 = vld [vmem:[%s4653 + $0x48] sm:$0xf]
        %v4673 = vld [vmem:[%s4653 + $0x4c] sm:$0xf]
        %v4674 = vld [vmem:[%s4653 + $0x50] sm:$0xf]
        %v4675 = vld [vmem:[%s4653 + $0x54] sm:$0xf]
        %v4676 = vld [vmem:[%s4653 + $0x58] sm:$0xf]
        %v4677 = vld [vmem:[%s4653 + $0x5c] sm:$0xf]
        %v4680 = vunpack.c.l.b16 %v4626
        %v4681 = vunpack.c.h.b16 %v4626
        %v4682 = vunpack.c.l.b16 %v4652
        %v4683 = vunpack.c.h.b16 %v4652
        %v4684 = vpack.c.b16 %v4682, %v4680
        %v4685 = vpack.c.b16 %v4683, %v4681
        %v4711 = vunpack.c.l.b16 %v4654
        %v4712 = vunpack.c.l.b16 %v4655
        %v4713 = vunpack.c.l.b16 %v4656
        %v4714 = vunpack.c.l.b16 %v4657
        %v4715 = vunpack.c.l.b16 %v4658
        %v4716 = vunpack.c.l.b16 %v4659
        %v4717 = vunpack.c.l.b16 %v4660
        %v4718 = vunpack.c.l.b16 %v4661
        %v4719 = vunpack.c.l.b16 %v4662
        %v4720 = vunpack.c.l.b16 %v4663
        %v4721 = vunpack.c.l.b16 %v4664
        %v4722 = vunpack.c.l.b16 %v4665
        %v4723 = vunpack.c.l.b16 %v4666
        %v4724 = vunpack.c.l.b16 %v4667
        %v4725 = vunpack.c.l.b16 %v4668
        %v4726 = vunpack.c.l.b16 %v4669
        %v4727 = vunpack.c.l.b16 %v4670
        %v4728 = vunpack.c.l.b16 %v4671
        %v4729 = vunpack.c.l.b16 %v4672
        %v4730 = vunpack.c.l.b16 %v4673
        %v4731 = vunpack.c.l.b16 %v4674
        %v4732 = vunpack.c.l.b16 %v4675
        %v4733 = vunpack.c.l.b16 %v4676
        %v4734 = vunpack.c.l.b16 %v4677
        %v4735 = vpack.c.b16 %v4712, %v4711
        %v4736 = vpack.c.b16 %v4714, %v4713
        %v4737 = vpack.c.b16 %v4716, %v4715
        %v4738 = vpack.c.b16 %v4718, %v4717
        %v4739 = vpack.c.b16 %v4720, %v4719
        %v4740 = vpack.c.b16 %v4722, %v4721
        %v4741 = vpack.c.b16 %v4724, %v4723
        %v4742 = vpack.c.b16 %v4726, %v4725
        %v4743 = vpack.c.b16 %v4728, %v4727
        %v4744 = vpack.c.b16 %v4730, %v4729
        %v4745 = vpack.c.b16 %v4732, %v4731
        %v4746 = vpack.c.b16 %v4734, %v4733
        %v4760 = vsel %vm4447, %v4685, 0
        %4762 = vmatprep.subr.bf16.mxu0 0
        %4763 = vmatpush1.bf16.msra.mxu0 %v4735
        %4764 = vmatprep.subr.bf16.mxu0 0
        %4765 = vmatpush1.bf16.msra.mxu0 %v4736
        %4766 = vmatprep.subr.bf16.mxu0 0
        %4767 = vmatpush1.bf16.msra.mxu0 %v4737
        %4768 = vmatprep.subr.bf16.mxu0 0
        %4769 = vmatpush1.bf16.msra.mxu0 %v4738
        %4770 = vmatprep.subr.bf16.mxu0 0
        %4771 = vmatpush1.bf16.msra.mxu0 %v4739
        %4772 = vmatprep.subr.bf16.mxu0 0
        %4773 = vmatpush1.bf16.msra.mxu0 %v4740
        %4774 = vmatprep.subr.bf16.mxu0 0
        %4775 = vmatpush1.bf16.msra.mxu0 %v4741
        %4776 = vmatprep.subr.bf16.mxu0 0
        %4777 = vmatpush1.bf16.msra.mxu0 %v4742
        %4778 = vmatprep.subr.bf16.mxu0 0
        %4779 = vmatpush1.bf16.msra.mxu0 %v4743
        %4780 = vmatprep.subr.bf16.mxu0 0
        %4781 = vmatpush1.bf16.msra.mxu0 %v4744
        %4782 = vmatprep.subr.bf16.mxu0 0
        %4783 = vmatpush1.bf16.msra.mxu0 %v4745
        %4784 = vmatprep.subr.bf16.mxu0 0
        %4785 = vmatpush1.bf16.msra.mxu0 %v4746
        %4786 = vmatprep.subr.bf16.mxu0 0
        %4787 = vmatpush1.bf16.msra.mxu0 0
        %4788 = vmatprep.subr.bf16.mxu0 0
        %4789 = vmatpush1.bf16.msra.mxu0 0
        %4790 = vmatprep.subr.bf16.mxu0 0
        %4791 = vmatpush1.bf16.msra.mxu0 0
        %4792 = vmatprep.subr.bf16.mxu0 0
        %4793 = vmatpush1.bf16.msra.mxu0 0
        %4794 = vmatprep.mubr.bf16.mxu0 %v4760
        %4795 = vmatmul.mubr.bf16.gmra.mrb[0].mxu0 %v4684
        %v4796 = vpop.f32.mrb[0].mxu0
        %v4797 = vadd.f32 0.0, %v4796
        %v4798 = vpop.f32.mrb[0].mxu0
        %v4799 = vpop.f32.mrb[0].mxu0
        %v4800 = vadd.f32 0.0, %v4799
        %v4801 = vpop.f32.mrb[0].mxu0
        %4802 = vdwg.mxu0
        %v4805 = vunpack.c.l.b16 %v4625
        %v4806 = vunpack.c.h.b16 %v4625
        %v4807 = vunpack.c.l.b16 %v4627
        %v4808 = vunpack.c.h.b16 %v4627
        %v4809 = vpack.c.b16 %v4680, %v4805
        %v4810 = vpack.c.b16 %v4681, %v4806
        %v4811 = vpack.c.b16 %v4807, %v4807
        %v4812 = vpack.c.b16 %v4808, %v4808
        %vm4813 = vcmask 1045504
        %v4814 = vrot.slane %v4809, 2
        %v4815 = vrot.slane %v4811, 2
        %v4816 = vsel %vm4813, %v4814, %v4815
        %v4817 = vrot.slane %v4810, 2
        %v4818 = vrot.slane %v4812, 2
        %v4819 = vsel %vm4813, %v4817, %v4818
        %v4845 = vunpack.c.l.b16 %v4628
        %v4846 = vunpack.c.l.b16 %v4629
        %v4847 = vunpack.c.l.b16 %v4630
        %v4848 = vunpack.c.l.b16 %v4631
        %v4849 = vunpack.c.l.b16 %v4632
        %v4850 = vunpack.c.l.b16 %v4633
        %v4851 = vunpack.c.l.b16 %v4634
        %v4852 = vunpack.c.l.b16 %v4635
        %v4853 = vunpack.c.l.b16 %v4636
        %v4854 = vunpack.c.l.b16 %v4637
        %v4855 = vunpack.c.l.b16 %v4638
        %v4856 = vunpack.c.l.b16 %v4639
        %v4857 = vunpack.c.l.b16 %v4640
        %v4858 = vunpack.c.l.b16 %v4641
        %v4859 = vunpack.c.l.b16 %v4642
        %v4860 = vunpack.c.l.b16 %v4643
        %v4861 = vunpack.c.l.b16 %v4644
        %v4862 = vunpack.c.l.b16 %v4645
        %v4863 = vunpack.c.l.b16 %v4646
        %v4864 = vunpack.c.l.b16 %v4647
        %v4865 = vunpack.c.l.b16 %v4648
        %v4866 = vunpack.c.l.b16 %v4649
        %v4867 = vunpack.c.l.b16 %v4650
        %v4868 = vunpack.c.l.b16 %v4651
        %v4869 = vpack.c.b16 %v4846, %v4845
        %v4870 = vpack.c.b16 %v4848, %v4847
        %v4871 = vpack.c.b16 %v4850, %v4849
        %v4872 = vpack.c.b16 %v4852, %v4851
        %v4873 = vpack.c.b16 %v4854, %v4853
        %v4874 = vpack.c.b16 %v4856, %v4855
        %v4875 = vpack.c.b16 %v4858, %v4857
        %v4876 = vpack.c.b16 %v4860, %v4859
        %v4877 = vpack.c.b16 %v4862, %v4861
        %v4878 = vpack.c.b16 %v4864, %v4863
        %v4879 = vpack.c.b16 %v4866, %v4865
        %v4880 = vpack.c.b16 %v4868, %v4867
        %v4894 = vsel %vm4447, %v4819, 0
        %4896 = vmatprep.subr.bf16.mxu0 0
        %4897 = vmatpush1.bf16.msra.mxu0 %v4869
        %4898 = vmatprep.subr.bf16.mxu0 0
        %4899 = vmatpush1.bf16.msra.mxu0 %v4870
        %4900 = vmatprep.subr.bf16.mxu0 0
        %4901 = vmatpush1.bf16.msra.mxu0 %v4871
        %4902 = vmatprep.subr.bf16.mxu0 0
        %4903 = vmatpush1.bf16.msra.mxu0 %v4872
        %4904 = vmatprep.subr.bf16.mxu0 0
        %4905 = vmatpush1.bf16.msra.mxu0 %v4873
        %4906 = vmatprep.subr.bf16.mxu0 0
        %4907 = vmatpush1.bf16.msra.mxu0 %v4874
        %4908 = vmatprep.subr.bf16.mxu0 0
        %4909 = vmatpush1.bf16.msra.mxu0 %v4875
        %4910 = vmatprep.subr.bf16.mxu0 0
        %4911 = vmatpush1.bf16.msra.mxu0 %v4876
        %4912 = vmatprep.subr.bf16.mxu0 0
        %4913 = vmatpush1.bf16.msra.mxu0 %v4877
        %4914 = vmatprep.subr.bf16.mxu0 0
        %4915 = vmatpush1.bf16.msra.mxu0 %v4878
        %4916 = vmatprep.subr.bf16.mxu0 0
        %4917 = vmatpush1.bf16.msra.mxu0 %v4879
        %4918 = vmatprep.subr.bf16.mxu0 0
        %4919 = vmatpush1.bf16.msra.mxu0 %v4880
        %4920 = vmatprep.subr.bf16.mxu0 0
        %4921 = vmatpush1.bf16.msra.mxu0 0
        %4922 = vmatprep.subr.bf16.mxu0 0
        %4923 = vmatpush1.bf16.msra.mxu0 0
        %4924 = vmatprep.subr.bf16.mxu0 0
        %4925 = vmatpush1.bf16.msra.mxu0 0
        %4926 = vmatprep.subr.bf16.mxu0 0
        %4927 = vmatpush1.bf16.msra.mxu0 0
        %4928 = vmatprep.mubr.bf16.mxu0 %v4894
        %4929 = vmatmul.mubr.bf16.gmra.mrb[0].mxu0 %v4816
        %v4930 = vpop.f32.mrb[0].mxu0
        %v4931 = vadd.f32 %v4797, %v4930
        %v4932 = vpop.f32.mrb[0].mxu0
        %v4933 = vpop.f32.mrb[0].mxu0
        %v4934 = vadd.f32 %v4800, %v4933
        %v4935 = vpop.f32.mrb[0].mxu0
        %4936 = vdwg.mxu0
        %v4937 = vld [vmem:[#allocation4 + $0x8] sm:$0xcc]
        %v4938 = vld [vmem:[#allocation4 + $0x10] sm:$0xff]
        %v4939 = vld [vmem:[#allocation4 + $0x18] sm:$0x33]
        %s4940 = scalar_lea.vmem %s7, 192
        %v4941 = vld [vmem:[%s4940] sm:$0xf]
        %v4942 = vld [vmem:[%s4940 + $0x4] sm:$0xf]
        %v4943 = vld [vmem:[%s4940 + $0x8] sm:$0xf]
        %v4944 = vld [vmem:[%s4940 + $0xc] sm:$0xf]
        %v4945 = vld [vmem:[%s4940 + $0x10] sm:$0xf]
        %v4946 = vld [vmem:[%s4940 + $0x14] sm:$0xf]
        %v4947 = vld [vmem:[%s4940 + $0x18] sm:$0xf]
        %v4948 = vld [vmem:[%s4940 + $0x1c] sm:$0xf]
        %v4949 = vld [vmem:[%s4940 + $0x20] sm:$0xf]
        %v4950 = vld [vmem:[%s4940 + $0x24] sm:$0xf]
        %v4951 = vld [vmem:[%s4940 + $0x28] sm:$0xf]
        %v4952 = vld [vmem:[%s4940 + $0x2c] sm:$0xf]
        %v4953 = vld [vmem:[%s4940 + $0x30] sm:$0xf]
        %v4954 = vld [vmem:[%s4940 + $0x34] sm:$0xf]
        %v4955 = vld [vmem:[%s4940 + $0x38] sm:$0xf]
        %v4956 = vld [vmem:[%s4940 + $0x3c] sm:$0xf]
        %v4957 = vld [vmem:[%s4940 + $0x40] sm:$0xf]
        %v4958 = vld [vmem:[%s4940 + $0x44] sm:$0xf]
        %v4959 = vld [vmem:[%s4940 + $0x48] sm:$0xf]
        %v4960 = vld [vmem:[%s4940 + $0x4c] sm:$0xf]
        %v4961 = vld [vmem:[%s4940 + $0x50] sm:$0xf]
        %v4962 = vld [vmem:[%s4940 + $0x54] sm:$0xf]
        %v4963 = vld [vmem:[%s4940 + $0x58] sm:$0xf]
        %v4964 = vld [vmem:[%s4940 + $0x5c] sm:$0xf]
        %v4968 = vunpack.c.l.b16 %v4937
        %v4969 = vunpack.c.h.b16 %v4937
        %v4970 = vunpack.c.l.b16 %v4938
        %v4971 = vunpack.c.h.b16 %v4938
        %v4972 = vunpack.c.l.b16 %v4939
        %v4973 = vunpack.c.h.b16 %v4939
        %v4974 = vpack.c.b16 %v4970, %v4968
        %v4975 = vpack.c.b16 %v4971, %v4969
        %v4976 = vpack.c.b16 %v4972, %v4972
        %v4977 = vpack.c.b16 %v4973, %v4973
        %v4978 = vrot.slane %v4974, 2
        %v4979 = vrot.slane %v4976, 2
        %v4980 = vsel %vm4813, %v4978, %v4979
        %v4981 = vrot.slane %v4975, 2
        %v4982 = vrot.slane %v4977, 2
        %v4983 = vsel %vm4813, %v4981, %v4982
        %v5009 = vunpack.c.l.b16 %v4941
        %v5010 = vunpack.c.l.b16 %v4942
        %v5011 = vunpack.c.l.b16 %v4943
        %v5012 = vunpack.c.l.b16 %v4944
        %v5013 = vunpack.c.l.b16 %v4945
        %v5014 = vunpack.c.l.b16 %v4946
        %v5015 = vunpack.c.l.b16 %v4947
        %v5016 = vunpack.c.l.b16 %v4948
        %v5017 = vunpack.c.l.b16 %v4949
        %v5018 = vunpack.c.l.b16 %v4950
        %v5019 = vunpack.c.l.b16 %v4951
        %v5020 = vunpack.c.l.b16 %v4952
        %v5021 = vunpack.c.l.b16 %v4953
        %v5022 = vunpack.c.l.b16 %v4954
        %v5023 = vunpack.c.l.b16 %v4955
        %v5024 = vunpack.c.l.b16 %v4956
        %v5025 = vunpack.c.l.b16 %v4957
        %v5026 = vunpack.c.l.b16 %v4958
        %v5027 = vunpack.c.l.b16 %v4959
        %v5028 = vunpack.c.l.b16 %v4960
        %v5029 = vunpack.c.l.b16 %v4961
        %v5030 = vunpack.c.l.b16 %v4962
        %v5031 = vunpack.c.l.b16 %v4963
        %v5032 = vunpack.c.l.b16 %v4964
        %v5033 = vpack.c.b16 %v5010, %v5009
        %v5034 = vpack.c.b16 %v5012, %v5011
        %v5035 = vpack.c.b16 %v5014, %v5013
        %v5036 = vpack.c.b16 %v5016, %v5015
        %v5037 = vpack.c.b16 %v5018, %v5017
        %v5038 = vpack.c.b16 %v5020, %v5019
        %v5039 = vpack.c.b16 %v5022, %v5021
        %v5040 = vpack.c.b16 %v5024, %v5023
        %v5041 = vpack.c.b16 %v5026, %v5025
        %v5042 = vpack.c.b16 %v5028, %v5027
        %v5043 = vpack.c.b16 %v5030, %v5029
        %v5044 = vpack.c.b16 %v5032, %v5031
        %v5058 = vsel %vm4447, %v4983, 0
        %5060 = vmatprep.subr.bf16.mxu0 0
        %5061 = vmatpush1.bf16.msra.mxu0 %v5033
        %5062 = vmatprep.subr.bf16.mxu0 0
        %5063 = vmatpush1.bf16.msra.mxu0 %v5034
        %5064 = vmatprep.subr.bf16.mxu0 0
        %5065 = vmatpush1.bf16.msra.mxu0 %v5035
        %5066 = vmatprep.subr.bf16.mxu0 0
        %5067 = vmatpush1.bf16.msra.mxu0 %v5036
        %5068 = vmatprep.subr.bf16.mxu0 0
        %5069 = vmatpush1.bf16.msra.mxu0 %v5037
        %5070 = vmatprep.subr.bf16.mxu0 0
        %5071 = vmatpush1.bf16.msra.mxu0 %v5038
        %5072 = vmatprep.subr.bf16.mxu0 0
        %5073 = vmatpush1.bf16.msra.mxu0 %v5039
        %5074 = vmatprep.subr.bf16.mxu0 0
        %5075 = vmatpush1.bf16.msra.mxu0 %v5040
        %5076 = vmatprep.subr.bf16.mxu0 0
        %5077 = vmatpush1.bf16.msra.mxu0 %v5041
        %5078 = vmatprep.subr.bf16.mxu0 0
        %5079 = vmatpush1.bf16.msra.mxu0 %v5042
        %5080 = vmatprep.subr.bf16.mxu0 0
        %5081 = vmatpush1.bf16.msra.mxu0 %v5043
        %5082 = vmatprep.subr.bf16.mxu0 0
        %5083 = vmatpush1.bf16.msra.mxu0 %v5044
        %5084 = vmatprep.subr.bf16.mxu0 0
        %5085 = vmatpush1.bf16.msra.mxu0 0
        %5086 = vmatprep.subr.bf16.mxu0 0
        %5087 = vmatpush1.bf16.msra.mxu0 0
        %5088 = vmatprep.subr.bf16.mxu0 0
        %5089 = vmatpush1.bf16.msra.mxu0 0
        %5090 = vmatprep.subr.bf16.mxu0 0
        %5091 = vmatpush1.bf16.msra.mxu0 0
        %5092 = vmatprep.mubr.bf16.mxu0 %v5058
        %5093 = vmatmul.mubr.bf16.gmra.mrb[0].mxu0 %v4980
        %v5094 = vpop.f32.mrb[0].mxu0
        %v5095 = vadd.f32 0.0, %v5094
        %v5096 = vpop.f32.mrb[0].mxu0
        %v5097 = vpop.f32.mrb[0].mxu0
        %v5098 = vadd.f32 0.0, %v5097
        %v5099 = vpop.f32.mrb[0].mxu0
        %5100 = vdwg.mxu0
        %v5101 = vadd.f32 %v4931, %v5095
        %v5102 = vadd.f32 %v4934, %v5098
        %v5103 = vld [vmem:[%s8] sm:$0x1]
        %v5105 = vlaneseq
        %v5106 = vshrl.u32 %v5105, 7
        %v5107 = vsub.s32 0, %v5106
        %v5108 = vrot.slane %v5103, %v5107
        %v5110 = vadd.f32 %v5101, %v5108
        %v5111 = vadd.f32 %v5102, %v5108
        %v5112 = vmax.f32 %v5110, 0.0
        %v5113 = vmax.f32 %v5111, 0.0
        %5114 = vst [vmem:[#allocation7] sm:$0xff] %v5112
        %5115 = vst [vmem:[#allocation7 + $0x8] sm:$0xff] %v5113
        %v5116 = vld [vmem:[#allocation7] ss:$2 sm:$0xff]
        %s5117 = scalar_lea.vmem [#allocation7], 1
        %v5118 = vld [vmem:[%s5117] ss:$2 sm:$0xff]
        %v5119 = vmax.f32 %v5116, %v5118
        %v5121 = vrot.slane %v5119, 2
        %v5123 = vmax.f32 %v5119, %v5121
        %5124 = vst [vmem:[#allocation7] sm:$0x3] %v5123
        %5125 = vst [vmem:[#allocation7 - $0x2] sm:$0x30] %v5123
        %v5126 = vld [vmem:[#allocation7] sm:$0xf]
        %v5127 = vsel %vm4498, %v5126, 0.0
        %v5128 = vrot.slane %v5127, 4
        %v5129 = vadd.f32 %v5127, %v5128
        %v5130 = vrot.slane %v5129, 2
        %v5131 = vadd.f32 %v5129, %v5130
        %v5132 = vrot.slane %v5131, 1
        %v5133 = vadd.f32 %v5131, %v5132
        %v5134 = vrcp.pop 4.0
        %v5135 = vmul.f32 %v5133, %v5134
        %v5136 = vpack.c.bf16 %v5135, %v5135
        %v5137 = vld [vmem:[%s16] sm:$0xf]
        %v5138 = vld [vmem:[%s16 + $0x4] sm:$0xf]
        %v5139 = vld [vmem:[%s16 + $0x8] sm:$0xf]
        %v5140 = vld [vmem:[%s16 + $0xc] sm:$0xf]
        %v5141 = vld [vmem:[%s16 + $0x10] sm:$0xf]
        %v5142 = vld [vmem:[%s16 + $0x14] sm:$0xf]
        %v5143 = vld [vmem:[%s16 + $0x18] sm:$0xf]
        %v5144 = vld [vmem:[%s16 + $0x1c] sm:$0xf]
        %v5145 = vld [vmem:[%s16 + $0x20] sm:$0xf]
        %v5146 = vld [vmem:[%s16 + $0x24] sm:$0xf]
        %v5147 = vld [vmem:[%s16 + $0x28] sm:$0xf]
        %v5148 = vld [vmem:[%s16 + $0x2c] sm:$0xf]
        %v5149 = vld [vmem:[%s16 + $0x30] sm:$0xf]
        %v5150 = vld [vmem:[%s16 + $0x34] sm:$0xf]
        %v5151 = vld [vmem:[%s16 + $0x38] sm:$0xf]
        %v5152 = vld [vmem:[%s16 + $0x3c] sm:$0xf]
        %v5153 = vld [vmem:[%s17] sm:$0x1]
        %v5155 = vlaneseq
        %v5156 = vshrl.u32 %v5155, 7
        %v5157 = vsub.s32 0, %v5156
        %v5158 = vrot.slane %v5153, %v5157
        %v5176 = vunpack.c.l.b16 %v5137
        %v5177 = vunpack.c.l.b16 %v5138
        %v5178 = vunpack.c.l.b16 %v5139
        %v5179 = vunpack.c.l.b16 %v5140
        %v5180 = vunpack.c.l.b16 %v5141
        %v5181 = vunpack.c.l.b16 %v5142
        %v5182 = vunpack.c.l.b16 %v5143
        %v5183 = vunpack.c.l.b16 %v5144
        %v5184 = vunpack.c.l.b16 %v5145
        %v5185 = vunpack.c.l.b16 %v5146
        %v5186 = vunpack.c.l.b16 %v5147
        %v5187 = vunpack.c.l.b16 %v5148
        %v5188 = vunpack.c.l.b16 %v5149
        %v5189 = vunpack.c.l.b16 %v5150
        %v5190 = vunpack.c.l.b16 %v5151
        %v5191 = vunpack.c.l.b16 %v5152
        %v5192 = vpack.c.b16 %v5177, %v5176
        %v5193 = vpack.c.b16 %v5179, %v5178
        %v5194 = vpack.c.b16 %v5181, %v5180
        %v5195 = vpack.c.b16 %v5183, %v5182
        %v5196 = vpack.c.b16 %v5185, %v5184
        %v5197 = vpack.c.b16 %v5187, %v5186
        %v5198 = vpack.c.b16 %v5189, %v5188
        %v5199 = vpack.c.b16 %v5191, %v5190
        %5208 = vmatprep.subr.bf16.mxu0 0
        %5209 = vmatpush1.bf16.msra.mxu0 %v5192
        %5210 = vmatprep.subr.bf16.mxu0 0
        %5211 = vmatpush1.bf16.msra.mxu0 %v5193
        %5212 = vmatprep.subr.bf16.mxu0 0
        %5213 = vmatpush1.bf16.msra.mxu0 %v5194
        %5214 = vmatprep.subr.bf16.mxu0 0
        %5215 = vmatpush1.bf16.msra.mxu0 %v5195
        %5216 = vmatprep.subr.bf16.mxu0 0
        %5217 = vmatpush1.bf16.msra.mxu0 %v5196
        %5218 = vmatprep.subr.bf16.mxu0 0
        %5219 = vmatpush1.bf16.msra.mxu0 %v5197
        %5220 = vmatprep.subr.bf16.mxu0 0
        %5221 = vmatpush1.bf16.msra.mxu0 %v5198
        %5222 = vmatprep.subr.bf16.mxu0 0
        %5223 = vmatpush1.bf16.msra.mxu0 %v5199
        %5224 = vmatprep.subr.bf16.mxu0 0
        %5225 = vmatpush1.bf16.msra.mxu0 0
        %5226 = vmatprep.subr.bf16.mxu0 0
        %5227 = vmatpush1.bf16.msra.mxu0 0
        %5228 = vmatprep.subr.bf16.mxu0 0
        %5229 = vmatpush1.bf16.msra.mxu0 0
        %5230 = vmatprep.subr.bf16.mxu0 0
        %5231 = vmatpush1.bf16.msra.mxu0 0
        %5232 = vmatprep.subr.bf16.mxu0 0
        %5233 = vmatpush1.bf16.msra.mxu0 0
        %5234 = vmatprep.subr.bf16.mxu0 0
        %5235 = vmatpush1.bf16.msra.mxu0 0
        %5236 = vmatprep.subr.bf16.mxu0 0
        %5237 = vmatpush1.bf16.msra.mxu0 0
        %5238 = vmatprep.subr.bf16.mxu0 0
        %5239 = vmatpush1.bf16.msra.mxu0 0
        %5240 = vmatprep.mubr.bf16.mxu0 0
        %5241 = vmatmul.mubr.bf16.gmra.mrb[0].mxu0 %v5136
        %v5242 = vpop.f32.mrb[0].mxu0
        %v5243 = vadd.f32 %v5158, %v5242
        %v5244 = vpop.f32.mrb[0].mxu0
        %v5245 = vpop.f32.mrb[0].mxu0
        %v5246 = vpop.f32.mrb[0].mxu0
        %5247 = vdwg.mxu0
        %v5248 = vmax.f32 %v5243, 0.0
        %v5249 = vpack.c.bf16 %v5248, %v5248
        %v5250 = vld [vmem:[%s18] sm:$0xf]
        %v5251 = vld [vmem:[%s18 + $0x4] sm:$0xf]
        %v5252 = vld [vmem:[%s18 + $0x8] sm:$0xf]
        %v5253 = vld [vmem:[%s18 + $0xc] sm:$0xf]
        %v5254 = vld [vmem:[%s18 + $0x10] sm:$0xf]
        %v5255 = vld [vmem:[%s18 + $0x14] sm:$0xf]
        %v5256 = vld [vmem:[%s18 + $0x18] sm:$0xf]
        %v5257 = vld [vmem:[%s18 + $0x1c] sm:$0xf]
        %v5258 = vld [vmem:[%s19] sm:$0x1]
        %v5260 = vlaneseq
        %v5261 = vshrl.u32 %v5260, 7
        %v5262 = vsub.s32 0, %v5261
        %v5263 = vrot.slane %v5258, %v5262
        %v5273 = vunpack.c.l.b16 %v5250
        %v5274 = vunpack.c.l.b16 %v5251
        %v5275 = vunpack.c.l.b16 %v5252
        %v5276 = vunpack.c.l.b16 %v5253
        %v5277 = vunpack.c.l.b16 %v5254
        %v5278 = vunpack.c.l.b16 %v5255
        %v5279 = vunpack.c.l.b16 %v5256
        %v5280 = vunpack.c.l.b16 %v5257
        %v5281 = vpack.c.b16 %v5274, %v5273
        %v5282 = vpack.c.b16 %v5276, %v5275
        %v5283 = vpack.c.b16 %v5278, %v5277
        %v5284 = vpack.c.b16 %v5280, %v5279
        %v5290 = vsel %vm4447, %v5249, 0
        %5292 = vmatprep.subr.bf16.mxu0 0
        %5293 = vmatpush1.bf16.msra.mxu0 %v5281
        %5294 = vmatprep.subr.bf16.mxu0 0
        %5295 = vmatpush1.bf16.msra.mxu0 %v5282
        %5296 = vmatprep.subr.bf16.mxu0 0
        %5297 = vmatpush1.bf16.msra.mxu0 %v5283
        %5298 = vmatprep.subr.bf16.mxu0 0
        %5299 = vmatpush1.bf16.msra.mxu0 %v5284
        %5300 = vmatprep.subr.bf16.mxu0 0
        %5301 = vmatpush1.bf16.msra.mxu0 0
        %5302 = vmatprep.subr.bf16.mxu0 0
        %5303 = vmatpush1.bf16.msra.mxu0 0
        %5304 = vmatprep.subr.bf16.mxu0 0
        %5305 = vmatpush1.bf16.msra.mxu0 0
        %5306 = vmatprep.subr.bf16.mxu0 0
        %5307 = vmatpush1.bf16.msra.mxu0 0
        %5308 = vmatprep.subr.bf16.mxu0 0
        %5309 = vmatpush1.bf16.msra.mxu0 0
        %5310 = vmatprep.subr.bf16.mxu0 0
        %5311 = vmatpush1.bf16.msra.mxu0 0
        %5312 = vmatprep.subr.bf16.mxu0 0
        %5313 = vmatpush1.bf16.msra.mxu0 0
        %5314 = vmatprep.subr.bf16.mxu0 0
        %5315 = vmatpush1.bf16.msra.mxu0 0
        %5316 = vmatprep.subr.bf16.mxu0 0
        %5317 = vmatpush1.bf16.msra.mxu0 0
        %5318 = vmatprep.subr.bf16.mxu0 0
        %5319 = vmatpush1.bf16.msra.mxu0 0
        %5320 = vmatprep.subr.bf16.mxu0 0
        %5321 = vmatpush1.bf16.msra.mxu0 0
        %5322 = vmatprep.subr.bf16.mxu0 0
        %5323 = vmatpush1.bf16.msra.mxu0 0
        %5324 = vmatprep.mubr.bf16.mxu0 0
        %5325 = vmatmul.mubr.bf16.gmra.mrb[0].mxu0 %v5290
        %v5326 = vpop.f32.mrb[0].mxu0
        %v5327 = vadd.f32 %v5263, %v5326
        %v5328 = vpop.f32.mrb[0].mxu0
        %v5329 = vpop.f32.mrb[0].mxu0
        %v5330 = vpop.f32.mrb[0].mxu0
        %5331 = vdwg.mxu0
        %vm5332 = vcmask 253952
        %5333 = vst.msk [vmem:[%s656] sm:$0x1] %vm5332, %v5327
        %v5334 = vpack.c.bf16 %v5126, %v5126
        %v5335 = vld [vmem:[%s10] sm:$0xff]
        %v5336 = vld [vmem:[%s10 + $0x8] sm:$0xff]
        %v5337 = vld [vmem:[%s10 + $0x10] sm:$0xff]
        %v5338 = vld [vmem:[%s10 + $0x18] sm:$0xff]
        %v5339 = vld [vmem:[%s10 + $0x20] sm:$0xff]
        %v5340 = vld [vmem:[%s10 + $0x28] sm:$0xff]
        %v5341 = vld [vmem:[%s10 + $0x30] sm:$0xff]
        %v5342 = vld [vmem:[%s10 + $0x38] sm:$0xff]
        %v5343 = vld [vmem:[%s10 + $0x40] sm:$0xff]
        %v5344 = vld [vmem:[%s10 + $0x48] sm:$0xff]
        %v5345 = vld [vmem:[%s10 + $0x50] sm:$0xff]
        %v5346 = vld [vmem:[%s10 + $0x58] sm:$0xff]
        %v5347 = vld [vmem:[%s10 + $0x60] sm:$0xff]
        %v5348 = vld [vmem:[%s10 + $0x68] sm:$0xff]
        %v5349 = vld [vmem:[%s10 + $0x70] sm:$0xff]
        %v5350 = vld [vmem:[%s10 + $0x78] sm:$0xff]
        %v5351 = vld [vmem:[%s11] sm:$0x3]
        %v5353 = vlaneseq
        %v5354 = vshrl.u32 %v5353, 7
        %v5355 = vsub.s32 0, %v5354
        %v5356 = vrot.slane %v5351, %v5355
        %v5357 = vlaneseq
        %v5358 = vshrl.u32 %v5357, 7
        %v5359 = vsub.s32 1, %v5358
        %v5360 = vrot.slane %v5351, %v5359
        %v5379 = vunpack.c.l.b16 %v5335
        %v5380 = vunpack.c.h.b16 %v5335
        %v5381 = vunpack.c.l.b16 %v5336
        %v5382 = vunpack.c.h.b16 %v5336
        %v5383 = vunpack.c.l.b16 %v5337
        %v5384 = vunpack.c.h.b16 %v5337
        %v5385 = vunpack.c.l.b16 %v5338
        %v5386 = vunpack.c.h.b16 %v5338
        %v5387 = vunpack.c.l.b16 %v5339
        %v5388 = vunpack.c.h.b16 %v5339
        %v5389 = vunpack.c.l.b16 %v5340
        %v5390 = vunpack.c.h.b16 %v5340
        %v5391 = vunpack.c.l.b16 %v5341
        %v5392 = vunpack.c.h.b16 %v5341
        %v5393 = vunpack.c.l.b16 %v5342
        %v5394 = vunpack.c.h.b16 %v5342
        %v5395 = vunpack.c.l.b16 %v5343
        %v5396 = vunpack.c.h.b16 %v5343
        %v5397 = vunpack.c.l.b16 %v5344
        %v5398 = vunpack.c.h.b16 %v5344
        %v5399 = vunpack.c.l.b16 %v5345
        %v5400 = vunpack.c.h.b16 %v5345
        %v5401 = vunpack.c.l.b16 %v5346
        %v5402 = vunpack.c.h.b16 %v5346
        %v5403 = vunpack.c.l.b16 %v5347
        %v5404 = vunpack.c.h.b16 %v5347
        %v5405 = vunpack.c.l.b16 %v5348
        %v5406 = vunpack.c.h.b16 %v5348
        %v5407 = vunpack.c.l.b16 %v5349
        %v5408 = vunpack.c.h.b16 %v5349
        %v5409 = vunpack.c.l.b16 %v5350
        %v5410 = vunpack.c.h.b16 %v5350
        %v5411 = vpack.c.b16 %v5381, %v5379
        %v5412 = vpack.c.b16 %v5382, %v5380
        %v5413 = vpack.c.b16 %v5385, %v5383
        %v5414 = vpack.c.b16 %v5386, %v5384
        %v5415 = vpack.c.b16 %v5389, %v5387
        %v5416 = vpack.c.b16 %v5390, %v5388
        %v5417 = vpack.c.b16 %v5393, %v5391
        %v5418 = vpack.c.b16 %v5394, %v5392
        %v5419 = vpack.c.b16 %v5397, %v5395
        %v5420 = vpack.c.b16 %v5398, %v5396
        %v5421 = vpack.c.b16 %v5401, %v5399
        %v5422 = vpack.c.b16 %v5402, %v5400
        %v5423 = vpack.c.b16 %v5405, %v5403
        %v5424 = vpack.c.b16 %v5406, %v5404
        %v5425 = vpack.c.b16 %v5409, %v5407
        %v5426 = vpack.c.b16 %v5410, %v5408
        %5443 = vmatprep.subr.bf16.mxu0 %v5412
        %5444 = vmatpush1.bf16.msra.mxu0 %v5411
        %5445 = vmatprep.subr.bf16.mxu0 %v5414
        %5446 = vmatpush1.bf16.msra.mxu0 %v5413
        %5447 = vmatprep.subr.bf16.mxu0 %v5416
        %5448 = vmatpush1.bf16.msra.mxu0 %v5415
        %5449 = vmatprep.subr.bf16.mxu0 %v5418
        %5450 = vmatpush1.bf16.msra.mxu0 %v5417
        %5451 = vmatprep.subr.bf16.mxu0 %v5420
        %5452 = vmatpush1.bf16.msra.mxu0 %v5419
        %5453 = vmatprep.subr.bf16.mxu0 %v5422
        %5454 = vmatpush1.bf16.msra.mxu0 %v5421
        %5455 = vmatprep.subr.bf16.mxu0 %v5424
        %5456 = vmatpush1.bf16.msra.mxu0 %v5423
        %5457 = vmatprep.subr.bf16.mxu0 %v5426
        %5458 = vmatpush1.bf16.msra.mxu0 %v5425
        %5459 = vmatprep.subr.bf16.mxu0 0
        %5460 = vmatpush1.bf16.msra.mxu0 0
        %5461 = vmatprep.subr.bf16.mxu0 0
        %5462 = vmatpush1.bf16.msra.mxu0 0
        %5463 = vmatprep.subr.bf16.mxu0 0
        %5464 = vmatpush1.bf16.msra.mxu0 0
        %5465 = vmatprep.subr.bf16.mxu0 0
        %5466 = vmatpush1.bf16.msra.mxu0 0
        %5467 = vmatprep.subr.bf16.mxu0 0
        %5468 = vmatpush1.bf16.msra.mxu0 0
        %5469 = vmatprep.subr.bf16.mxu0 0
        %5470 = vmatpush1.bf16.msra.mxu0 0
        %5471 = vmatprep.subr.bf16.mxu0 0
        %5472 = vmatpush1.bf16.msra.mxu0 0
        %5473 = vmatprep.subr.bf16.mxu0 0
        %5474 = vmatpush1.bf16.msra.mxu0 0
        %5475 = vmatprep.mubr.bf16.mxu0 0
        %5476 = vmatmul.mubr.bf16.gmra.mrb[0].mxu0 %v5334
        %v5477 = vpop.f32.mrb[0].mxu0
        %v5478 = vadd.f32 %v5356, %v5477
        %v5479 = vpop.f32.mrb[0].mxu0
        %v5480 = vadd.f32 %v5360, %v5479
        %v5481 = vpop.f32.mrb[0].mxu0
        %v5482 = vpop.f32.mrb[0].mxu0
        %5483 = vdwg.mxu0
        %v5484 = vmax.f32 %v5478, 0.0
        %v5485 = vmax.f32 %v5480, 0.0
        %5486 = vst.msk [vmem:[#allocation8] sm:$0xf] %vm4479, %v5484
        %5488 = vrot.lane.b32.xlu0 %v5484, 64
        %v5489 = vpop.permute.xlu0 %5488
        %5491 = vst.msk [vmem:[#allocation8 + $0x4] sm:$0xf] %vm4479, %v5489
        %5492 = vst.msk [vmem:[#allocation8 + $0x8] sm:$0xf] %vm4479, %v5485
        %5494 = vrot.lane.b32.xlu0 %v5485, 64
        %v5495 = vpop.permute.xlu0 %5494
        %5497 = vst.msk [vmem:[#allocation8 + $0xc] sm:$0xf] %vm4479, %v5495
        %v5498 = vld [vmem:[#allocation8] sm:$0xff]
        %v5499 = vld [vmem:[#allocation8 + $0x8] sm:$0xff]
        %v5500 = vpack.c.bf16 %v5499, %v5498
        %v5501 = vld [vmem:[%s12] sm:$0xf]
        %v5502 = vld [vmem:[%s12 + $0x4] sm:$0xf]
        %v5503 = vld [vmem:[%s12 + $0x8] sm:$0xf]
        %v5504 = vld [vmem:[%s12 + $0xc] sm:$0xf]
        %v5505 = vld [vmem:[%s12 + $0x10] sm:$0xf]
        %v5506 = vld [vmem:[%s12 + $0x14] sm:$0xf]
        %v5507 = vld [vmem:[%s12 + $0x18] sm:$0xf]
        %v5508 = vld [vmem:[%s12 + $0x1c] sm:$0xf]
        %v5509 = vld [vmem:[%s13] sm:$0x1]
        %v5511 = vlaneseq
        %v5512 = vshrl.u32 %v5511, 7
        %v5513 = vsub.s32 0, %v5512
        %v5514 = vrot.slane %v5509, %v5513
        %v5524 = vunpack.c.l.b16 %v5501
        %v5525 = vunpack.c.l.b16 %v5502
        %v5526 = vunpack.c.l.b16 %v5503
        %v5527 = vunpack.c.l.b16 %v5504
        %v5528 = vunpack.c.l.b16 %v5505
        %v5529 = vunpack.c.l.b16 %v5506
        %v5530 = vunpack.c.l.b16 %v5507
        %v5531 = vunpack.c.l.b16 %v5508
        %v5532 = vpack.c.b16 %v5525, %v5524
        %v5533 = vpack.c.b16 %v5527, %v5526
        %v5534 = vpack.c.b16 %v5529, %v5528
        %v5535 = vpack.c.b16 %v5531, %v5530
        %v5541 = vsel %vm4447, %v5500, 0
        %5543 = vmatprep.subr.bf16.mxu0 0
        %5544 = vmatpush1.bf16.msra.mxu0 %v5532
        %5545 = vmatprep.subr.bf16.mxu0 0
        %5546 = vmatpush1.bf16.msra.mxu0 %v5533
        %5547 = vmatprep.subr.bf16.mxu0 0
        %5548 = vmatpush1.bf16.msra.mxu0 %v5534
        %5549 = vmatprep.subr.bf16.mxu0 0
        %5550 = vmatpush1.bf16.msra.mxu0 %v5535
        %5551 = vmatprep.subr.bf16.mxu0 0
        %5552 = vmatpush1.bf16.msra.mxu0 0
        %5553 = vmatprep.subr.bf16.mxu0 0
        %5554 = vmatpush1.bf16.msra.mxu0 0
        %5555 = vmatprep.subr.bf16.mxu0 0
        %5556 = vmatpush1.bf16.msra.mxu0 0
        %5557 = vmatprep.subr.bf16.mxu0 0
        %5558 = vmatpush1.bf16.msra.mxu0 0
        %5559 = vmatprep.subr.bf16.mxu0 0
        %5560 = vmatpush1.bf16.msra.mxu0 0
        %5561 = vmatprep.subr.bf16.mxu0 0
        %5562 = vmatpush1.bf16.msra.mxu0 0
        %5563 = vmatprep.subr.bf16.mxu0 0
        %5564 = vmatpush1.bf16.msra.mxu0 0
        %5565 = vmatprep.subr.bf16.mxu0 0
        %5566 = vmatpush1.bf16.msra.mxu0 0
        %5567 = vmatprep.subr.bf16.mxu0 0
        %5568 = vmatpush1.bf16.msra.mxu0 0
        %5569 = vmatprep.subr.bf16.mxu0 0
        %5570 = vmatpush1.bf16.msra.mxu0 0
        %5571 = vmatprep.subr.bf16.mxu0 0
        %5572 = vmatpush1.bf16.msra.mxu0 0
        %5573 = vmatprep.subr.bf16.mxu0 0
        %5574 = vmatpush1.bf16.msra.mxu0 0
        %5575 = vmatprep.mubr.bf16.mxu0 0
        %5576 = vmatmul.mubr.bf16.gmra.mrb[0].mxu0 %v5541
        %v5577 = vpop.f32.mrb[0].mxu0
        %v5578 = vadd.f32 %v5514, %v5577
        %v5579 = vpop.f32.mrb[0].mxu0
        %v5580 = vpop.f32.mrb[0].mxu0
        %v5581 = vadd.f32 %v5514, %v5580
        %v5582 = vpop.f32.mrb[0].mxu0
        %5583 = vdwg.mxu0
        %v5584 = vmax.f32 %v5578, 0.0
        %v5585 = vmax.f32 %v5581, 0.0
        %5586 = vst.msk [vmem:[#allocation9] sm:$0xff] %vm3393, %v5584
        %5587 = vst.msk [vmem:[#allocation9 + $0x8] sm:$0xff] %vm3393, %v5585
        %5590 = vrot.lane.b32.xlu0 %v5584, 96
        %v5591 = vpop.permute.xlu0 %5590
        %5592 = vrot.lane.b32.xlu0 %v5585, 96
        %v5593 = vpop.permute.xlu0 %5592
        %5596 = vst.msk [vmem:[#allocation9 + $0x10] sm:$0xff] %vm3393, %v5591
        %5597 = vst.msk [vmem:[#allocation9 + $0x18] sm:$0xff] %vm3393, %v5593
        %5598 = vrot.lane.b32.xlu0 %v5584, 64
        %v5599 = vpop.permute.xlu0 %5598
        %5600 = vrot.lane.b32.xlu0 %v5585, 64
        %v5601 = vpop.permute.xlu0 %5600
        %5604 = vst.msk [vmem:[#allocation9 + $0x20] sm:$0xff] %vm3393, %v5599
        %5605 = vst.msk [vmem:[#allocation9 + $0x28] sm:$0xff] %vm3393, %v5601
        %5606 = vrot.lane.b32.xlu0 %v5584, 32
        %v5607 = vpop.permute.xlu0 %5606
        %5608 = vrot.lane.b32.xlu0 %v5585, 32
        %v5609 = vpop.permute.xlu0 %5608
        %5612 = vst.msk [vmem:[#allocation9 + $0x30] sm:$0xff] %vm3393, %v5607
        %5613 = vst.msk [vmem:[#allocation9 + $0x38] sm:$0xff] %vm3393, %v5609
        %v5614 = vld [vmem:[#allocation9] sm:$0xff]
        %v5615 = vld [vmem:[#allocation9 + $0x8] sm:$0xff]
        %v5616 = vld [vmem:[#allocation9 + $0x10] sm:$0xff]
        %v5617 = vld [vmem:[#allocation9 + $0x18] sm:$0xff]
        %v5618 = vld [vmem:[#allocation9 + $0x20] sm:$0xff]
        %v5619 = vld [vmem:[#allocation9 + $0x28] sm:$0xff]
        %v5620 = vld [vmem:[#allocation9 + $0x30] sm:$0xff]
        %v5621 = vld [vmem:[#allocation9 + $0x38] sm:$0xff]
        %v5622 = vpack.c.bf16 %v5615, %v5614
        %v5623 = vpack.c.bf16 %v5617, %v5616
        %v5624 = vpack.c.bf16 %v5619, %v5618
        %v5625 = vpack.c.bf16 %v5621, %v5620
        %v5626 = vld [vmem:[%s14] sm:$0xf]
        %v5627 = vld [vmem:[%s14 + $0x4] sm:$0xf]
        %v5628 = vld [vmem:[%s14 + $0x8] sm:$0xf]
        %v5629 = vld [vmem:[%s14 + $0xc] sm:$0xf]
        %v5630 = vld [vmem:[%s15] sm:$0x1]
        %v5632 = vlaneseq
        %v5633 = vshrl.u32 %v5632, 7
        %v5634 = vsub.s32 0, %v5633
        %v5635 = vrot.slane %v5630, %v5634
        %v5641 = vunpack.c.l.b16 %v5626
        %v5642 = vunpack.c.l.b16 %v5627
        %v5643 = vunpack.c.l.b16 %v5628
        %v5644 = vunpack.c.l.b16 %v5629
        %v5645 = vpack.c.b16 %v5642, %v5641
        %v5646 = vpack.c.b16 %v5644, %v5643
        %v5650 = vsel %vm3393, %v5622, 0
        %v5653 = vsel %vm3393, %v5623, 0
        %v5656 = vsel %vm3393, %v5624, 0
        %v5659 = vsel %vm3393, %v5625, 0
        %5661 = vmatprep.subr.bf16.mxu0 0
        %5662 = vmatpush1.bf16.msra.mxu0 %v5645
        %5663 = vmatprep.subr.bf16.mxu0 0
        %5664 = vmatpush1.bf16.msra.mxu0 %v5646
        %5665 = vmatprep.subr.bf16.mxu0 0
        %5666 = vmatpush1.bf16.msra.mxu0 0
        %5667 = vmatprep.subr.bf16.mxu0 0
        %5668 = vmatpush1.bf16.msra.mxu0 0
        %5669 = vmatprep.subr.bf16.mxu0 0
        %5670 = vmatpush1.bf16.msra.mxu0 0
        %5671 = vmatprep.subr.bf16.mxu0 0
        %5672 = vmatpush1.bf16.msra.mxu0 0
        %5673 = vmatprep.subr.bf16.mxu0 0
        %5674 = vmatpush1.bf16.msra.mxu0 0
        %5675 = vmatprep.subr.bf16.mxu0 0
        %5676 = vmatpush1.bf16.msra.mxu0 0
        %5677 = vmatprep.subr.bf16.mxu0 0
        %5678 = vmatpush1.bf16.msra.mxu0 0
        %5679 = vmatprep.subr.bf16.mxu0 0
        %5680 = vmatpush1.bf16.msra.mxu0 0
        %5681 = vmatprep.subr.bf16.mxu0 0
        %5682 = vmatpush1.bf16.msra.mxu0 0
        %5683 = vmatprep.subr.bf16.mxu0 0
        %5684 = vmatpush1.bf16.msra.mxu0 0
        %5685 = vmatprep.subr.bf16.mxu0 0
        %5686 = vmatpush1.bf16.msra.mxu0 0
        %5687 = vmatprep.subr.bf16.mxu0 0
        %5688 = vmatpush1.bf16.msra.mxu0 0
        %5689 = vmatprep.subr.bf16.mxu0 0
        %5690 = vmatpush1.bf16.msra.mxu0 0
        %5691 = vmatprep.subr.bf16.mxu0 0
        %5692 = vmatpush1.bf16.msra.mxu0 0
        %5693 = vmatprep.mubr.bf16.mxu0 0
        %5694 = vmatmul.mubr.bf16.gmra.mrb[0].mxu0 %v5650
        %v5695 = vpop.f32.mrb[0].mxu0
        %v5696 = vadd.f32 %v5635, %v5695
        %v5697 = vpop.f32.mrb[0].mxu0
        %v5698 = vpop.f32.mrb[0].mxu0
        %v5699 = vadd.f32 %v5635, %v5698
        %v5700 = vpop.f32.mrb[0].mxu0
        %5701 = vmatprep.mubr.bf16.mxu0 0
        %5702 = vmatmul.mubr.bf16.gmra.mrb[0].mxu0 %v5653
        %v5703 = vpop.f32.mrb[0].mxu0
        %v5704 = vadd.f32 %v5635, %v5703
        %v5705 = vpop.f32.mrb[0].mxu0
        %v5706 = vpop.f32.mrb[0].mxu0
        %v5707 = vadd.f32 %v5635, %v5706
        %v5708 = vpop.f32.mrb[0].mxu0
        %5709 = vmatprep.mubr.bf16.mxu0 0
        %5710 = vmatmul.mubr.bf16.gmra.mrb[0].mxu0 %v5656
        %v5711 = vpop.f32.mrb[0].mxu0
        %v5712 = vadd.f32 %v5635, %v5711
        %v5713 = vpop.f32.mrb[0].mxu0
        %v5714 = vpop.f32.mrb[0].mxu0
        %v5715 = vadd.f32 %v5635, %v5714
        %v5716 = vpop.f32.mrb[0].mxu0
        %5717 = vmatprep.mubr.bf16.mxu0 0
        %5718 = vmatmul.mubr.bf16.gmra.mrb[0].mxu0 %v5659
        %v5719 = vpop.f32.mrb[0].mxu0
        %v5720 = vadd.f32 %v5635, %v5719
        %v5721 = vpop.f32.mrb[0].mxu0
        %v5722 = vpop.f32.mrb[0].mxu0
        %v5723 = vadd.f32 %v5635, %v5722
        %v5724 = vpop.f32.mrb[0].mxu0
        %5725 = vdwg.mxu0
        %v5726 = vtanh.pop %v5696
        %v5727 = vtanh.pop %v5699
        %v5728 = vtanh.pop %v5704
        %v5729 = vtanh.pop %v5707
        %v5730 = vtanh.pop %v5712
        %v5731 = vtanh.pop %v5715
        %v5732 = vtanh.pop %v5720
        %v5733 = vtanh.pop %v5723
        %vm5734 = vcmask 392192
        %5735 = vst.msk [vmem:[%s666] sm:$0xff] %vm5734, %v5726
        %5736 = vst.msk [vmem:[%s666 + $0x8] sm:$0xff] %vm5734, %v5727
        %5737 = vst.msk [vmem:[%s666 + $0x10] sm:$0xff] %vm5734, %v5728
        %5738 = vst.msk [vmem:[%s666 + $0x18] sm:$0xff] %vm5734, %v5729
        %5739 = vst.msk [vmem:[%s666 + $0x20] sm:$0xff] %vm5734, %v5730
        %5740 = vst.msk [vmem:[%s666 + $0x28] sm:$0xff] %vm5734, %v5731
        %5741 = vst.msk [vmem:[%s666 + $0x30] sm:$0xff] %vm5734, %v5732
        %5742 = vst.msk [vmem:[%s666 + $0x38] sm:$0xff] %vm5734, %v5733
        %p5743 = scmp.lt.s32.totalorder %s36, 1
        %s5744 = scalar_select %p5743, %s36, 1
        %s5745 = smul.addr %s5744, 8
        %s5746 = smul.addr %s5745, 8
        %s5747 = scalar_lea.vmem %s20, %s5746
        %s5748 = sand.u32 %s495, 1
        %s5749 = scalar_lea.sflag [#allocation11], %s5748
        %s5750 = sand.u32 %s495, 1
        %s5751 = scalar_lea.vmem [#allocation10], %s5750
        // Predicated region
        $region101: #{cerrado_forward.1} parent=99 // pred_check
          %p5752 = pneg %p479
        $region102: #{cerrado_forward.1} parent=99 // pred_check_branch
          %5754 = sbr.rel (%p5752) target = $region104
        $region103: #{cerrado_forward.1} parent=99 // pred_region
          _
        $region104: #{cerrado_forward.1} parent=99 // pred_fallthru
          _
        // Predicated region
        $region105: #{cerrado_forward.1} parent=99 // pred_check
          %p5755 = pneg %p505
        $region106: #{cerrado_forward.1} parent=99 // pred_check_branch
          %5757 = sbr.rel (%p5755) target = $region108
        $region107: #{cerrado_forward.1} parent=99 // pred_region
          %s5759 = ssub.s32 16, 16
          %5760 = vsyncadd %s5749, %s5759
          %s5761 = smul.addr %s36, 16
          %s5762 = scalar_lea.hbm %s21, %s5761
          %s5764 = sshll.u32 %s5751, 4
          %s5765 = int_to_ptr.vmem [resolvable:$true] %s5764
          %5767 = dma.vmem_to_hbm [thread:$0]  %s5765, 16, %s5762, %s5749
        $region108: #{cerrado_forward.1} parent=99 // pred_fallthru
          _
      $region100: #{cerrado_forward.1} parent=5 // pred_fallthru
        _
      %p5768 = scmp.le.s32.totalorder 2, %s31
      // Predicated region
      $region109: #{cerrado_forward.1} parent=5 // pred_check
        %p5769 = pneg %p5768
      $region110: #{cerrado_forward.1} parent=5 // pred_check_branch
        %5771 = sbr.rel (%p5769) target = $region112
      $region111: #{cerrado_forward.1} parent=5 // pred_region
        %s5772 = ssub.s32 %s31, 2
        // Predicated region
        $region113: #{cerrado_forward.1} parent=111 // pred_check
          %p5773 = pneg %p485
        $region114: #{cerrado_forward.1} parent=111 // pred_check_branch
          %5775 = sbr.rel (%p5773) target = $region116
        $region115: #{cerrado_forward.1} parent=111 // pred_region
          %p5776 = scmp.lt.s32.totalorder %s37, 1
          %s5777 = scalar_select %p5776, %s37, 1
          %s5778 = smul.addr %s5777, 8
          %s5779 = smul.addr %s5778, 8
          %s5780 = scalar_lea.vmem %s20, %s5779
        $region116: #{cerrado_forward.1} parent=111 // pred_fallthru
          _
        // Predicated region
        $region117: #{cerrado_forward.1} parent=111 // pred_check
          %p5781 = pneg %p511
        $region118: #{cerrado_forward.1} parent=111 // pred_check_branch
          %5783 = sbr.rel (%p5781) target = $region120
        $region119: #{cerrado_forward.1} parent=111 // pred_region
          %s5784 = sand.u32 %s496, 1
          %s5785 = scalar_lea.sflag [#allocation11], %s5784
          %s5786 = sand.u32 %s496, 1
          %s5787 = scalar_lea.vmem [#allocation10], %s5786
          %5788 = dma.done %s5785, 16
        $region120: #{cerrado_forward.1} parent=111 // pred_fallthru
          _
      $region112: #{cerrado_forward.1} parent=5 // pred_fallthru
        _
    $region6: #{cerrado_forward.1} parent=1 // loop_footer
      %s35 = sadd.s32 1, %s31
    $region7: #{cerrado_forward.1} parent=1 // loop_footer_branch
      %30 = sbr.rel target = $region3
    $region8: #{cerrado_forward.1} parent=1 // loop_exit
      _
    %5789 = vsyncpa [#allocation11], 1
    %s5790 = scalar_lea.sflag [#allocation11], 1
    %5791 = vsyncpa %s5790, 1

</llo_original>
